<compile_context>
chip_gen: v7x
topology: tpu7x:2x2x1
jax: 0.10.0
libtpu: 0.0.40
codegen_flags: <defaults>
</compile_context>

<pallas_src>
import jax
import jax.numpy as jnp
from jax.experimental import pallas as pl
from jax.experimental.pallas import tpu as pltpu

_VMEM_LIMIT = 32 * 1024 * 1024   # safe (<= physical / sane scoped) on v5e/v6e/v7x


# ----------------------------------------------------------------------------
# Tiling helpers
# ----------------------------------------------------------------------------
def _pick_row_block(n, max_rows=512):
    """Row-tile for the input projection: divides n and keeps (8,128) legality."""
    if n <= max_rows:
        return n
    for r in range(max_rows, 7, -1):
        if n % r == 0 and r % 8 == 0:
            return r
    return n


def _pick_time_chunk(s, b, h, budget_bytes=24 << 20):
    """Time-chunk for the recurrence so the double-buffered xp(fwd+bwd, bf16) and
    out(fwd+bwd, f32) blocks fit a conservative cross-generation VMEM budget."""
    per_step = 2 * (2 * (b * 4 * h * 2) + 2 * (b * h * 4))
    c = int(max(1, min(s, budget_bytes // max(per_step, 1))))
    while s % c != 0:
        c -= 1
    return c


# ----------------------------------------------------------------------------
# Kernel 1: fused input projection
#   xp[d] = sum_k x_k @ W_k[:, d*4H:(d+1)*4H] + b[d]   for both directions at once
# ----------------------------------------------------------------------------
def _make_input_proj_kernel(n_inputs):
    def kernel(*refs):
        x_refs = refs[:n_inputs]
        w_refs = refs[n_inputs:2 * n_inputs]
        b_ref = refs[2 * n_inputs]
        o_ref = refs[2 * n_inputs + 1]           # (2, R, 4H) bf16
        acc = jnp.dot(x_refs[0][...], w_refs[0][...],
                      preferred_element_type=jnp.float32)
        for k in range(1, n_inputs):
            acc = acc + jnp.dot(x_refs[k][...], w_refs[k][...],
                                preferred_element_type=jnp.float32)
        acc = acc + b_ref[...]                   # (R, 8H) f32
        g = o_ref.shape[-1]                      # 4H
        o_ref[0] = acc[:, :g].astype(o_ref.dtype)
        o_ref[1] = acc[:, g:].astype(o_ref.dtype)
    return kernel


def input_projection(inputs, w_parts, b):
    """inputs: list of (N, F_k) bf16; w_parts: list of (F_k, 8H) bf16;
       b: (1, 8H) f32.  Returns xp (2, N, 4H) bf16 (direction-major)."""
    n_in = len(inputs)
    n_rows = inputs[0].shape[0]
    g2 = b.shape[-1]
    g = g2 // 2
    r = _pick_row_block(n_rows)
    grid = (n_rows // r,)

    in_specs = []
    for a in inputs:
        f = a.shape[-1]
        in_specs.append(pl.BlockSpec((r, f), lambda i: (i, 0)))
    for w in w_parts:
        f = w.shape[0]
        in_specs.append(pl.BlockSpec((f, g2), lambda i: (0, 0)))
    in_specs.append(pl.BlockSpec((1, g2), lambda i: (0, 0)))

    return pl.pallas_call(
        _make_input_proj_kernel(n_in),
        out_shape=jax.ShapeDtypeStruct((2, n_rows, g), jnp.bfloat16),
        grid_spec=pltpu.PrefetchScalarGridSpec(
            num_scalar_prefetch=0,
            grid=grid,
            in_specs=in_specs,
            out_specs=pl.BlockSpec((2, r, g), lambda i: (0, i, 0)),
        ),
        compiler_params=pltpu.CompilerParams(
            dimension_semantics=("parallel",),
            vmem_limit_bytes=_VMEM_LIMIT),
    )(*inputs, *w_parts, b)


# ----------------------------------------------------------------------------
# Kernel 2: fused bidirectional recurrence.  grid = (time chunks,)
# ----------------------------------------------------------------------------
def bilstm_recurrent_kernel(xpf_ref, xpb_ref, whh_ref,
                            outf_ref, outb_ref, hN_ref, cN_ref,
                            h_sc, c_sc):
    tc = pl.program_id(0)
    T = pl.num_programs(0)

    @pl.when(tc == 0)
    def _():
        h_sc[...] = jnp.zeros_like(h_sc)
        c_sc[...] = jnp.zeros_like(c_sc)

    C = xpf_ref.shape[0]          # time steps per chunk (static)
    H = whh_ref.shape[1]
    whh_f = whh_ref[0]            # (H, 4H) bf16, loaded once per chunk
    whh_b = whh_ref[1]

    def lstm_cell(z, c):
        # exact activations (EUP); gate math in f32
        i_g = pl.reciprocal(1.0 + jnp.exp(-z[:, 0 * H:1 * H]))
        f_g = pl.reciprocal(1.0 + jnp.exp(-z[:, 1 * H:2 * H]))
        g_g = jnp.tanh(z[:, 2 * H:3 * H])
        o_g = pl.reciprocal(1.0 + jnp.exp(-z[:, 3 * H:4 * H]))
        c_new = f_g * c + i_g * g_g
        h_new = o_g * jnp.tanh(c_new)
        return h_new, c_new

    def step(t, carry):
        h_f, c_f, h_b, c_b = carry                       # f32 (B, H)
        rb = C - 1 - t                                   # backward row in this chunk
        # both directions' recurrent matmuls issued back-to-back (independent chains)
        z_f = xpf_ref[t].astype(jnp.float32) + jnp.dot(
            h_f.astype(whh_f.dtype), whh_f, preferred_element_type=jnp.float32)
        z_b = xpb_ref[rb].astype(jnp.float32) + jnp.dot(
            h_b.astype(whh_b.dtype), whh_b, preferred_element_type=jnp.float32)
        h_f, c_f = lstm_cell(z_f, c_f)
        h_b, c_b = lstm_cell(z_b, c_b)
        outf_ref[t] = h_f.astype(outf_ref.dtype)
        outb_ref[rb] = h_b.astype(outb_ref.dtype)
        return (h_f, c_f, h_b, c_b)

    carry0 = (h_sc[0], c_sc[0], h_sc[1], c_sc[1])
    h_f, c_f, h_b, c_b = jax.lax.fori_loop(0, C, step, carry0,
                                           unroll=min(C, 8))

    # carry state across time chunks
    h_sc[0] = h_f
    c_sc[0] = c_f
    h_sc[1] = h_b
    c_sc[1] = c_b

    # final states only on the last chunk (both directions finish there)
    @pl.when(tc == T - 1)
    def _():
        hN_ref[0] = h_f.astype(hN_ref.dtype)
        hN_ref[1] = h_b.astype(hN_ref.dtype)
        cN_ref[0] = c_f.astype(cN_ref.dtype)
        cN_ref[1] = c_b.astype(cN_ref.dtype)


def bilstm_layer(xp, w_hh2, *, time_chunk=None):
    """xp: (2, S, B, 4H) bf16 (already x@W_ih + b), w_hh2: (2, H, 4H) bf16.
       Returns out_f, out_b: (S, B, H) f32 (original time order), hN, cN: (2, B, H) f32."""
    _, S, B, G = xp.shape
    H = w_hh2.shape[1]
    if time_chunk is None:
        time_chunk = _pick_time_chunk(S, B, H)
    assert S % time_chunk == 0
    C = time_chunk
    T = S // C

    out_f, out_b, hN, cN = pl.pallas_call(
        bilstm_recurrent_kernel,
        out_shape=(jax.ShapeDtypeStruct((S, B, H), jnp.float32),
                   jax.ShapeDtypeStruct((S, B, H), jnp.float32),
                   jax.ShapeDtypeStruct((2, B, H), jnp.float32),
                   jax.ShapeDtypeStruct((2, B, H), jnp.float32)),
        grid_spec=pltpu.PrefetchScalarGridSpec(
            num_scalar_prefetch=0,
            grid=(T,),
            in_specs=[
                # forward direction consumes time chunks 0..T-1
                pl.BlockSpec((None, C, B, G), lambda tc: (0, tc, 0, 0)),
                # backward direction consumes time chunks T-1..0
                pl.BlockSpec((None, C, B, G), lambda tc: (1, T - 1 - tc, 0, 0)),
                pl.BlockSpec((2, H, G), lambda tc: (0, 0, 0)),
            ],
            out_specs=[
                pl.BlockSpec((C, B, H), lambda tc: (tc, 0, 0)),
                pl.BlockSpec((C, B, H), lambda tc: (T - 1 - tc, 0, 0)),
                pl.BlockSpec((2, B, H), lambda tc: (0, 0, 0)),
                pl.BlockSpec((2, B, H), lambda tc: (0, 0, 0)),
            ],
            scratch_shapes=[pltpu.VMEM((2, B, H), jnp.float32),
                            pltpu.VMEM((2, B, H), jnp.float32)],
        ),
        compiler_params=pltpu.CompilerParams(
            dimension_semantics=("arbitrary",),       # time is sequential
            vmem_limit_bytes=_VMEM_LIMIT),
    )(xp, xp, w_hh2)
    return out_f, out_b, hN, cN


# ----------------------------------------------------------------------------
# RnnEncoder forward (matches the PyTorch module semantics)
# ----------------------------------------------------------------------------
def rnn_encoder_forward(x, packed_params, *, time_chunk=None):
    """x: (B, S, input_dim) f32.
       packed_params: per layer (w_ih_fused (D_in, 8H) bf16, w_hh2 (2, H, 4H) bf16,
                                 b_fused (1, 8H) f32).
       Returns (output (B, S, 2H), (h, c) each (B, 2*n_layers, H))."""
    xs = jnp.transpose(x, (1, 0, 2))                     # (S, B, D) time-major
    S, B, _ = xs.shape
    layer_inputs = [xs.astype(jnp.bfloat16)]             # feature-chunked layer inputs
    hs, cs = [], []
    out_f = out_b = None
    for w_ih_fused, w_hh2, b_fused in packed_params:
        H = w_hh2.shape[1]
        # Split the fused W_ih by the feature chunks of the layer inputs (layer 0:
        # one chunk of size D; deeper layers: fwd/bwd chunks of size H each) so the
        # previous layer's output never needs to be concatenated in HBM.
        flat_inputs, w_parts, off = [], [], 0
        for a in layer_inputs:
            f = a.shape[-1]
            flat_inputs.append(a.reshape(S * B, f))
            w_parts.append(w_ih_fused[off:off + f])
            off += f
        xp = input_projection(flat_inputs, w_parts, b_fused).reshape(2, S, B, 4 * H)
        out_f, out_b, hN, cN = bilstm_layer(xp, w_hh2, time_chunk=time_chunk)
        hs.append(hN)
        cs.append(cN)
        layer_inputs = [out_f.astype(jnp.bfloat16), out_b.astype(jnp.bfloat16)]

    output = jnp.transpose(jnp.concatenate([out_f, out_b], axis=-1), (1, 0, 2))
    h = jnp.transpose(jnp.concatenate(hs, axis=0), (1, 0, 2))     # (B, 2L, H)
    c = jnp.transpose(jnp.concatenate(cs, axis=0), (1, 0, 2))
    return output, (h, c)


# ----------------------------------------------------------------------------
# Deterministic parameter init (PyTorch-style uniform(-1/sqrt(H), 1/sqrt(H)))
# Per layer: ((w_ih_f, w_ih_b), (w_hh_f, w_hh_b), (b_f, b_b)) with
#   w_ih_*: (D_in, 4H), w_hh_*: (H, 4H), b_* = b_ih + b_hh: (4H,)
# ----------------------------------------------------------------------------
def init_params(key, input_dim, hidden_dim, n_layers):
    k = float(hidden_dim) ** -0.5
    params = []
    for layer in range(n_layers):
        d_in = input_dim if layer == 0 else 2 * hidden_dim
        w_ih, w_hh, b = [], [], []
        for _ in range(2):
            key, k1, k2, k3, k4 = jax.random.split(key, 5)
            w_ih.append(jax.random.uniform(k1, (d_in, 4 * hidden_dim),
                                           jnp.float32, -k, k))
            w_hh.append(jax.random.uniform(k2, (hidden_dim, 4 * hidden_dim),
                                           jnp.float32, -k, k))
            b_ih = jax.random.uniform(k3, (4 * hidden_dim,), jnp.float32, -k, k)
            b_hh = jax.random.uniform(k4, (4 * hidden_dim,), jnp.float32, -k, k)
            b.append(b_ih + b_hh)
        params.append((tuple(w_ih), tuple(w_hh), tuple(b)))
    return params


def pack_params(params):
    """Convert per-direction params into the fused kernel layout."""
    packed = []
    for (wi_f, wi_b), (wh_f, wh_b), (b_f, b_b) in params:
        w_ih_fused = jnp.concatenate([wi_f, wi_b], axis=1).astype(jnp.bfloat16)   # (D_in, 8H)
        w_hh2 = jnp.stack([wh_f, wh_b], axis=0).astype(jnp.bfloat16)              # (2, H, 4H)
        b_fused = jnp.concatenate([b_f, b_b]).reshape(1, -1).astype(jnp.float32)  # (1, 8H)
        packed.append((w_ih_fused, w_hh2, b_fused))
    return packed


# ----------------------------------------------------------------------------
# Pure-JAX f32 reference (PyTorch LSTM semantics) for correctness check
# ----------------------------------------------------------------------------
def ref_lstm_direction(x, w_ih, w_hh, b, *, reverse):
    S, B, D = x.shape
    H = w_hh.shape[0]

    def step(carry, x_t):
        h, c = carry
        gates = x_t @ w_ih + h @ w_hh + b
        i = jax.nn.sigmoid(gates[:, 0 * H:1 * H])
        f = jax.nn.sigmoid(gates[:, 1 * H:2 * H])
        g = jnp.tanh(gates[:, 2 * H:3 * H])
        o = jax.nn.sigmoid(gates[:, 3 * H:4 * H])
        c = f * c + i * g
        h = o * jnp.tanh(c)
        return (h, c), h

    xs = x[::-1] if reverse else x
    init = (jnp.zeros((B, H), jnp.float32), jnp.zeros((B, H), jnp.float32))
    (h, c), outs = jax.lax.scan(step, init, xs)
    if reverse:
        outs = outs[::-1]
    return outs, h, c


def ref_forward(x, params):
    xs = jnp.transpose(x, (1, 0, 2))
    hs, cs = [], []
    layer_in = xs
    for (wi_f, wi_b), (wh_f, wh_b), (b_f, b_b) in params:
        out_f, h_f, c_f = ref_lstm_direction(layer_in, wi_f, wh_f, b_f, reverse=False)
        out_b, h_b, c_b = ref_lstm_direction(layer_in, wi_b, wh_b, b_b, reverse=True)
        layer_in = jnp.concatenate([out_f, out_b], axis=-1)
        hs += [h_f, h_b]
        cs += [c_f, c_b]
    output = jnp.transpose(layer_in, (1, 0, 2))
    h = jnp.transpose(jnp.stack(hs, axis=0), (1, 0, 2))
    c = jnp.transpose(jnp.stack(cs, axis=0), (1, 0, 2))
    return output, (h, c)


if __name__ == "__main__":
    BATCH, SEQ, INPUT_DIM, HIDDEN_DIM, N_LAYERS = 2, 8, 16, 32, 1

    key = jax.random.PRNGKey(0)
    key, xkey = jax.random.split(key)
    x = jax.random.normal(xkey, (BATCH, SEQ, INPUT_DIM), jnp.float32)
    params = init_params(key, INPUT_DIM, HIDDEN_DIM, N_LAYERS)
    packed = pack_params(params)

    fwd = jax.jit(rnn_encoder_forward)
    output, (h, c) = fwd(x, packed)
    jax.block_until_ready((output, h, c))

    assert output.shape == (BATCH, SEQ, 2 * HIDDEN_DIM), output.shape
    assert h.shape == (BATCH, 2 * N_LAYERS, HIDDEN_DIM), h.shape
    assert c.shape == (BATCH, 2 * N_LAYERS, HIDDEN_DIM), c.shape

    # correctness check vs f32 reference (kernel uses bf16 MXU inputs / bf16 xp,
    # exact sigmoid/tanh, f32 gate & state math)
    ref_out, (ref_h, ref_c) = ref_forward(x, params)
    import numpy as np
    np.testing.assert_allclose(np.asarray(output), np.asarray(ref_out),
                               rtol=3e-2, atol=3e-2)
    np.testing.assert_allclose(np.asarray(h), np.asarray(ref_h),
                               rtol=3e-2, atol=3e-2)
    np.testing.assert_allclose(np.asarray(c), np.asarray(ref_c),
                               rtol=3e-2, atol=3e-2)

    print("KERNEL_OK")
</pallas_src>

<mosaic_0001>
module attributes {stable_mosaic.version = 11 : i64} {
  func.func @kernel(%arg0: i32, %arg1: memref<16x16xbf16, #tpu.memory_space<vmem>>, %arg2: memref<16x256xbf16, #tpu.memory_space<vmem>>, %arg3: memref<1x256xf32, #tpu.memory_space<vmem>>, %arg4: memref<2x16x128xbf16, #tpu.memory_space<vmem>>) attributes {dimension_semantics = [#tpu.dimension_semantics<parallel>], iteration_bounds = array<i64: 1>, scalar_prefetch = 0 : i64, scratch_operands = 0 : i64, tpu.core_type = #tpu.core_type<tc>, window_params = [{transform_indices = @transform_0, window_bounds = array<i64: 16, 16>}, {pipeline_mode = #tpu.pipeline_mode<synchronous>, transform_indices = @transform_1, window_bounds = array<i64: 16, 256>}, {pipeline_mode = #tpu.pipeline_mode<synchronous>, transform_indices = @transform_2, window_bounds = array<i64: 1, 256>}, {transform_indices = @transform_3, window_bounds = array<i64: 2, 16, 128>}]} {
    %c0 = arith.constant 0 : index
    %c0_0 = arith.constant 0 : index
    %0 = vector.load %arg1[%c0, %c0_0] : memref<16x16xbf16, #tpu.memory_space<vmem>>, vector<16x16xbf16>
    %c0_1 = arith.constant 0 : index
    %c0_2 = arith.constant 0 : index
    %1 = vector.load %arg2[%c0_1, %c0_2] : memref<16x256xbf16, #tpu.memory_space<vmem>>, vector<16x256xbf16>
    %cst = arith.constant dense<0.000000e+00> : vector<16x256xf32>
    %2 = tpu.matmul %0, %1, %cst {dimension_numbers = #tpu.dot_dimension_numbers<[1], [0], [0], [1], [0, 0, 1, 1], [], []>} : vector<16x16xbf16>, vector<16x256xbf16>, vector<16x256xf32> -> vector<16x256xf32>
    %c0_3 = arith.constant 0 : index
    %c0_4 = arith.constant 0 : index
    %3 = vector.load %arg3[%c0_3, %c0_4] : memref<1x256xf32, #tpu.memory_space<vmem>>, vector<1x256xf32>
    %4 = vector.broadcast %3 : vector<1x256xf32> to vector<16x256xf32>
    %5 = arith.addf %2, %4 : vector<16x256xf32>
    %6 = vector.extract_strided_slice %5 {offsets = [0, 0], sizes = [16, 128], strides = [1, 1]} : vector<16x256xf32> to vector<16x128xf32>
    %7 = arith.truncf %6 : vector<16x128xf32> to vector<16x128xbf16>
    %c0_5 = arith.constant 0 : index
    %c0_6 = arith.constant 0 : index
    %c0_7 = arith.constant 0 : index
    %8 = vector.load %arg4[%c0_5, %c0_6, %c0_7] : memref<2x16x128xbf16, #tpu.memory_space<vmem>>, vector<1x16x128xbf16>
    %9 = vector.shape_cast %8 : vector<1x16x128xbf16> to vector<16x128xbf16>
    %10 = vector.shape_cast %7 : vector<16x128xbf16> to vector<1x16x128xbf16>
    tpu.vector_store %arg4[%c0_5, %c0_6, %c0_7], %10 {strides = array<i32>} : memref<2x16x128xbf16, #tpu.memory_space<vmem>>, vector<1x16x128xbf16>,
    %11 = vector.extract_strided_slice %5 {offsets = [0, 128], sizes = [16, 128], strides = [1, 1]} : vector<16x256xf32> to vector<16x128xf32>
    %12 = arith.truncf %11 : vector<16x128xf32> to vector<16x128xbf16>
    %c1 = arith.constant 1 : index
    %c0_8 = arith.constant 0 : index
    %c0_9 = arith.constant 0 : index
    %13 = vector.load %arg4[%c1, %c0_8, %c0_9] : memref<2x16x128xbf16, #tpu.memory_space<vmem>>, vector<1x16x128xbf16>
    %14 = vector.shape_cast %13 : vector<1x16x128xbf16> to vector<16x128xbf16>
    %15 = vector.shape_cast %12 : vector<16x128xbf16> to vector<1x16x128xbf16>
    tpu.vector_store %arg4[%c1, %c0_8, %c0_9], %15 {strides = array<i32>} : memref<2x16x128xbf16, #tpu.memory_space<vmem>>, vector<1x16x128xbf16>,
    return
  }
  func.func @transform_0(%arg0: i32) -> (i32, i32) {
    %c0_i32 = arith.constant 0 : i32
    %c0_i32_0 = arith.constant 0 : i32
    return %arg0, %c0_i32 : i32, i32
  }
  func.func @transform_1(%arg0: i32) -> (i32, i32) {
    %c0_i32 = arith.constant 0 : i32
    %c0_i32_0 = arith.constant 0 : i32
    %c0_i32_1 = arith.constant 0 : i32
    return %c0_i32, %c0_i32_0 : i32, i32
  }
  func.func @transform_2(%arg0: i32) -> (i32, i32) {
    %c0_i32 = arith.constant 0 : i32
    %c0_i32_0 = arith.constant 0 : i32
    %c0_i32_1 = arith.constant 0 : i32
    return %c0_i32, %c0_i32_0 : i32, i32
  }
  func.func @transform_3(%arg0: i32) -> (i32, i32, i32) {
    %c0_i32 = arith.constant 0 : i32
    %c0_i32_0 = arith.constant 0 : i32
    %c0_i32_1 = arith.constant 0 : i32
    return %c0_i32, %arg0, %c0_i32_0 : i32, i32, i32
  }
}

module attributes {stable_mosaic.version = 11 : i64} {
  func.func @bilstm_recurrent_kernel(%arg0: i32, %arg1: memref<1x8x2x128xbf16, #tpu.memory_space<vmem>>, %arg2: memref<1x8x2x128xbf16, #tpu.memory_space<vmem>>, %arg3: memref<2x32x128xbf16, #tpu.memory_space<vmem>>, %arg4: memref<8x2x32xf32, #tpu.memory_space<vmem>>, %arg5: memref<8x2x32xf32, #tpu.memory_space<vmem>>, %arg6: memref<2x2x32xf32, #tpu.memory_space<vmem>>, %arg7: memref<2x2x32xf32, #tpu.memory_space<vmem>>, %arg8: memref<2x2x32xf32, #tpu.memory_space<vmem>>, %arg9: memref<2x2x32xf32, #tpu.memory_space<vmem>>) attributes {dimension_semantics = [#tpu.dimension_semantics<arbitrary>], iteration_bounds = array<i64: 1>, scalar_prefetch = 0 : i64, scratch_operands = 2 : i64, tpu.core_type = #tpu.core_type<tc>, window_params = [{transform_indices = @transform_0, window_bounds = array<i64: 1, 8, 2, 128>}, {transform_indices = @transform_1, window_bounds = array<i64: 1, 8, 2, 128>}, {pipeline_mode = #tpu.pipeline_mode<synchronous>, transform_indices = @transform_2, window_bounds = array<i64: 2, 32, 128>}, {transform_indices = @transform_3, window_bounds = array<i64: 8, 2, 32>}, {transform_indices = @transform_4, window_bounds = array<i64: 8, 2, 32>}, {pipeline_mode = #tpu.pipeline_mode<synchronous>, transform_indices = @transform_5, window_bounds = array<i64: 2, 2, 32>}, {pipeline_mode = #tpu.pipeline_mode<synchronous>, transform_indices = @transform_6, window_bounds = array<i64: 2, 2, 32>}]} {
    %c0_i32 = arith.constant 0 : i32
    %0 = arith.cmpi eq, %arg0, %c0_i32 : i32
    %1 = arith.extui %0 : i1 to i32
    %c0_i32_0 = arith.constant 0 : i32
    %2 = arith.cmpi ne, %1, %c0_i32_0 : i32
    scf.if %2 {
      %cst_231 = arith.constant 0.000000e+00 : f32
      %662 = vector.broadcast %cst_231 : f32 to vector<2x2x32xf32>
      %c0_232 = arith.constant 0 : index
      %c0_233 = arith.constant 0 : index
      %c0_234 = arith.constant 0 : index
      %663 = vector.load %arg8[%c0_232, %c0_233, %c0_234] : memref<2x2x32xf32, #tpu.memory_space<vmem>>, vector<2x2x32xf32>
      tpu.vector_store %arg8[%c0_232, %c0_233, %c0_234], %662 {strides = array<i32>} : memref<2x2x32xf32, #tpu.memory_space<vmem>>, vector<2x2x32xf32>,
      %cst_235 = arith.constant 0.000000e+00 : f32
      %664 = vector.broadcast %cst_235 : f32 to vector<2x2x32xf32>
      %c0_236 = arith.constant 0 : index
      %c0_237 = arith.constant 0 : index
      %c0_238 = arith.constant 0 : index
      %665 = vector.load %arg9[%c0_236, %c0_237, %c0_238] : memref<2x2x32xf32, #tpu.memory_space<vmem>>, vector<2x2x32xf32>
      tpu.vector_store %arg9[%c0_236, %c0_237, %c0_238], %664 {strides = array<i32>} : memref<2x2x32xf32, #tpu.memory_space<vmem>>, vector<2x2x32xf32>,
    } else {
    }
    %c0 = arith.constant 0 : index
    %c0_1 = arith.constant 0 : index
    %c0_2 = arith.constant 0 : index
    %3 = vector.load %arg3[%c0, %c0_1, %c0_2] : memref<2x32x128xbf16, #tpu.memory_space<vmem>>, vector<1x32x128xbf16>
    %4 = vector.shape_cast %3 : vector<1x32x128xbf16> to vector<32x128xbf16>
    %c1 = arith.constant 1 : index
    %c0_3 = arith.constant 0 : index
    %c0_4 = arith.constant 0 : index
    %5 = vector.load %arg3[%c1, %c0_3, %c0_4] : memref<2x32x128xbf16, #tpu.memory_space<vmem>>, vector<1x32x128xbf16>
    %6 = vector.shape_cast %5 : vector<1x32x128xbf16> to vector<32x128xbf16>
    %c0_5 = arith.constant 0 : index
    %c0_6 = arith.constant 0 : index
    %c0_7 = arith.constant 0 : index
    %7 = vector.load %arg8[%c0_5, %c0_6, %c0_7] : memref<2x2x32xf32, #tpu.memory_space<vmem>>, vector<1x2x32xf32>
    %8 = vector.shape_cast %7 : vector<1x2x32xf32> to vector<2x32xf32>
    %c0_8 = arith.constant 0 : index
    %c0_9 = arith.constant 0 : index
    %c0_10 = arith.constant 0 : index
    %9 = vector.load %arg9[%c0_8, %c0_9, %c0_10] : memref<2x2x32xf32, #tpu.memory_space<vmem>>, vector<1x2x32xf32>
    %10 = vector.shape_cast %9 : vector<1x2x32xf32> to vector<2x32xf32>
    %c1_11 = arith.constant 1 : index
    %c0_12 = arith.constant 0 : index
    %c0_13 = arith.constant 0 : index
    %11 = vector.load %arg8[%c1_11, %c0_12, %c0_13] : memref<2x2x32xf32, #tpu.memory_space<vmem>>, vector<1x2x32xf32>
    %12 = vector.shape_cast %11 : vector<1x2x32xf32> to vector<2x32xf32>
    %c1_14 = arith.constant 1 : index
    %c0_15 = arith.constant 0 : index
    %c0_16 = arith.constant 0 : index
    %13 = vector.load %arg9[%c1_14, %c0_15, %c0_16] : memref<2x2x32xf32, #tpu.memory_space<vmem>>, vector<1x2x32xf32>
    %14 = vector.shape_cast %13 : vector<1x2x32xf32> to vector<2x32xf32>
    %c0_i32_17 = arith.constant 0 : i32
    %c7_i32 = arith.constant 7 : i32
    %15 = arith.subi %c7_i32, %c0_i32_17 : i32
    %c0_18 = arith.constant 0 : index
    %16 = arith.index_cast %c0_i32_17 : i32 to index
    %c0_19 = arith.constant 0 : index
    %c0_20 = arith.constant 0 : index
    %17 = vector.load %arg1[%c0_18, %16, %c0_19, %c0_20] : memref<1x8x2x128xbf16, #tpu.memory_space<vmem>>, vector<1x1x2x128xbf16>
    %18 = vector.shape_cast %17 : vector<1x1x2x128xbf16> to vector<2x128xbf16>
    %19 = arith.extf %18 : vector<2x128xbf16> to vector<2x128xf32>
    %20 = arith.truncf %8 : vector<2x32xf32> to vector<2x32xbf16>
    %cst = arith.constant dense<0.000000e+00> : vector<2x128xf32>
    %21 = tpu.matmul %20, %4, %cst {dimension_numbers = #tpu.dot_dimension_numbers<[1], [0], [0], [1], [0, 0, 1, 1], [], []>} : vector<2x32xbf16>, vector<32x128xbf16>, vector<2x128xf32> -> vector<2x128xf32>
    %22 = arith.addf %19, %21 : vector<2x128xf32>
    %c0_21 = arith.constant 0 : index
    %23 = arith.index_cast %15 : i32 to index
    %c0_22 = arith.constant 0 : index
    %c0_23 = arith.constant 0 : index
    %24 = vector.load %arg2[%c0_21, %23, %c0_22, %c0_23] : memref<1x8x2x128xbf16, #tpu.memory_space<vmem>>, vector<1x1x2x128xbf16>
    %25 = vector.shape_cast %24 : vector<1x1x2x128xbf16> to vector<2x128xbf16>
    %26 = arith.extf %25 : vector<2x128xbf16> to vector<2x128xf32>
    %27 = arith.truncf %12 : vector<2x32xf32> to vector<2x32xbf16>
    %cst_24 = arith.constant dense<0.000000e+00> : vector<2x128xf32>
    %28 = tpu.matmul %27, %6, %cst_24 {dimension_numbers = #tpu.dot_dimension_numbers<[1], [0], [0], [1], [0, 0, 1, 1], [], []>} : vector<2x32xbf16>, vector<32x128xbf16>, vector<2x128xf32> -> vector<2x128xf32>
    %29 = arith.addf %26, %28 : vector<2x128xf32>
    %30 = vector.extract_strided_slice %22 {offsets = [0, 0], sizes = [2, 32], strides = [1, 1]} : vector<2x128xf32> to vector<2x32xf32>
    %cst_25 = arith.constant 0.000000e+00 : f32
    %31 = vector.broadcast %cst_25 : f32 to vector<2x32xf32>
    %32 = arith.subf %31, %30 : vector<2x32xf32>
    %33 = math.exp %32 : vector<2x32xf32>
    %cst_26 = arith.constant 1.000000e+00 : f32
    %34 = vector.broadcast %cst_26 : f32 to vector<2x32xf32>
    %35 = arith.addf %34, %33 : vector<2x32xf32>
    %36 = tpu.reciprocal %35 : vector<2x32xf32> -> vector<2x32xf32>
    %37 = vector.extract_strided_slice %22 {offsets = [0, 32], sizes = [2, 32], strides = [1, 1]} : vector<2x128xf32> to vector<2x32xf32>
    %cst_27 = arith.constant 0.000000e+00 : f32
    %38 = vector.broadcast %cst_27 : f32 to vector<2x32xf32>
    %39 = arith.subf %38, %37 : vector<2x32xf32>
    %40 = math.exp %39 : vector<2x32xf32>
    %cst_28 = arith.constant 1.000000e+00 : f32
    %41 = vector.broadcast %cst_28 : f32 to vector<2x32xf32>
    %42 = arith.addf %41, %40 : vector<2x32xf32>
    %43 = tpu.reciprocal %42 : vector<2x32xf32> -> vector<2x32xf32>
    %44 = vector.extract_strided_slice %22 {offsets = [0, 64], sizes = [2, 32], strides = [1, 1]} : vector<2x128xf32> to vector<2x32xf32>
    %45 = math.tanh %44 : vector<2x32xf32>
    %46 = vector.extract_strided_slice %22 {offsets = [0, 96], sizes = [2, 32], strides = [1, 1]} : vector<2x128xf32> to vector<2x32xf32>
    %cst_29 = arith.constant 0.000000e+00 : f32
    %47 = vector.broadcast %cst_29 : f32 to vector<2x32xf32>
    %48 = arith.subf %47, %46 : vector<2x32xf32>
    %49 = math.exp %48 : vector<2x32xf32>
    %cst_30 = arith.constant 1.000000e+00 : f32
    %50 = vector.broadcast %cst_30 : f32 to vector<2x32xf32>
    %51 = arith.addf %50, %49 : vector<2x32xf32>
    %52 = tpu.reciprocal %51 : vector<2x32xf32> -> vector<2x32xf32>
    %53 = arith.mulf %43, %10 : vector<2x32xf32>
    %54 = arith.mulf %36, %45 : vector<2x32xf32>
    %55 = arith.addf %53, %54 : vector<2x32xf32>
    %56 = math.tanh %55 : vector<2x32xf32>
    %57 = arith.mulf %52, %56 : vector<2x32xf32>
    %58 = vector.extract_strided_slice %29 {offsets = [0, 0], sizes = [2, 32], strides = [1, 1]} : vector<2x128xf32> to vector<2x32xf32>
    %cst_31 = arith.constant 0.000000e+00 : f32
    %59 = vector.broadcast %cst_31 : f32 to vector<2x32xf32>
    %60 = arith.subf %59, %58 : vector<2x32xf32>
    %61 = math.exp %60 : vector<2x32xf32>
    %cst_32 = arith.constant 1.000000e+00 : f32
    %62 = vector.broadcast %cst_32 : f32 to vector<2x32xf32>
    %63 = arith.addf %62, %61 : vector<2x32xf32>
    %64 = tpu.reciprocal %63 : vector<2x32xf32> -> vector<2x32xf32>
    %65 = vector.extract_strided_slice %29 {offsets = [0, 32], sizes = [2, 32], strides = [1, 1]} : vector<2x128xf32> to vector<2x32xf32>
    %cst_33 = arith.constant 0.000000e+00 : f32
    %66 = vector.broadcast %cst_33 : f32 to vector<2x32xf32>
    %67 = arith.subf %66, %65 : vector<2x32xf32>
    %68 = math.exp %67 : vector<2x32xf32>
    %cst_34 = arith.constant 1.000000e+00 : f32
    %69 = vector.broadcast %cst_34 : f32 to vector<2x32xf32>
    %70 = arith.addf %69, %68 : vector<2x32xf32>
    %71 = tpu.reciprocal %70 : vector<2x32xf32> -> vector<2x32xf32>
    %72 = vector.extract_strided_slice %29 {offsets = [0, 64], sizes = [2, 32], strides = [1, 1]} : vector<2x128xf32> to vector<2x32xf32>
    %73 = math.tanh %72 : vector<2x32xf32>
    %74 = vector.extract_strided_slice %29 {offsets = [0, 96], sizes = [2, 32], strides = [1, 1]} : vector<2x128xf32> to vector<2x32xf32>
    %cst_35 = arith.constant 0.000000e+00 : f32
    %75 = vector.broadcast %cst_35 : f32 to vector<2x32xf32>
    %76 = arith.subf %75, %74 : vector<2x32xf32>
    %77 = math.exp %76 : vector<2x32xf32>
    %cst_36 = arith.constant 1.000000e+00 : f32
    %78 = vector.broadcast %cst_36 : f32 to vector<2x32xf32>
    %79 = arith.addf %78, %77 : vector<2x32xf32>
    %80 = tpu.reciprocal %79 : vector<2x32xf32> -> vector<2x32xf32>
    %81 = arith.mulf %71, %14 : vector<2x32xf32>
    %82 = arith.mulf %64, %73 : vector<2x32xf32>
    %83 = arith.addf %81, %82 : vector<2x32xf32>
    %84 = math.tanh %83 : vector<2x32xf32>
    %85 = arith.mulf %80, %84 : vector<2x32xf32>
    %86 = arith.index_cast %c0_i32_17 : i32 to index
    %c0_37 = arith.constant 0 : index
    %c0_38 = arith.constant 0 : index
    %87 = vector.load %arg4[%86, %c0_37, %c0_38] : memref<8x2x32xf32, #tpu.memory_space<vmem>>, vector<1x2x32xf32>
    %88 = vector.shape_cast %87 : vector<1x2x32xf32> to vector<2x32xf32>
    %89 = vector.shape_cast %57 : vector<2x32xf32> to vector<1x2x32xf32>
    tpu.vector_store %arg4[%86, %c0_37, %c0_38], %89 {strides = array<i32>} : memref<8x2x32xf32, #tpu.memory_space<vmem>>, vector<1x2x32xf32>,
    %90 = arith.index_cast %15 : i32 to index
    %c0_39 = arith.constant 0 : index
    %c0_40 = arith.constant 0 : index
    %91 = vector.load %arg5[%90, %c0_39, %c0_40] : memref<8x2x32xf32, #tpu.memory_space<vmem>>, vector<1x2x32xf32>
    %92 = vector.shape_cast %91 : vector<1x2x32xf32> to vector<2x32xf32>
    %93 = vector.shape_cast %85 : vector<2x32xf32> to vector<1x2x32xf32>
    tpu.vector_store %arg5[%90, %c0_39, %c0_40], %93 {strides = array<i32>} : memref<8x2x32xf32, #tpu.memory_space<vmem>>, vector<1x2x32xf32>,
    %c1_i32 = arith.constant 1 : i32
    %c7_i32_41 = arith.constant 7 : i32
    %94 = arith.subi %c7_i32_41, %c1_i32 : i32
    %c0_42 = arith.constant 0 : index
    %95 = arith.index_cast %c1_i32 : i32 to index
    %c0_43 = arith.constant 0 : index
    %c0_44 = arith.constant 0 : index
    %96 = vector.load %arg1[%c0_42, %95, %c0_43, %c0_44] : memref<1x8x2x128xbf16, #tpu.memory_space<vmem>>, vector<1x1x2x128xbf16>
    %97 = vector.shape_cast %96 : vector<1x1x2x128xbf16> to vector<2x128xbf16>
    %98 = arith.extf %97 : vector<2x128xbf16> to vector<2x128xf32>
    %99 = arith.truncf %57 : vector<2x32xf32> to vector<2x32xbf16>
    %cst_45 = arith.constant dense<0.000000e+00> : vector<2x128xf32>
    %100 = tpu.matmul %99, %4, %cst_45 {dimension_numbers = #tpu.dot_dimension_numbers<[1], [0], [0], [1], [0, 0, 1, 1], [], []>} : vector<2x32xbf16>, vector<32x128xbf16>, vector<2x128xf32> -> vector<2x128xf32>
    %101 = arith.addf %98, %100 : vector<2x128xf32>
    %c0_46 = arith.constant 0 : index
    %102 = arith.index_cast %94 : i32 to index
    %c0_47 = arith.constant 0 : index
    %c0_48 = arith.constant 0 : index
    %103 = vector.load %arg2[%c0_46, %102, %c0_47, %c0_48] : memref<1x8x2x128xbf16, #tpu.memory_space<vmem>>, vector<1x1x2x128xbf16>
    %104 = vector.shape_cast %103 : vector<1x1x2x128xbf16> to vector<2x128xbf16>
    %105 = arith.extf %104 : vector<2x128xbf16> to vector<2x128xf32>
    %106 = arith.truncf %85 : vector<2x32xf32> to vector<2x32xbf16>
    %cst_49 = arith.constant dense<0.000000e+00> : vector<2x128xf32>
    %107 = tpu.matmul %106, %6, %cst_49 {dimension_numbers = #tpu.dot_dimension_numbers<[1], [0], [0], [1], [0, 0, 1, 1], [], []>} : vector<2x32xbf16>, vector<32x128xbf16>, vector<2x128xf32> -> vector<2x128xf32>
    %108 = arith.addf %105, %107 : vector<2x128xf32>
    %109 = vector.extract_strided_slice %101 {offsets = [0, 0], sizes = [2, 32], strides = [1, 1]} : vector<2x128xf32> to vector<2x32xf32>
    %cst_50 = arith.constant 0.000000e+00 : f32
    %110 = vector.broadcast %cst_50 : f32 to vector<2x32xf32>
    %111 = arith.subf %110, %109 : vector<2x32xf32>
    %112 = math.exp %111 : vector<2x32xf32>
    %cst_51 = arith.constant 1.000000e+00 : f32
    %113 = vector.broadcast %cst_51 : f32 to vector<2x32xf32>
    %114 = arith.addf %113, %112 : vector<2x32xf32>
    %115 = tpu.reciprocal %114 : vector<2x32xf32> -> vector<2x32xf32>
    %116 = vector.extract_strided_slice %101 {offsets = [0, 32], sizes = [2, 32], strides = [1, 1]} : vector<2x128xf32> to vector<2x32xf32>
    %cst_52 = arith.constant 0.000000e+00 : f32
    %117 = vector.broadcast %cst_52 : f32 to vector<2x32xf32>
    %118 = arith.subf %117, %116 : vector<2x32xf32>
    %119 = math.exp %118 : vector<2x32xf32>
    %cst_53 = arith.constant 1.000000e+00 : f32
    %120 = vector.broadcast %cst_53 : f32 to vector<2x32xf32>
    %121 = arith.addf %120, %119 : vector<2x32xf32>
    %122 = tpu.reciprocal %121 : vector<2x32xf32> -> vector<2x32xf32>
    %123 = vector.extract_strided_slice %101 {offsets = [0, 64], sizes = [2, 32], strides = [1, 1]} : vector<2x128xf32> to vector<2x32xf32>
    %124 = math.tanh %123 : vector<2x32xf32>
    %125 = vector.extract_strided_slice %101 {offsets = [0, 96], sizes = [2, 32], strides = [1, 1]} : vector<2x128xf32> to vector<2x32xf32>
    %cst_54 = arith.constant 0.000000e+00 : f32
    %126 = vector.broadcast %cst_54 : f32 to vector<2x32xf32>
    %127 = arith.subf %126, %125 : vector<2x32xf32>
    %128 = math.exp %127 : vector<2x32xf32>
    %cst_55 = arith.constant 1.000000e+00 : f32
    %129 = vector.broadcast %cst_55 : f32 to vector<2x32xf32>
    %130 = arith.addf %129, %128 : vector<2x32xf32>
    %131 = tpu.reciprocal %130 : vector<2x32xf32> -> vector<2x32xf32>
    %132 = arith.mulf %122, %55 : vector<2x32xf32>
    %133 = arith.mulf %115, %124 : vector<2x32xf32>
    %134 = arith.addf %132, %133 : vector<2x32xf32>
    %135 = math.tanh %134 : vector<2x32xf32>
    %136 = arith.mulf %131, %135 : vector<2x32xf32>
    %137 = vector.extract_strided_slice %108 {offsets = [0, 0], sizes = [2, 32], strides = [1, 1]} : vector<2x128xf32> to vector<2x32xf32>
    %cst_56 = arith.constant 0.000000e+00 : f32
    %138 = vector.broadcast %cst_56 : f32 to vector<2x32xf32>
    %139 = arith.subf %138, %137 : vector<2x32xf32>
    %140 = math.exp %139 : vector<2x32xf32>
    %cst_57 = arith.constant 1.000000e+00 : f32
    %141 = vector.broadcast %cst_57 : f32 to vector<2x32xf32>
    %142 = arith.addf %141, %140 : vector<2x32xf32>
    %143 = tpu.reciprocal %142 : vector<2x32xf32> -> vector<2x32xf32>
    %144 = vector.extract_strided_slice %108 {offsets = [0, 32], sizes = [2, 32], strides = [1, 1]} : vector<2x128xf32> to vector<2x32xf32>
    %cst_58 = arith.constant 0.000000e+00 : f32
    %145 = vector.broadcast %cst_58 : f32 to vector<2x32xf32>
    %146 = arith.subf %145, %144 : vector<2x32xf32>
    %147 = math.exp %146 : vector<2x32xf32>
    %cst_59 = arith.constant 1.000000e+00 : f32
    %148 = vector.broadcast %cst_59 : f32 to vector<2x32xf32>
    %149 = arith.addf %148, %147 : vector<2x32xf32>
    %150 = tpu.reciprocal %149 : vector<2x32xf32> -> vector<2x32xf32>
    %151 = vector.extract_strided_slice %108 {offsets = [0, 64], sizes = [2, 32], strides = [1, 1]} : vector<2x128xf32> to vector<2x32xf32>
    %152 = math.tanh %151 : vector<2x32xf32>
    %153 = vector.extract_strided_slice %108 {offsets = [0, 96], sizes = [2, 32], strides = [1, 1]} : vector<2x128xf32> to vector<2x32xf32>
    %cst_60 = arith.constant 0.000000e+00 : f32
    %154 = vector.broadcast %cst_60 : f32 to vector<2x32xf32>
    %155 = arith.subf %154, %153 : vector<2x32xf32>
    %156 = math.exp %155 : vector<2x32xf32>
    %cst_61 = arith.constant 1.000000e+00 : f32
    %157 = vector.broadcast %cst_61 : f32 to vector<2x32xf32>
    %158 = arith.addf %157, %156 : vector<2x32xf32>
    %159 = tpu.reciprocal %158 : vector<2x32xf32> -> vector<2x32xf32>
    %160 = arith.mulf %150, %83 : vector<2x32xf32>
    %161 = arith.mulf %143, %152 : vector<2x32xf32>
    %162 = arith.addf %160, %161 : vector<2x32xf32>
    %163 = math.tanh %162 : vector<2x32xf32>
    %164 = arith.mulf %159, %163 : vector<2x32xf32>
    %165 = arith.index_cast %c1_i32 : i32 to index
    %c0_62 = arith.constant 0 : index
    %c0_63 = arith.constant 0 : index
    %166 = vector.load %arg4[%165, %c0_62, %c0_63] : memref<8x2x32xf32, #tpu.memory_space<vmem>>, vector<1x2x32xf32>
    %167 = vector.shape_cast %166 : vector<1x2x32xf32> to vector<2x32xf32>
    %168 = vector.shape_cast %136 : vector<2x32xf32> to vector<1x2x32xf32>
    tpu.vector_store %arg4[%165, %c0_62, %c0_63], %168 {strides = array<i32>} : memref<8x2x32xf32, #tpu.memory_space<vmem>>, vector<1x2x32xf32>,
    %169 = arith.index_cast %94 : i32 to index
    %c0_64 = arith.constant 0 : index
    %c0_65 = arith.constant 0 : index
    %170 = vector.load %arg5[%169, %c0_64, %c0_65] : memref<8x2x32xf32, #tpu.memory_space<vmem>>, vector<1x2x32xf32>
    %171 = vector.shape_cast %170 : vector<1x2x32xf32> to vector<2x32xf32>
    %172 = vector.shape_cast %164 : vector<2x32xf32> to vector<1x2x32xf32>
    tpu.vector_store %arg5[%169, %c0_64, %c0_65], %172 {strides = array<i32>} : memref<8x2x32xf32, #tpu.memory_space<vmem>>, vector<1x2x32xf32>,
    %c2_i32 = arith.constant 2 : i32
    %c7_i32_66 = arith.constant 7 : i32
    %173 = arith.subi %c7_i32_66, %c2_i32 : i32
    %c0_67 = arith.constant 0 : index
    %174 = arith.index_cast %c2_i32 : i32 to index
    %c0_68 = arith.constant 0 : index
    %c0_69 = arith.constant 0 : index
    %175 = vector.load %arg1[%c0_67, %174, %c0_68, %c0_69] : memref<1x8x2x128xbf16, #tpu.memory_space<vmem>>, vector<1x1x2x128xbf16>
    %176 = vector.shape_cast %175 : vector<1x1x2x128xbf16> to vector<2x128xbf16>
    %177 = arith.extf %176 : vector<2x128xbf16> to vector<2x128xf32>
    %178 = arith.truncf %136 : vector<2x32xf32> to vector<2x32xbf16>
    %cst_70 = arith.constant dense<0.000000e+00> : vector<2x128xf32>
    %179 = tpu.matmul %178, %4, %cst_70 {dimension_numbers = #tpu.dot_dimension_numbers<[1], [0], [0], [1], [0, 0, 1, 1], [], []>} : vector<2x32xbf16>, vector<32x128xbf16>, vector<2x128xf32> -> vector<2x128xf32>
    %180 = arith.addf %177, %179 : vector<2x128xf32>
    %c0_71 = arith.constant 0 : index
    %181 = arith.index_cast %173 : i32 to index
    %c0_72 = arith.constant 0 : index
    %c0_73 = arith.constant 0 : index
    %182 = vector.load %arg2[%c0_71, %181, %c0_72, %c0_73] : memref<1x8x2x128xbf16, #tpu.memory_space<vmem>>, vector<1x1x2x128xbf16>
    %183 = vector.shape_cast %182 : vector<1x1x2x128xbf16> to vector<2x128xbf16>
    %184 = arith.extf %183 : vector<2x128xbf16> to vector<2x128xf32>
    %185 = arith.truncf %164 : vector<2x32xf32> to vector<2x32xbf16>
    %cst_74 = arith.constant dense<0.000000e+00> : vector<2x128xf32>
    %186 = tpu.matmul %185, %6, %cst_74 {dimension_numbers = #tpu.dot_dimension_numbers<[1], [0], [0], [1], [0, 0, 1, 1], [], []>} : vector<2x32xbf16>, vector<32x128xbf16>, vector<2x128xf32> -> vector<2x128xf32>
    %187 = arith.addf %184, %186 : vector<2x128xf32>
    %188 = vector.extract_strided_slice %180 {offsets = [0, 0], sizes = [2, 32], strides = [1, 1]} : vector<2x128xf32> to vector<2x32xf32>
    %cst_75 = arith.constant 0.000000e+00 : f32
    %189 = vector.broadcast %cst_75 : f32 to vector<2x32xf32>
    %190 = arith.subf %189, %188 : vector<2x32xf32>
    %191 = math.exp %190 : vector<2x32xf32>
    %cst_76 = arith.constant 1.000000e+00 : f32
    %192 = vector.broadcast %cst_76 : f32 to vector<2x32xf32>
    %193 = arith.addf %192, %191 : vector<2x32xf32>
    %194 = tpu.reciprocal %193 : vector<2x32xf32> -> vector<2x32xf32>
    %195 = vector.extract_strided_slice %180 {offsets = [0, 32], sizes = [2, 32], strides = [1, 1]} : vector<2x128xf32> to vector<2x32xf32>
    %cst_77 = arith.constant 0.000000e+00 : f32
    %196 = vector.broadcast %cst_77 : f32 to vector<2x32xf32>
    %197 = arith.subf %196, %195 : vector<2x32xf32>
    %198 = math.exp %197 : vector<2x32xf32>
    %cst_78 = arith.constant 1.000000e+00 : f32
    %199 = vector.broadcast %cst_78 : f32 to vector<2x32xf32>
    %200 = arith.addf %199, %198 : vector<2x32xf32>
    %201 = tpu.reciprocal %200 : vector<2x32xf32> -> vector<2x32xf32>
    %202 = vector.extract_strided_slice %180 {offsets = [0, 64], sizes = [2, 32], strides = [1, 1]} : vector<2x128xf32> to vector<2x32xf32>
    %203 = math.tanh %202 : vector<2x32xf32>
    %204 = vector.extract_strided_slice %180 {offsets = [0, 96], sizes = [2, 32], strides = [1, 1]} : vector<2x128xf32> to vector<2x32xf32>
    %cst_79 = arith.constant 0.000000e+00 : f32
    %205 = vector.broadcast %cst_79 : f32 to vector<2x32xf32>
    %206 = arith.subf %205, %204 : vector<2x32xf32>
    %207 = math.exp %206 : vector<2x32xf32>
    %cst_80 = arith.constant 1.000000e+00 : f32
    %208 = vector.broadcast %cst_80 : f32 to vector<2x32xf32>
    %209 = arith.addf %208, %207 : vector<2x32xf32>
    %210 = tpu.reciprocal %209 : vector<2x32xf32> -> vector<2x32xf32>
    %211 = arith.mulf %201, %134 : vector<2x32xf32>
    %212 = arith.mulf %194, %203 : vector<2x32xf32>
    %213 = arith.addf %211, %212 : vector<2x32xf32>
    %214 = math.tanh %213 : vector<2x32xf32>
    %215 = arith.mulf %210, %214 : vector<2x32xf32>
    %216 = vector.extract_strided_slice %187 {offsets = [0, 0], sizes = [2, 32], strides = [1, 1]} : vector<2x128xf32> to vector<2x32xf32>
    %cst_81 = arith.constant 0.000000e+00 : f32
    %217 = vector.broadcast %cst_81 : f32 to vector<2x32xf32>
    %218 = arith.subf %217, %216 : vector<2x32xf32>
    %219 = math.exp %218 : vector<2x32xf32>
    %cst_82 = arith.constant 1.000000e+00 : f32
    %220 = vector.broadcast %cst_82 : f32 to vector<2x32xf32>
    %221 = arith.addf %220, %219 : vector<2x32xf32>
    %222 = tpu.reciprocal %221 : vector<2x32xf32> -> vector<2x32xf32>
    %223 = vector.extract_strided_slice %187 {offsets = [0, 32], sizes = [2, 32], strides = [1, 1]} : vector<2x128xf32> to vector<2x32xf32>
    %cst_83 = arith.constant 0.000000e+00 : f32
    %224 = vector.broadcast %cst_83 : f32 to vector<2x32xf32>
    %225 = arith.subf %224, %223 : vector<2x32xf32>
    %226 = math.exp %225 : vector<2x32xf32>
    %cst_84 = arith.constant 1.000000e+00 : f32
    %227 = vector.broadcast %cst_84 : f32 to vector<2x32xf32>
    %228 = arith.addf %227, %226 : vector<2x32xf32>
    %229 = tpu.reciprocal %228 : vector<2x32xf32> -> vector<2x32xf32>
    %230 = vector.extract_strided_slice %187 {offsets = [0, 64], sizes = [2, 32], strides = [1, 1]} : vector<2x128xf32> to vector<2x32xf32>
    %231 = math.tanh %230 : vector<2x32xf32>
    %232 = vector.extract_strided_slice %187 {offsets = [0, 96], sizes = [2, 32], strides = [1, 1]} : vector<2x128xf32> to vector<2x32xf32>
    %cst_85 = arith.constant 0.000000e+00 : f32
    %233 = vector.broadcast %cst_85 : f32 to vector<2x32xf32>
    %234 = arith.subf %233, %232 : vector<2x32xf32>
    %235 = math.exp %234 : vector<2x32xf32>
    %cst_86 = arith.constant 1.000000e+00 : f32
    %236 = vector.broadcast %cst_86 : f32 to vector<2x32xf32>
    %237 = arith.addf %236, %235 : vector<2x32xf32>
    %238 = tpu.reciprocal %237 : vector<2x32xf32> -> vector<2x32xf32>
    %239 = arith.mulf %229, %162 : vector<2x32xf32>
    %240 = arith.mulf %222, %231 : vector<2x32xf32>
    %241 = arith.addf %239, %240 : vector<2x32xf32>
    %242 = math.tanh %241 : vector<2x32xf32>
    %243 = arith.mulf %238, %242 : vector<2x32xf32>
    %244 = arith.index_cast %c2_i32 : i32 to index
    %c0_87 = arith.constant 0 : index
    %c0_88 = arith.constant 0 : index
    %245 = vector.load %arg4[%244, %c0_87, %c0_88] : memref<8x2x32xf32, #tpu.memory_space<vmem>>, vector<1x2x32xf32>
    %246 = vector.shape_cast %245 : vector<1x2x32xf32> to vector<2x32xf32>
    %247 = vector.shape_cast %215 : vector<2x32xf32> to vector<1x2x32xf32>
    tpu.vector_store %arg4[%244, %c0_87, %c0_88], %247 {strides = array<i32>} : memref<8x2x32xf32, #tpu.memory_space<vmem>>, vector<1x2x32xf32>,
    %248 = arith.index_cast %173 : i32 to index
    %c0_89 = arith.constant 0 : index
    %c0_90 = arith.constant 0 : index
    %249 = vector.load %arg5[%248, %c0_89, %c0_90] : memref<8x2x32xf32, #tpu.memory_space<vmem>>, vector<1x2x32xf32>
    %250 = vector.shape_cast %249 : vector<1x2x32xf32> to vector<2x32xf32>
    %251 = vector.shape_cast %243 : vector<2x32xf32> to vector<1x2x32xf32>
    tpu.vector_store %arg5[%248, %c0_89, %c0_90], %251 {strides = array<i32>} : memref<8x2x32xf32, #tpu.memory_space<vmem>>, vector<1x2x32xf32>,
    %c3_i32 = arith.constant 3 : i32
    %c7_i32_91 = arith.constant 7 : i32
    %252 = arith.subi %c7_i32_91, %c3_i32 : i32
    %c0_92 = arith.constant 0 : index
    %253 = arith.index_cast %c3_i32 : i32 to index
    %c0_93 = arith.constant 0 : index
    %c0_94 = arith.constant 0 : index
    %254 = vector.load %arg1[%c0_92, %253, %c0_93, %c0_94] : memref<1x8x2x128xbf16, #tpu.memory_space<vmem>>, vector<1x1x2x128xbf16>
    %255 = vector.shape_cast %254 : vector<1x1x2x128xbf16> to vector<2x128xbf16>
    %256 = arith.extf %255 : vector<2x128xbf16> to vector<2x128xf32>
    %257 = arith.truncf %215 : vector<2x32xf32> to vector<2x32xbf16>
    %cst_95 = arith.constant dense<0.000000e+00> : vector<2x128xf32>
    %258 = tpu.matmul %257, %4, %cst_95 {dimension_numbers = #tpu.dot_dimension_numbers<[1], [0], [0], [1], [0, 0, 1, 1], [], []>} : vector<2x32xbf16>, vector<32x128xbf16>, vector<2x128xf32> -> vector<2x128xf32>
    %259 = arith.addf %256, %258 : vector<2x128xf32>
    %c0_96 = arith.constant 0 : index
    %260 = arith.index_cast %252 : i32 to index
    %c0_97 = arith.constant 0 : index
    %c0_98 = arith.constant 0 : index
    %261 = vector.load %arg2[%c0_96, %260, %c0_97, %c0_98] : memref<1x8x2x128xbf16, #tpu.memory_space<vmem>>, vector<1x1x2x128xbf16>
    %262 = vector.shape_cast %261 : vector<1x1x2x128xbf16> to vector<2x128xbf16>
    %263 = arith.extf %262 : vector<2x128xbf16> to vector<2x128xf32>
    %264 = arith.truncf %243 : vector<2x32xf32> to vector<2x32xbf16>
    %cst_99 = arith.constant dense<0.000000e+00> : vector<2x128xf32>
    %265 = tpu.matmul %264, %6, %cst_99 {dimension_numbers = #tpu.dot_dimension_numbers<[1], [0], [0], [1], [0, 0, 1, 1], [], []>} : vector<2x32xbf16>, vector<32x128xbf16>, vector<2x128xf32> -> vector<2x128xf32>
    %266 = arith.addf %263, %265 : vector<2x128xf32>
    %267 = vector.extract_strided_slice %259 {offsets = [0, 0], sizes = [2, 32], strides = [1, 1]} : vector<2x128xf32> to vector<2x32xf32>
    %cst_100 = arith.constant 0.000000e+00 : f32
    %268 = vector.broadcast %cst_100 : f32 to vector<2x32xf32>
    %269 = arith.subf %268, %267 : vector<2x32xf32>
    %270 = math.exp %269 : vector<2x32xf32>
    %cst_101 = arith.constant 1.000000e+00 : f32
    %271 = vector.broadcast %cst_101 : f32 to vector<2x32xf32>
    %272 = arith.addf %271, %270 : vector<2x32xf32>
    %273 = tpu.reciprocal %272 : vector<2x32xf32> -> vector<2x32xf32>
    %274 = vector.extract_strided_slice %259 {offsets = [0, 32], sizes = [2, 32], strides = [1, 1]} : vector<2x128xf32> to vector<2x32xf32>
    %cst_102 = arith.constant 0.000000e+00 : f32
    %275 = vector.broadcast %cst_102 : f32 to vector<2x32xf32>
    %276 = arith.subf %275, %274 : vector<2x32xf32>
    %277 = math.exp %276 : vector<2x32xf32>
    %cst_103 = arith.constant 1.000000e+00 : f32
    %278 = vector.broadcast %cst_103 : f32 to vector<2x32xf32>
    %279 = arith.addf %278, %277 : vector<2x32xf32>
    %280 = tpu.reciprocal %279 : vector<2x32xf32> -> vector<2x32xf32>
    %281 = vector.extract_strided_slice %259 {offsets = [0, 64], sizes = [2, 32], strides = [1, 1]} : vector<2x128xf32> to vector<2x32xf32>
    %282 = math.tanh %281 : vector<2x32xf32>
    %283 = vector.extract_strided_slice %259 {offsets = [0, 96], sizes = [2, 32], strides = [1, 1]} : vector<2x128xf32> to vector<2x32xf32>
    %cst_104 = arith.constant 0.000000e+00 : f32
    %284 = vector.broadcast %cst_104 : f32 to vector<2x32xf32>
    %285 = arith.subf %284, %283 : vector<2x32xf32>
    %286 = math.exp %285 : vector<2x32xf32>
    %cst_105 = arith.constant 1.000000e+00 : f32
    %287 = vector.broadcast %cst_105 : f32 to vector<2x32xf32>
    %288 = arith.addf %287, %286 : vector<2x32xf32>
    %289 = tpu.reciprocal %288 : vector<2x32xf32> -> vector<2x32xf32>
    %290 = arith.mulf %280, %213 : vector<2x32xf32>
    %291 = arith.mulf %273, %282 : vector<2x32xf32>
    %292 = arith.addf %290, %291 : vector<2x32xf32>
    %293 = math.tanh %292 : vector<2x32xf32>
    %294 = arith.mulf %289, %293 : vector<2x32xf32>
    %295 = vector.extract_strided_slice %266 {offsets = [0, 0], sizes = [2, 32], strides = [1, 1]} : vector<2x128xf32> to vector<2x32xf32>
    %cst_106 = arith.constant 0.000000e+00 : f32
    %296 = vector.broadcast %cst_106 : f32 to vector<2x32xf32>
    %297 = arith.subf %296, %295 : vector<2x32xf32>
    %298 = math.exp %297 : vector<2x32xf32>
    %cst_107 = arith.constant 1.000000e+00 : f32
    %299 = vector.broadcast %cst_107 : f32 to vector<2x32xf32>
    %300 = arith.addf %299, %298 : vector<2x32xf32>
    %301 = tpu.reciprocal %300 : vector<2x32xf32> -> vector<2x32xf32>
    %302 = vector.extract_strided_slice %266 {offsets = [0, 32], sizes = [2, 32], strides = [1, 1]} : vector<2x128xf32> to vector<2x32xf32>
    %cst_108 = arith.constant 0.000000e+00 : f32
    %303 = vector.broadcast %cst_108 : f32 to vector<2x32xf32>
    %304 = arith.subf %303, %302 : vector<2x32xf32>
    %305 = math.exp %304 : vector<2x32xf32>
    %cst_109 = arith.constant 1.000000e+00 : f32
    %306 = vector.broadcast %cst_109 : f32 to vector<2x32xf32>
    %307 = arith.addf %306, %305 : vector<2x32xf32>
    %308 = tpu.reciprocal %307 : vector<2x32xf32> -> vector<2x32xf32>
    %309 = vector.extract_strided_slice %266 {offsets = [0, 64], sizes = [2, 32], strides = [1, 1]} : vector<2x128xf32> to vector<2x32xf32>
    %310 = math.tanh %309 : vector<2x32xf32>
    %311 = vector.extract_strided_slice %266 {offsets = [0, 96], sizes = [2, 32], strides = [1, 1]} : vector<2x128xf32> to vector<2x32xf32>
    %cst_110 = arith.constant 0.000000e+00 : f32
    %312 = vector.broadcast %cst_110 : f32 to vector<2x32xf32>
    %313 = arith.subf %312, %311 : vector<2x32xf32>
    %314 = math.exp %313 : vector<2x32xf32>
    %cst_111 = arith.constant 1.000000e+00 : f32
    %315 = vector.broadcast %cst_111 : f32 to vector<2x32xf32>
    %316 = arith.addf %315, %314 : vector<2x32xf32>
    %317 = tpu.reciprocal %316 : vector<2x32xf32> -> vector<2x32xf32>
    %318 = arith.mulf %308, %241 : vector<2x32xf32>
    %319 = arith.mulf %301, %310 : vector<2x32xf32>
    %320 = arith.addf %318, %319 : vector<2x32xf32>
    %321 = math.tanh %320 : vector<2x32xf32>
    %322 = arith.mulf %317, %321 : vector<2x32xf32>
    %323 = arith.index_cast %c3_i32 : i32 to index
    %c0_112 = arith.constant 0 : index
    %c0_113 = arith.constant 0 : index
    %324 = vector.load %arg4[%323, %c0_112, %c0_113] : memref<8x2x32xf32, #tpu.memory_space<vmem>>, vector<1x2x32xf32>
    %325 = vector.shape_cast %324 : vector<1x2x32xf32> to vector<2x32xf32>
    %326 = vector.shape_cast %294 : vector<2x32xf32> to vector<1x2x32xf32>
    tpu.vector_store %arg4[%323, %c0_112, %c0_113], %326 {strides = array<i32>} : memref<8x2x32xf32, #tpu.memory_space<vmem>>, vector<1x2x32xf32>,
    %327 = arith.index_cast %252 : i32 to index
    %c0_114 = arith.constant 0 : index
    %c0_115 = arith.constant 0 : index
    %328 = vector.load %arg5[%327, %c0_114, %c0_115] : memref<8x2x32xf32, #tpu.memory_space<vmem>>, vector<1x2x32xf32>
    %329 = vector.shape_cast %328 : vector<1x2x32xf32> to vector<2x32xf32>
    %330 = vector.shape_cast %322 : vector<2x32xf32> to vector<1x2x32xf32>
    tpu.vector_store %arg5[%327, %c0_114, %c0_115], %330 {strides = array<i32>} : memref<8x2x32xf32, #tpu.memory_space<vmem>>, vector<1x2x32xf32>,
    %c4_i32 = arith.constant 4 : i32
    %c7_i32_116 = arith.constant 7 : i32
    %331 = arith.subi %c7_i32_116, %c4_i32 : i32
    %c0_117 = arith.constant 0 : index
    %332 = arith.index_cast %c4_i32 : i32 to index
    %c0_118 = arith.constant 0 : index
    %c0_119 = arith.constant 0 : index
    %333 = vector.load %arg1[%c0_117, %332, %c0_118, %c0_119] : memref<1x8x2x128xbf16, #tpu.memory_space<vmem>>, vector<1x1x2x128xbf16>
    %334 = vector.shape_cast %333 : vector<1x1x2x128xbf16> to vector<2x128xbf16>
    %335 = arith.extf %334 : vector<2x128xbf16> to vector<2x128xf32>
    %336 = arith.truncf %294 : vector<2x32xf32> to vector<2x32xbf16>
    %cst_120 = arith.constant dense<0.000000e+00> : vector<2x128xf32>
    %337 = tpu.matmul %336, %4, %cst_120 {dimension_numbers = #tpu.dot_dimension_numbers<[1], [0], [0], [1], [0, 0, 1, 1], [], []>} : vector<2x32xbf16>, vector<32x128xbf16>, vector<2x128xf32> -> vector<2x128xf32>
    %338 = arith.addf %335, %337 : vector<2x128xf32>
    %c0_121 = arith.constant 0 : index
    %339 = arith.index_cast %331 : i32 to index
    %c0_122 = arith.constant 0 : index
    %c0_123 = arith.constant 0 : index
    %340 = vector.load %arg2[%c0_121, %339, %c0_122, %c0_123] : memref<1x8x2x128xbf16, #tpu.memory_space<vmem>>, vector<1x1x2x128xbf16>
    %341 = vector.shape_cast %340 : vector<1x1x2x128xbf16> to vector<2x128xbf16>
    %342 = arith.extf %341 : vector<2x128xbf16> to vector<2x128xf32>
    %343 = arith.truncf %322 : vector<2x32xf32> to vector<2x32xbf16>
    %cst_124 = arith.constant dense<0.000000e+00> : vector<2x128xf32>
    %344 = tpu.matmul %343, %6, %cst_124 {dimension_numbers = #tpu.dot_dimension_numbers<[1], [0], [0], [1], [0, 0, 1, 1], [], []>} : vector<2x32xbf16>, vector<32x128xbf16>, vector<2x128xf32> -> vector<2x128xf32>
    %345 = arith.addf %342, %344 : vector<2x128xf32>
    %346 = vector.extract_strided_slice %338 {offsets = [0, 0], sizes = [2, 32], strides = [1, 1]} : vector<2x128xf32> to vector<2x32xf32>
    %cst_125 = arith.constant 0.000000e+00 : f32
    %347 = vector.broadcast %cst_125 : f32 to vector<2x32xf32>
    %348 = arith.subf %347, %346 : vector<2x32xf32>
    %349 = math.exp %348 : vector<2x32xf32>
    %cst_126 = arith.constant 1.000000e+00 : f32
    %350 = vector.broadcast %cst_126 : f32 to vector<2x32xf32>
    %351 = arith.addf %350, %349 : vector<2x32xf32>
    %352 = tpu.reciprocal %351 : vector<2x32xf32> -> vector<2x32xf32>
    %353 = vector.extract_strided_slice %338 {offsets = [0, 32], sizes = [2, 32], strides = [1, 1]} : vector<2x128xf32> to vector<2x32xf32>
    %cst_127 = arith.constant 0.000000e+00 : f32
    %354 = vector.broadcast %cst_127 : f32 to vector<2x32xf32>
    %355 = arith.subf %354, %353 : vector<2x32xf32>
    %356 = math.exp %355 : vector<2x32xf32>
    %cst_128 = arith.constant 1.000000e+00 : f32
    %357 = vector.broadcast %cst_128 : f32 to vector<2x32xf32>
    %358 = arith.addf %357, %356 : vector<2x32xf32>
    %359 = tpu.reciprocal %358 : vector<2x32xf32> -> vector<2x32xf32>
    %360 = vector.extract_strided_slice %338 {offsets = [0, 64], sizes = [2, 32], strides = [1, 1]} : vector<2x128xf32> to vector<2x32xf32>
    %361 = math.tanh %360 : vector<2x32xf32>
    %362 = vector.extract_strided_slice %338 {offsets = [0, 96], sizes = [2, 32], strides = [1, 1]} : vector<2x128xf32> to vector<2x32xf32>
    %cst_129 = arith.constant 0.000000e+00 : f32
    %363 = vector.broadcast %cst_129 : f32 to vector<2x32xf32>
    %364 = arith.subf %363, %362 : vector<2x32xf32>
    %365 = math.exp %364 : vector<2x32xf32>
    %cst_130 = arith.constant 1.000000e+00 : f32
    %366 = vector.broadcast %cst_130 : f32 to vector<2x32xf32>
    %367 = arith.addf %366, %365 : vector<2x32xf32>
    %368 = tpu.reciprocal %367 : vector<2x32xf32> -> vector<2x32xf32>
    %369 = arith.mulf %359, %292 : vector<2x32xf32>
    %370 = arith.mulf %352, %361 : vector<2x32xf32>
    %371 = arith.addf %369, %370 : vector<2x32xf32>
    %372 = math.tanh %371 : vector<2x32xf32>
    %373 = arith.mulf %368, %372 : vector<2x32xf32>
    %374 = vector.extract_strided_slice %345 {offsets = [0, 0], sizes = [2, 32], strides = [1, 1]} : vector<2x128xf32> to vector<2x32xf32>
    %cst_131 = arith.constant 0.000000e+00 : f32
    %375 = vector.broadcast %cst_131 : f32 to vector<2x32xf32>
    %376 = arith.subf %375, %374 : vector<2x32xf32>
    %377 = math.exp %376 : vector<2x32xf32>
    %cst_132 = arith.constant 1.000000e+00 : f32
    %378 = vector.broadcast %cst_132 : f32 to vector<2x32xf32>
    %379 = arith.addf %378, %377 : vector<2x32xf32>
    %380 = tpu.reciprocal %379 : vector<2x32xf32> -> vector<2x32xf32>
    %381 = vector.extract_strided_slice %345 {offsets = [0, 32], sizes = [2, 32], strides = [1, 1]} : vector<2x128xf32> to vector<2x32xf32>
    %cst_133 = arith.constant 0.000000e+00 : f32
    %382 = vector.broadcast %cst_133 : f32 to vector<2x32xf32>
    %383 = arith.subf %382, %381 : vector<2x32xf32>
    %384 = math.exp %383 : vector<2x32xf32>
    %cst_134 = arith.constant 1.000000e+00 : f32
    %385 = vector.broadcast %cst_134 : f32 to vector<2x32xf32>
    %386 = arith.addf %385, %384 : vector<2x32xf32>
    %387 = tpu.reciprocal %386 : vector<2x32xf32> -> vector<2x32xf32>
    %388 = vector.extract_strided_slice %345 {offsets = [0, 64], sizes = [2, 32], strides = [1, 1]} : vector<2x128xf32> to vector<2x32xf32>
    %389 = math.tanh %388 : vector<2x32xf32>
    %390 = vector.extract_strided_slice %345 {offsets = [0, 96], sizes = [2, 32], strides = [1, 1]} : vector<2x128xf32> to vector<2x32xf32>
    %cst_135 = arith.constant 0.000000e+00 : f32
    %391 = vector.broadcast %cst_135 : f32 to vector<2x32xf32>
    %392 = arith.subf %391, %390 : vector<2x32xf32>
    %393 = math.exp %392 : vector<2x32xf32>
    %cst_136 = arith.constant 1.000000e+00 : f32
    %394 = vector.broadcast %cst_136 : f32 to vector<2x32xf32>
    %395 = arith.addf %394, %393 : vector<2x32xf32>
    %396 = tpu.reciprocal %395 : vector<2x32xf32> -> vector<2x32xf32>
    %397 = arith.mulf %387, %320 : vector<2x32xf32>
    %398 = arith.mulf %380, %389 : vector<2x32xf32>
    %399 = arith.addf %397, %398 : vector<2x32xf32>
    %400 = math.tanh %399 : vector<2x32xf32>
    %401 = arith.mulf %396, %400 : vector<2x32xf32>
    %402 = arith.index_cast %c4_i32 : i32 to index
    %c0_137 = arith.constant 0 : index
    %c0_138 = arith.constant 0 : index
    %403 = vector.load %arg4[%402, %c0_137, %c0_138] : memref<8x2x32xf32, #tpu.memory_space<vmem>>, vector<1x2x32xf32>
    %404 = vector.shape_cast %403 : vector<1x2x32xf32> to vector<2x32xf32>
    %405 = vector.shape_cast %373 : vector<2x32xf32> to vector<1x2x32xf32>
    tpu.vector_store %arg4[%402, %c0_137, %c0_138], %405 {strides = array<i32>} : memref<8x2x32xf32, #tpu.memory_space<vmem>>, vector<1x2x32xf32>,
    %406 = arith.index_cast %331 : i32 to index
    %c0_139 = arith.constant 0 : index
    %c0_140 = arith.constant 0 : index
    %407 = vector.load %arg5[%406, %c0_139, %c0_140] : memref<8x2x32xf32, #tpu.memory_space<vmem>>, vector<1x2x32xf32>
    %408 = vector.shape_cast %407 : vector<1x2x32xf32> to vector<2x32xf32>
    %409 = vector.shape_cast %401 : vector<2x32xf32> to vector<1x2x32xf32>
    tpu.vector_store %arg5[%406, %c0_139, %c0_140], %409 {strides = array<i32>} : memref<8x2x32xf32, #tpu.memory_space<vmem>>, vector<1x2x32xf32>,
    %c5_i32 = arith.constant 5 : i32
    %c7_i32_141 = arith.constant 7 : i32
    %410 = arith.subi %c7_i32_141, %c5_i32 : i32
    %c0_142 = arith.constant 0 : index
    %411 = arith.index_cast %c5_i32 : i32 to index
    %c0_143 = arith.constant 0 : index
    %c0_144 = arith.constant 0 : index
    %412 = vector.load %arg1[%c0_142, %411, %c0_143, %c0_144] : memref<1x8x2x128xbf16, #tpu.memory_space<vmem>>, vector<1x1x2x128xbf16>
    %413 = vector.shape_cast %412 : vector<1x1x2x128xbf16> to vector<2x128xbf16>
    %414 = arith.extf %413 : vector<2x128xbf16> to vector<2x128xf32>
    %415 = arith.truncf %373 : vector<2x32xf32> to vector<2x32xbf16>
    %cst_145 = arith.constant dense<0.000000e+00> : vector<2x128xf32>
    %416 = tpu.matmul %415, %4, %cst_145 {dimension_numbers = #tpu.dot_dimension_numbers<[1], [0], [0], [1], [0, 0, 1, 1], [], []>} : vector<2x32xbf16>, vector<32x128xbf16>, vector<2x128xf32> -> vector<2x128xf32>
    %417 = arith.addf %414, %416 : vector<2x128xf32>
    %c0_146 = arith.constant 0 : index
    %418 = arith.index_cast %410 : i32 to index
    %c0_147 = arith.constant 0 : index
    %c0_148 = arith.constant 0 : index
    %419 = vector.load %arg2[%c0_146, %418, %c0_147, %c0_148] : memref<1x8x2x128xbf16, #tpu.memory_space<vmem>>, vector<1x1x2x128xbf16>
    %420 = vector.shape_cast %419 : vector<1x1x2x128xbf16> to vector<2x128xbf16>
    %421 = arith.extf %420 : vector<2x128xbf16> to vector<2x128xf32>
    %422 = arith.truncf %401 : vector<2x32xf32> to vector<2x32xbf16>
    %cst_149 = arith.constant dense<0.000000e+00> : vector<2x128xf32>
    %423 = tpu.matmul %422, %6, %cst_149 {dimension_numbers = #tpu.dot_dimension_numbers<[1], [0], [0], [1], [0, 0, 1, 1], [], []>} : vector<2x32xbf16>, vector<32x128xbf16>, vector<2x128xf32> -> vector<2x128xf32>
    %424 = arith.addf %421, %423 : vector<2x128xf32>
    %425 = vector.extract_strided_slice %417 {offsets = [0, 0], sizes = [2, 32], strides = [1, 1]} : vector<2x128xf32> to vector<2x32xf32>
    %cst_150 = arith.constant 0.000000e+00 : f32
    %426 = vector.broadcast %cst_150 : f32 to vector<2x32xf32>
    %427 = arith.subf %426, %425 : vector<2x32xf32>
    %428 = math.exp %427 : vector<2x32xf32>
    %cst_151 = arith.constant 1.000000e+00 : f32
    %429 = vector.broadcast %cst_151 : f32 to vector<2x32xf32>
    %430 = arith.addf %429, %428 : vector<2x32xf32>
    %431 = tpu.reciprocal %430 : vector<2x32xf32> -> vector<2x32xf32>
    %432 = vector.extract_strided_slice %417 {offsets = [0, 32], sizes = [2, 32], strides = [1, 1]} : vector<2x128xf32> to vector<2x32xf32>
    %cst_152 = arith.constant 0.000000e+00 : f32
    %433 = vector.broadcast %cst_152 : f32 to vector<2x32xf32>
    %434 = arith.subf %433, %432 : vector<2x32xf32>
    %435 = math.exp %434 : vector<2x32xf32>
    %cst_153 = arith.constant 1.000000e+00 : f32
    %436 = vector.broadcast %cst_153 : f32 to vector<2x32xf32>
    %437 = arith.addf %436, %435 : vector<2x32xf32>
    %438 = tpu.reciprocal %437 : vector<2x32xf32> -> vector<2x32xf32>
    %439 = vector.extract_strided_slice %417 {offsets = [0, 64], sizes = [2, 32], strides = [1, 1]} : vector<2x128xf32> to vector<2x32xf32>
    %440 = math.tanh %439 : vector<2x32xf32>
    %441 = vector.extract_strided_slice %417 {offsets = [0, 96], sizes = [2, 32], strides = [1, 1]} : vector<2x128xf32> to vector<2x32xf32>
    %cst_154 = arith.constant 0.000000e+00 : f32
    %442 = vector.broadcast %cst_154 : f32 to vector<2x32xf32>
    %443 = arith.subf %442, %441 : vector<2x32xf32>
    %444 = math.exp %443 : vector<2x32xf32>
    %cst_155 = arith.constant 1.000000e+00 : f32
    %445 = vector.broadcast %cst_155 : f32 to vector<2x32xf32>
    %446 = arith.addf %445, %444 : vector<2x32xf32>
    %447 = tpu.reciprocal %446 : vector<2x32xf32> -> vector<2x32xf32>
    %448 = arith.mulf %438, %371 : vector<2x32xf32>
    %449 = arith.mulf %431, %440 : vector<2x32xf32>
    %450 = arith.addf %448, %449 : vector<2x32xf32>
    %451 = math.tanh %450 : vector<2x32xf32>
    %452 = arith.mulf %447, %451 : vector<2x32xf32>
    %453 = vector.extract_strided_slice %424 {offsets = [0, 0], sizes = [2, 32], strides = [1, 1]} : vector<2x128xf32> to vector<2x32xf32>
    %cst_156 = arith.constant 0.000000e+00 : f32
    %454 = vector.broadcast %cst_156 : f32 to vector<2x32xf32>
    %455 = arith.subf %454, %453 : vector<2x32xf32>
    %456 = math.exp %455 : vector<2x32xf32>
    %cst_157 = arith.constant 1.000000e+00 : f32
    %457 = vector.broadcast %cst_157 : f32 to vector<2x32xf32>
    %458 = arith.addf %457, %456 : vector<2x32xf32>
    %459 = tpu.reciprocal %458 : vector<2x32xf32> -> vector<2x32xf32>
    %460 = vector.extract_strided_slice %424 {offsets = [0, 32], sizes = [2, 32], strides = [1, 1]} : vector<2x128xf32> to vector<2x32xf32>
    %cst_158 = arith.constant 0.000000e+00 : f32
    %461 = vector.broadcast %cst_158 : f32 to vector<2x32xf32>
    %462 = arith.subf %461, %460 : vector<2x32xf32>
    %463 = math.exp %462 : vector<2x32xf32>
    %cst_159 = arith.constant 1.000000e+00 : f32
    %464 = vector.broadcast %cst_159 : f32 to vector<2x32xf32>
    %465 = arith.addf %464, %463 : vector<2x32xf32>
    %466 = tpu.reciprocal %465 : vector<2x32xf32> -> vector<2x32xf32>
    %467 = vector.extract_strided_slice %424 {offsets = [0, 64], sizes = [2, 32], strides = [1, 1]} : vector<2x128xf32> to vector<2x32xf32>
    %468 = math.tanh %467 : vector<2x32xf32>
    %469 = vector.extract_strided_slice %424 {offsets = [0, 96], sizes = [2, 32], strides = [1, 1]} : vector<2x128xf32> to vector<2x32xf32>
    %cst_160 = arith.constant 0.000000e+00 : f32
    %470 = vector.broadcast %cst_160 : f32 to vector<2x32xf32>
    %471 = arith.subf %470, %469 : vector<2x32xf32>
    %472 = math.exp %471 : vector<2x32xf32>
    %cst_161 = arith.constant 1.000000e+00 : f32
    %473 = vector.broadcast %cst_161 : f32 to vector<2x32xf32>
    %474 = arith.addf %473, %472 : vector<2x32xf32>
    %475 = tpu.reciprocal %474 : vector<2x32xf32> -> vector<2x32xf32>
    %476 = arith.mulf %466, %399 : vector<2x32xf32>
    %477 = arith.mulf %459, %468 : vector<2x32xf32>
    %478 = arith.addf %476, %477 : vector<2x32xf32>
    %479 = math.tanh %478 : vector<2x32xf32>
    %480 = arith.mulf %475, %479 : vector<2x32xf32>
    %481 = arith.index_cast %c5_i32 : i32 to index
    %c0_162 = arith.constant 0 : index
    %c0_163 = arith.constant 0 : index
    %482 = vector.load %arg4[%481, %c0_162, %c0_163] : memref<8x2x32xf32, #tpu.memory_space<vmem>>, vector<1x2x32xf32>
    %483 = vector.shape_cast %482 : vector<1x2x32xf32> to vector<2x32xf32>
    %484 = vector.shape_cast %452 : vector<2x32xf32> to vector<1x2x32xf32>
    tpu.vector_store %arg4[%481, %c0_162, %c0_163], %484 {strides = array<i32>} : memref<8x2x32xf32, #tpu.memory_space<vmem>>, vector<1x2x32xf32>,
    %485 = arith.index_cast %410 : i32 to index
    %c0_164 = arith.constant 0 : index
    %c0_165 = arith.constant 0 : index
    %486 = vector.load %arg5[%485, %c0_164, %c0_165] : memref<8x2x32xf32, #tpu.memory_space<vmem>>, vector<1x2x32xf32>
    %487 = vector.shape_cast %486 : vector<1x2x32xf32> to vector<2x32xf32>
    %488 = vector.shape_cast %480 : vector<2x32xf32> to vector<1x2x32xf32>
    tpu.vector_store %arg5[%485, %c0_164, %c0_165], %488 {strides = array<i32>} : memref<8x2x32xf32, #tpu.memory_space<vmem>>, vector<1x2x32xf32>,
    %c6_i32 = arith.constant 6 : i32
    %c7_i32_166 = arith.constant 7 : i32
    %489 = arith.subi %c7_i32_166, %c6_i32 : i32
    %c0_167 = arith.constant 0 : index
    %490 = arith.index_cast %c6_i32 : i32 to index
    %c0_168 = arith.constant 0 : index
    %c0_169 = arith.constant 0 : index
    %491 = vector.load %arg1[%c0_167, %490, %c0_168, %c0_169] : memref<1x8x2x128xbf16, #tpu.memory_space<vmem>>, vector<1x1x2x128xbf16>
    %492 = vector.shape_cast %491 : vector<1x1x2x128xbf16> to vector<2x128xbf16>
    %493 = arith.extf %492 : vector<2x128xbf16> to vector<2x128xf32>
    %494 = arith.truncf %452 : vector<2x32xf32> to vector<2x32xbf16>
    %cst_170 = arith.constant dense<0.000000e+00> : vector<2x128xf32>
    %495 = tpu.matmul %494, %4, %cst_170 {dimension_numbers = #tpu.dot_dimension_numbers<[1], [0], [0], [1], [0, 0, 1, 1], [], []>} : vector<2x32xbf16>, vector<32x128xbf16>, vector<2x128xf32> -> vector<2x128xf32>
    %496 = arith.addf %493, %495 : vector<2x128xf32>
    %c0_171 = arith.constant 0 : index
    %497 = arith.index_cast %489 : i32 to index
    %c0_172 = arith.constant 0 : index
    %c0_173 = arith.constant 0 : index
    %498 = vector.load %arg2[%c0_171, %497, %c0_172, %c0_173] : memref<1x8x2x128xbf16, #tpu.memory_space<vmem>>, vector<1x1x2x128xbf16>
    %499 = vector.shape_cast %498 : vector<1x1x2x128xbf16> to vector<2x128xbf16>
    %500 = arith.extf %499 : vector<2x128xbf16> to vector<2x128xf32>
    %501 = arith.truncf %480 : vector<2x32xf32> to vector<2x32xbf16>
    %cst_174 = arith.constant dense<0.000000e+00> : vector<2x128xf32>
    %502 = tpu.matmul %501, %6, %cst_174 {dimension_numbers = #tpu.dot_dimension_numbers<[1], [0], [0], [1], [0, 0, 1, 1], [], []>} : vector<2x32xbf16>, vector<32x128xbf16>, vector<2x128xf32> -> vector<2x128xf32>
    %503 = arith.addf %500, %502 : vector<2x128xf32>
    %504 = vector.extract_strided_slice %496 {offsets = [0, 0], sizes = [2, 32], strides = [1, 1]} : vector<2x128xf32> to vector<2x32xf32>
    %cst_175 = arith.constant 0.000000e+00 : f32
    %505 = vector.broadcast %cst_175 : f32 to vector<2x32xf32>
    %506 = arith.subf %505, %504 : vector<2x32xf32>
    %507 = math.exp %506 : vector<2x32xf32>
    %cst_176 = arith.constant 1.000000e+00 : f32
    %508 = vector.broadcast %cst_176 : f32 to vector<2x32xf32>
    %509 = arith.addf %508, %507 : vector<2x32xf32>
    %510 = tpu.reciprocal %509 : vector<2x32xf32> -> vector<2x32xf32>
    %511 = vector.extract_strided_slice %496 {offsets = [0, 32], sizes = [2, 32], strides = [1, 1]} : vector<2x128xf32> to vector<2x32xf32>
    %cst_177 = arith.constant 0.000000e+00 : f32
    %512 = vector.broadcast %cst_177 : f32 to vector<2x32xf32>
    %513 = arith.subf %512, %511 : vector<2x32xf32>
    %514 = math.exp %513 : vector<2x32xf32>
    %cst_178 = arith.constant 1.000000e+00 : f32
    %515 = vector.broadcast %cst_178 : f32 to vector<2x32xf32>
    %516 = arith.addf %515, %514 : vector<2x32xf32>
    %517 = tpu.reciprocal %516 : vector<2x32xf32> -> vector<2x32xf32>
    %518 = vector.extract_strided_slice %496 {offsets = [0, 64], sizes = [2, 32], strides = [1, 1]} : vector<2x128xf32> to vector<2x32xf32>
    %519 = math.tanh %518 : vector<2x32xf32>
    %520 = vector.extract_strided_slice %496 {offsets = [0, 96], sizes = [2, 32], strides = [1, 1]} : vector<2x128xf32> to vector<2x32xf32>
    %cst_179 = arith.constant 0.000000e+00 : f32
    %521 = vector.broadcast %cst_179 : f32 to vector<2x32xf32>
    %522 = arith.subf %521, %520 : vector<2x32xf32>
    %523 = math.exp %522 : vector<2x32xf32>
    %cst_180 = arith.constant 1.000000e+00 : f32
    %524 = vector.broadcast %cst_180 : f32 to vector<2x32xf32>
    %525 = arith.addf %524, %523 : vector<2x32xf32>
    %526 = tpu.reciprocal %525 : vector<2x32xf32> -> vector<2x32xf32>
    %527 = arith.mulf %517, %450 : vector<2x32xf32>
    %528 = arith.mulf %510, %519 : vector<2x32xf32>
    %529 = arith.addf %527, %528 : vector<2x32xf32>
    %530 = math.tanh %529 : vector<2x32xf32>
    %531 = arith.mulf %526, %530 : vector<2x32xf32>
    %532 = vector.extract_strided_slice %503 {offsets = [0, 0], sizes = [2, 32], strides = [1, 1]} : vector<2x128xf32> to vector<2x32xf32>
    %cst_181 = arith.constant 0.000000e+00 : f32
    %533 = vector.broadcast %cst_181 : f32 to vector<2x32xf32>
    %534 = arith.subf %533, %532 : vector<2x32xf32>
    %535 = math.exp %534 : vector<2x32xf32>
    %cst_182 = arith.constant 1.000000e+00 : f32
    %536 = vector.broadcast %cst_182 : f32 to vector<2x32xf32>
    %537 = arith.addf %536, %535 : vector<2x32xf32>
    %538 = tpu.reciprocal %537 : vector<2x32xf32> -> vector<2x32xf32>
    %539 = vector.extract_strided_slice %503 {offsets = [0, 32], sizes = [2, 32], strides = [1, 1]} : vector<2x128xf32> to vector<2x32xf32>
    %cst_183 = arith.constant 0.000000e+00 : f32
    %540 = vector.broadcast %cst_183 : f32 to vector<2x32xf32>
    %541 = arith.subf %540, %539 : vector<2x32xf32>
    %542 = math.exp %541 : vector<2x32xf32>
    %cst_184 = arith.constant 1.000000e+00 : f32
    %543 = vector.broadcast %cst_184 : f32 to vector<2x32xf32>
    %544 = arith.addf %543, %542 : vector<2x32xf32>
    %545 = tpu.reciprocal %544 : vector<2x32xf32> -> vector<2x32xf32>
    %546 = vector.extract_strided_slice %503 {offsets = [0, 64], sizes = [2, 32], strides = [1, 1]} : vector<2x128xf32> to vector<2x32xf32>
    %547 = math.tanh %546 : vector<2x32xf32>
    %548 = vector.extract_strided_slice %503 {offsets = [0, 96], sizes = [2, 32], strides = [1, 1]} : vector<2x128xf32> to vector<2x32xf32>
    %cst_185 = arith.constant 0.000000e+00 : f32
    %549 = vector.broadcast %cst_185 : f32 to vector<2x32xf32>
    %550 = arith.subf %549, %548 : vector<2x32xf32>
    %551 = math.exp %550 : vector<2x32xf32>
    %cst_186 = arith.constant 1.000000e+00 : f32
    %552 = vector.broadcast %cst_186 : f32 to vector<2x32xf32>
    %553 = arith.addf %552, %551 : vector<2x32xf32>
    %554 = tpu.reciprocal %553 : vector<2x32xf32> -> vector<2x32xf32>
    %555 = arith.mulf %545, %478 : vector<2x32xf32>
    %556 = arith.mulf %538, %547 : vector<2x32xf32>
    %557 = arith.addf %555, %556 : vector<2x32xf32>
    %558 = math.tanh %557 : vector<2x32xf32>
    %559 = arith.mulf %554, %558 : vector<2x32xf32>
    %560 = arith.index_cast %c6_i32 : i32 to index
    %c0_187 = arith.constant 0 : index
    %c0_188 = arith.constant 0 : index
    %561 = vector.load %arg4[%560, %c0_187, %c0_188] : memref<8x2x32xf32, #tpu.memory_space<vmem>>, vector<1x2x32xf32>
    %562 = vector.shape_cast %561 : vector<1x2x32xf32> to vector<2x32xf32>
    %563 = vector.shape_cast %531 : vector<2x32xf32> to vector<1x2x32xf32>
    tpu.vector_store %arg4[%560, %c0_187, %c0_188], %563 {strides = array<i32>} : memref<8x2x32xf32, #tpu.memory_space<vmem>>, vector<1x2x32xf32>,
    %564 = arith.index_cast %489 : i32 to index
    %c0_189 = arith.constant 0 : index
    %c0_190 = arith.constant 0 : index
    %565 = vector.load %arg5[%564, %c0_189, %c0_190] : memref<8x2x32xf32, #tpu.memory_space<vmem>>, vector<1x2x32xf32>
    %566 = vector.shape_cast %565 : vector<1x2x32xf32> to vector<2x32xf32>
    %567 = vector.shape_cast %559 : vector<2x32xf32> to vector<1x2x32xf32>
    tpu.vector_store %arg5[%564, %c0_189, %c0_190], %567 {strides = array<i32>} : memref<8x2x32xf32, #tpu.memory_space<vmem>>, vector<1x2x32xf32>,
    %c7_i32_191 = arith.constant 7 : i32
    %c7_i32_192 = arith.constant 7 : i32
    %568 = arith.subi %c7_i32_192, %c7_i32_191 : i32
    %c0_193 = arith.constant 0 : index
    %569 = arith.index_cast %c7_i32_191 : i32 to index
    %c0_194 = arith.constant 0 : index
    %c0_195 = arith.constant 0 : index
    %570 = vector.load %arg1[%c0_193, %569, %c0_194, %c0_195] : memref<1x8x2x128xbf16, #tpu.memory_space<vmem>>, vector<1x1x2x128xbf16>
    %571 = vector.shape_cast %570 : vector<1x1x2x128xbf16> to vector<2x128xbf16>
    %572 = arith.extf %571 : vector<2x128xbf16> to vector<2x128xf32>
    %573 = arith.truncf %531 : vector<2x32xf32> to vector<2x32xbf16>
    %cst_196 = arith.constant dense<0.000000e+00> : vector<2x128xf32>
    %574 = tpu.matmul %573, %4, %cst_196 {dimension_numbers = #tpu.dot_dimension_numbers<[1], [0], [0], [1], [0, 0, 1, 1], [], []>} : vector<2x32xbf16>, vector<32x128xbf16>, vector<2x128xf32> -> vector<2x128xf32>
    %575 = arith.addf %572, %574 : vector<2x128xf32>
    %c0_197 = arith.constant 0 : index
    %576 = arith.index_cast %568 : i32 to index
    %c0_198 = arith.constant 0 : index
    %c0_199 = arith.constant 0 : index
    %577 = vector.load %arg2[%c0_197, %576, %c0_198, %c0_199] : memref<1x8x2x128xbf16, #tpu.memory_space<vmem>>, vector<1x1x2x128xbf16>
    %578 = vector.shape_cast %577 : vector<1x1x2x128xbf16> to vector<2x128xbf16>
    %579 = arith.extf %578 : vector<2x128xbf16> to vector<2x128xf32>
    %580 = arith.truncf %559 : vector<2x32xf32> to vector<2x32xbf16>
    %cst_200 = arith.constant dense<0.000000e+00> : vector<2x128xf32>
    %581 = tpu.matmul %580, %6, %cst_200 {dimension_numbers = #tpu.dot_dimension_numbers<[1], [0], [0], [1], [0, 0, 1, 1], [], []>} : vector<2x32xbf16>, vector<32x128xbf16>, vector<2x128xf32> -> vector<2x128xf32>
    %582 = arith.addf %579, %581 : vector<2x128xf32>
    %583 = vector.extract_strided_slice %575 {offsets = [0, 0], sizes = [2, 32], strides = [1, 1]} : vector<2x128xf32> to vector<2x32xf32>
    %cst_201 = arith.constant 0.000000e+00 : f32
    %584 = vector.broadcast %cst_201 : f32 to vector<2x32xf32>
    %585 = arith.subf %584, %583 : vector<2x32xf32>
    %586 = math.exp %585 : vector<2x32xf32>
    %cst_202 = arith.constant 1.000000e+00 : f32
    %587 = vector.broadcast %cst_202 : f32 to vector<2x32xf32>
    %588 = arith.addf %587, %586 : vector<2x32xf32>
    %589 = tpu.reciprocal %588 : vector<2x32xf32> -> vector<2x32xf32>
    %590 = vector.extract_strided_slice %575 {offsets = [0, 32], sizes = [2, 32], strides = [1, 1]} : vector<2x128xf32> to vector<2x32xf32>
    %cst_203 = arith.constant 0.000000e+00 : f32
    %591 = vector.broadcast %cst_203 : f32 to vector<2x32xf32>
    %592 = arith.subf %591, %590 : vector<2x32xf32>
    %593 = math.exp %592 : vector<2x32xf32>
    %cst_204 = arith.constant 1.000000e+00 : f32
    %594 = vector.broadcast %cst_204 : f32 to vector<2x32xf32>
    %595 = arith.addf %594, %593 : vector<2x32xf32>
    %596 = tpu.reciprocal %595 : vector<2x32xf32> -> vector<2x32xf32>
    %597 = vector.extract_strided_slice %575 {offsets = [0, 64], sizes = [2, 32], strides = [1, 1]} : vector<2x128xf32> to vector<2x32xf32>
    %598 = math.tanh %597 : vector<2x32xf32>
    %599 = vector.extract_strided_slice %575 {offsets = [0, 96], sizes = [2, 32], strides = [1, 1]} : vector<2x128xf32> to vector<2x32xf32>
    %cst_205 = arith.constant 0.000000e+00 : f32
    %600 = vector.broadcast %cst_205 : f32 to vector<2x32xf32>
    %601 = arith.subf %600, %599 : vector<2x32xf32>
    %602 = math.exp %601 : vector<2x32xf32>
    %cst_206 = arith.constant 1.000000e+00 : f32
    %603 = vector.broadcast %cst_206 : f32 to vector<2x32xf32>
    %604 = arith.addf %603, %602 : vector<2x32xf32>
    %605 = tpu.reciprocal %604 : vector<2x32xf32> -> vector<2x32xf32>
    %606 = arith.mulf %596, %529 : vector<2x32xf32>
    %607 = arith.mulf %589, %598 : vector<2x32xf32>
    %608 = arith.addf %606, %607 : vector<2x32xf32>
    %609 = math.tanh %608 : vector<2x32xf32>
    %610 = arith.mulf %605, %609 : vector<2x32xf32>
    %611 = vector.extract_strided_slice %582 {offsets = [0, 0], sizes = [2, 32], strides = [1, 1]} : vector<2x128xf32> to vector<2x32xf32>
    %cst_207 = arith.constant 0.000000e+00 : f32
    %612 = vector.broadcast %cst_207 : f32 to vector<2x32xf32>
    %613 = arith.subf %612, %611 : vector<2x32xf32>
    %614 = math.exp %613 : vector<2x32xf32>
    %cst_208 = arith.constant 1.000000e+00 : f32
    %615 = vector.broadcast %cst_208 : f32 to vector<2x32xf32>
    %616 = arith.addf %615, %614 : vector<2x32xf32>
    %617 = tpu.reciprocal %616 : vector<2x32xf32> -> vector<2x32xf32>
    %618 = vector.extract_strided_slice %582 {offsets = [0, 32], sizes = [2, 32], strides = [1, 1]} : vector<2x128xf32> to vector<2x32xf32>
    %cst_209 = arith.constant 0.000000e+00 : f32
    %619 = vector.broadcast %cst_209 : f32 to vector<2x32xf32>
    %620 = arith.subf %619, %618 : vector<2x32xf32>
    %621 = math.exp %620 : vector<2x32xf32>
    %cst_210 = arith.constant 1.000000e+00 : f32
    %622 = vector.broadcast %cst_210 : f32 to vector<2x32xf32>
    %623 = arith.addf %622, %621 : vector<2x32xf32>
    %624 = tpu.reciprocal %623 : vector<2x32xf32> -> vector<2x32xf32>
    %625 = vector.extract_strided_slice %582 {offsets = [0, 64], sizes = [2, 32], strides = [1, 1]} : vector<2x128xf32> to vector<2x32xf32>
    %626 = math.tanh %625 : vector<2x32xf32>
    %627 = vector.extract_strided_slice %582 {offsets = [0, 96], sizes = [2, 32], strides = [1, 1]} : vector<2x128xf32> to vector<2x32xf32>
    %cst_211 = arith.constant 0.000000e+00 : f32
    %628 = vector.broadcast %cst_211 : f32 to vector<2x32xf32>
    %629 = arith.subf %628, %627 : vector<2x32xf32>
    %630 = math.exp %629 : vector<2x32xf32>
    %cst_212 = arith.constant 1.000000e+00 : f32
    %631 = vector.broadcast %cst_212 : f32 to vector<2x32xf32>
    %632 = arith.addf %631, %630 : vector<2x32xf32>
    %633 = tpu.reciprocal %632 : vector<2x32xf32> -> vector<2x32xf32>
    %634 = arith.mulf %624, %557 : vector<2x32xf32>
    %635 = arith.mulf %617, %626 : vector<2x32xf32>
    %636 = arith.addf %634, %635 : vector<2x32xf32>
    %637 = math.tanh %636 : vector<2x32xf32>
    %638 = arith.mulf %633, %637 : vector<2x32xf32>
    %639 = arith.index_cast %c7_i32_191 : i32 to index
    %c0_213 = arith.constant 0 : index
    %c0_214 = arith.constant 0 : index
    %640 = vector.load %arg4[%639, %c0_213, %c0_214] : memref<8x2x32xf32, #tpu.memory_space<vmem>>, vector<1x2x32xf32>
    %641 = vector.shape_cast %640 : vector<1x2x32xf32> to vector<2x32xf32>
    %642 = vector.shape_cast %610 : vector<2x32xf32> to vector<1x2x32xf32>
    tpu.vector_store %arg4[%639, %c0_213, %c0_214], %642 {strides = array<i32>} : memref<8x2x32xf32, #tpu.memory_space<vmem>>, vector<1x2x32xf32>,
    %643 = arith.index_cast %568 : i32 to index
    %c0_215 = arith.constant 0 : index
    %c0_216 = arith.constant 0 : index
    %644 = vector.load %arg5[%643, %c0_215, %c0_216] : memref<8x2x32xf32, #tpu.memory_space<vmem>>, vector<1x2x32xf32>
    %645 = vector.shape_cast %644 : vector<1x2x32xf32> to vector<2x32xf32>
    %646 = vector.shape_cast %638 : vector<2x32xf32> to vector<1x2x32xf32>
    tpu.vector_store %arg5[%643, %c0_215, %c0_216], %646 {strides = array<i32>} : memref<8x2x32xf32, #tpu.memory_space<vmem>>, vector<1x2x32xf32>,
    %c8_i32 = arith.constant 8 : i32
    %c0_217 = arith.constant 0 : index
    %c0_218 = arith.constant 0 : index
    %c0_219 = arith.constant 0 : index
    %647 = vector.load %arg8[%c0_217, %c0_218, %c0_219] : memref<2x2x32xf32, #tpu.memory_space<vmem>>, vector<1x2x32xf32>
    %648 = vector.shape_cast %647 : vector<1x2x32xf32> to vector<2x32xf32>
    %649 = vector.shape_cast %610 : vector<2x32xf32> to vector<1x2x32xf32>
    tpu.vector_store %arg8[%c0_217, %c0_218, %c0_219], %649 {strides = array<i32>} : memref<2x2x32xf32, #tpu.memory_space<vmem>>, vector<1x2x32xf32>,
    %c0_220 = arith.constant 0 : index
    %c0_221 = arith.constant 0 : index
    %c0_222 = arith.constant 0 : index
    %650 = vector.load %arg9[%c0_220, %c0_221, %c0_222] : memref<2x2x32xf32, #tpu.memory_space<vmem>>, vector<1x2x32xf32>
    %651 = vector.shape_cast %650 : vector<1x2x32xf32> to vector<2x32xf32>
    %652 = vector.shape_cast %608 : vector<2x32xf32> to vector<1x2x32xf32>
    tpu.vector_store %arg9[%c0_220, %c0_221, %c0_222], %652 {strides = array<i32>} : memref<2x2x32xf32, #tpu.memory_space<vmem>>, vector<1x2x32xf32>,
    %c1_223 = arith.constant 1 : index
    %c0_224 = arith.constant 0 : index
    %c0_225 = arith.constant 0 : index
    %653 = vector.load %arg8[%c1_223, %c0_224, %c0_225] : memref<2x2x32xf32, #tpu.memory_space<vmem>>, vector<1x2x32xf32>
    %654 = vector.shape_cast %653 : vector<1x2x32xf32> to vector<2x32xf32>
    %655 = vector.shape_cast %638 : vector<2x32xf32> to vector<1x2x32xf32>
    tpu.vector_store %arg8[%c1_223, %c0_224, %c0_225], %655 {strides = array<i32>} : memref<2x2x32xf32, #tpu.memory_space<vmem>>, vector<1x2x32xf32>,
    %c1_226 = arith.constant 1 : index
    %c0_227 = arith.constant 0 : index
    %c0_228 = arith.constant 0 : index
    %656 = vector.load %arg9[%c1_226, %c0_227, %c0_228] : memref<2x2x32xf32, #tpu.memory_space<vmem>>, vector<1x2x32xf32>
    %657 = vector.shape_cast %656 : vector<1x2x32xf32> to vector<2x32xf32>
    %658 = vector.shape_cast %636 : vector<2x32xf32> to vector<1x2x32xf32>
    tpu.vector_store %arg9[%c1_226, %c0_227, %c0_228], %658 {strides = array<i32>} : memref<2x2x32xf32, #tpu.memory_space<vmem>>, vector<1x2x32xf32>,
    %c0_i32_229 = arith.constant 0 : i32
    %659 = arith.cmpi eq, %arg0, %c0_i32_229 : i32
    %660 = arith.extui %659 : i1 to i32
    %c0_i32_230 = arith.constant 0 : i32
    %661 = arith.cmpi ne, %660, %c0_i32_230 : i32
    scf.if %661 {
      %c0_231 = arith.constant 0 : index
      %c0_232 = arith.constant 0 : index
      %c0_233 = arith.constant 0 : index
      %662 = vector.load %arg6[%c0_231, %c0_232, %c0_233] : memref<2x2x32xf32, #tpu.memory_space<vmem>>, vector<1x2x32xf32>
      %663 = vector.shape_cast %662 : vector<1x2x32xf32> to vector<2x32xf32>
      %664 = vector.shape_cast %610 : vector<2x32xf32> to vector<1x2x32xf32>
      tpu.vector_store %arg6[%c0_231, %c0_232, %c0_233], %664 {strides = array<i32>} : memref<2x2x32xf32, #tpu.memory_space<vmem>>, vector<1x2x32xf32>,
      %c1_234 = arith.constant 1 : index
      %c0_235 = arith.constant 0 : index
      %c0_236 = arith.constant 0 : index
      %665 = vector.load %arg6[%c1_234, %c0_235, %c0_236] : memref<2x2x32xf32, #tpu.memory_space<vmem>>, vector<1x2x32xf32>
      %666 = vector.shape_cast %665 : vector<1x2x32xf32> to vector<2x32xf32>
      %667 = vector.shape_cast %638 : vector<2x32xf32> to vector<1x2x32xf32>
      tpu.vector_store %arg6[%c1_234, %c0_235, %c0_236], %667 {strides = array<i32>} : memref<2x2x32xf32, #tpu.memory_space<vmem>>, vector<1x2x32xf32>,
      %c0_237 = arith.constant 0 : index
      %c0_238 = arith.constant 0 : index
      %c0_239 = arith.constant 0 : index
      %668 = vector.load %arg7[%c0_237, %c0_238, %c0_239] : memref<2x2x32xf32, #tpu.memory_space<vmem>>, vector<1x2x32xf32>
      %669 = vector.shape_cast %668 : vector<1x2x32xf32> to vector<2x32xf32>
      %670 = vector.shape_cast %608 : vector<2x32xf32> to vector<1x2x32xf32>
      tpu.vector_store %arg7[%c0_237, %c0_238, %c0_239], %670 {strides = array<i32>} : memref<2x2x32xf32, #tpu.memory_space<vmem>>, vector<1x2x32xf32>,
      %c1_240 = arith.constant 1 : index
      %c0_241 = arith.constant 0 : index
      %c0_242 = arith.constant 0 : index
      %671 = vector.load %arg7[%c1_240, %c0_241, %c0_242] : memref<2x2x32xf32, #tpu.memory_space<vmem>>, vector<1x2x32xf32>
      %672 = vector.shape_cast %671 : vector<1x2x32xf32> to vector<2x32xf32>
      %673 = vector.shape_cast %636 : vector<2x32xf32> to vector<1x2x32xf32>
      tpu.vector_store %arg7[%c1_240, %c0_241, %c0_242], %673 {strides = array<i32>} : memref<2x2x32xf32, #tpu.memory_space<vmem>>, vector<1x2x32xf32>,
    } else {
    }
    return
  }
  func.func @transform_0(%arg0: i32) -> (i32, i32, i32, i32) {
    %c0_i32 = arith.constant 0 : i32
    %c0_i32_0 = arith.constant 0 : i32
    %c0_i32_1 = arith.constant 0 : i32
    %c0_i32_2 = arith.constant 0 : i32
    return %c0_i32, %arg0, %c0_i32_0, %c0_i32_1 : i32, i32, i32, i32
  }
  func.func @transform_1(%arg0: i32) -> (i32, i32, i32, i32) {
    %c0_i32 = arith.constant 0 : i32
    %0 = arith.subi %c0_i32, %arg0 : i32
    %c1_i32 = arith.constant 1 : i32
    %c0_i32_0 = arith.constant 0 : i32
    %c0_i32_1 = arith.constant 0 : i32
    %c0_i32_2 = arith.constant 0 : i32
    return %c1_i32, %0, %c0_i32_0, %c0_i32_1 : i32, i32, i32, i32
  }
  func.func @transform_2(%arg0: i32) -> (i32, i32, i32) {
    %c0_i32 = arith.constant 0 : i32
    %c0_i32_0 = arith.constant 0 : i32
    %c0_i32_1 = arith.constant 0 : i32
    %c0_i32_2 = arith.constant 0 : i32
    return %c0_i32, %c0_i32_0, %c0_i32_1 : i32, i32, i32
  }
  func.func @transform_3(%arg0: i32) -> (i32, i32, i32) {
    %c0_i32 = arith.constant 0 : i32
    %c0_i32_0 = arith.constant 0 : i32
    %c0_i32_1 = arith.constant 0 : i32
    return %arg0, %c0_i32, %c0_i32_0 : i32, i32, i32
  }
  func.func @transform_4(%arg0: i32) -> (i32, i32, i32) {
    %c0_i32 = arith.constant 0 : i32
    %0 = arith.subi %c0_i32, %arg0 : i32
    %c0_i32_0 = arith.constant 0 : i32
    %c0_i32_1 = arith.constant 0 : i32
    %c0_i32_2 = arith.constant 0 : i32
    return %0, %c0_i32_0, %c0_i32_1 : i32, i32, i32
  }
  func.func @transform_5(%arg0: i32) -> (i32, i32, i32) {
    %c0_i32 = arith.constant 0 : i32
    %c0_i32_0 = arith.constant 0 : i32
    %c0_i32_1 = arith.constant 0 : i32
    %c0_i32_2 = arith.constant 0 : i32
    return %c0_i32, %c0_i32_0, %c0_i32_1 : i32, i32, i32
  }
  func.func @transform_6(%arg0: i32) -> (i32, i32, i32) {
    %c0_i32 = arith.constant 0 : i32
    %c0_i32_0 = arith.constant 0 : i32
    %c0_i32_1 = arith.constant 0 : i32
    %c0_i32_2 = arith.constant 0 : i32
    return %c0_i32, %c0_i32_0, %c0_i32_1 : i32, i32, i32
  }
}

</mosaic_0001>

<llo_original>
// kernel: rnn_encoder_forward.2
$region0: #{rnn_encoder_forward.2}
  #allocation0 [shape = 'u32[]', space=smem, size = 0x4, offset = 0x4, fixed_abs, tag = 'smem constant byte address 0x4 - core index']
  #allocation1 [shape = 'u32[144,128]{1,0:T(1,128)}', space=vmem, size = 0x12000, scoped, tag = 'internal scratch']
  %s0 = inlined_call_operand.vmem [shape: bf16[16,16], index: 0, kind: input, shape index: {}]
  %s1 = inlined_call_operand.vmem [shape: bf16[16,256], index: 1, kind: input, shape index: {}]
  %s2 = inlined_call_operand.vmem [shape: f32[1,256], index: 2, kind: input, shape index: {}]
  %s3 = inlined_call_operand.vmem [shape: bf16[2,16,128], index: 3, kind: output, shape index: {}]
  %s4 = sld [smem:[#allocation0]]
  $region22: #{rnn_encoder_forward.2} parent=0
    _
  %s6 = ssub.s32 1, %s4
  %s7 = scalar_select 0, %s6, %s4
  // Predicated region
  $region2: #{rnn_encoder_forward.2} parent=0 // pred_check
    _
  $region3: #{rnn_encoder_forward.2} parent=0 // pred_check_branch
    %9 = sbr.rel (0) target = $region5
  $region4: #{rnn_encoder_forward.2} parent=0 // pred_region
    _
  $region5: #{rnn_encoder_forward.2} parent=0 // pred_fallthru
    _
  // Predicated region
  $region6: #{rnn_encoder_forward.2} parent=0 // pred_check
    _
  $region7: #{rnn_encoder_forward.2} parent=0 // pred_check_branch
    %11 = sbr.rel (0) target = $region9
  $region8: #{rnn_encoder_forward.2} parent=0 // pred_region
    _
  $region9: #{rnn_encoder_forward.2} parent=0 // pred_fallthru
    _
  // Predicated region
  $region10: #{rnn_encoder_forward.2} parent=0 // pred_check
    _
  $region11: #{rnn_encoder_forward.2} parent=0 // pred_check_branch
    %13 = sbr.rel (0) target = $region13
  $region12: #{rnn_encoder_forward.2} parent=0 // pred_region
    _
  $region13: #{rnn_encoder_forward.2} parent=0 // pred_fallthru
    _
  %v15 = vld [vmem:[%s0] sm:$0xf]
  %v16 = vld [vmem:[%s0 + $0x4] sm:$0xf]
  %v17 = vld [vmem:[%s1] sm:$0xff]
  %v18 = vld [vmem:[%s1 + $0x8] sm:$0xff]
  %v19 = vld [vmem:[%s2] sm:$0x3]
  %v21 = vlaneseq
  %v22 = vshrl.u32 %v21, 7
  %v23 = vsub.s32 0, %v22
  %v24 = vrot.slane %v19, %v23
  %v25 = vlaneseq
  %v26 = vshrl.u32 %v25, 7
  %v27 = vsub.s32 1, %v26
  %v28 = vrot.slane %v19, %v27
  %v33 = vunpack.c.l.b16 %v15
  %v34 = vunpack.c.l.b16 %v16
  %v35 = vpack.c.b16 %v34, %v33
  %v38 = vunpack.c.l.b16 %v17
  %v39 = vunpack.c.h.b16 %v17
  %v40 = vunpack.c.l.b16 %v18
  %v41 = vunpack.c.h.b16 %v18
  %v42 = vpack.c.b16 %v40, %v38
  %v43 = vpack.c.b16 %v41, %v39
  %vm46 = vcmask 130048
  %v48 = vsel %vm46, %v35, 0
  %50 = vmatprep.subr.bf16.mxu0 %v43
  %51 = vmatpush1.bf16.msra.mxu0 %v42
  %52 = vmatprep.subr.bf16.mxu0 0
  %53 = vmatpush1.bf16.msra.mxu0 0
  %54 = vmatprep.subr.bf16.mxu0 0
  %55 = vmatpush1.bf16.msra.mxu0 0
  %56 = vmatprep.subr.bf16.mxu0 0
  %57 = vmatpush1.bf16.msra.mxu0 0
  %58 = vmatprep.subr.bf16.mxu0 0
  %59 = vmatpush1.bf16.msra.mxu0 0
  %60 = vmatprep.subr.bf16.mxu0 0
  %61 = vmatpush1.bf16.msra.mxu0 0
  %62 = vmatprep.subr.bf16.mxu0 0
  %63 = vmatpush1.bf16.msra.mxu0 0
  %64 = vmatprep.subr.bf16.mxu0 0
  %65 = vmatpush1.bf16.msra.mxu0 0
  %66 = vmatprep.subr.bf16.mxu0 0
  %67 = vmatpush1.bf16.msra.mxu0 0
  %68 = vmatprep.subr.bf16.mxu0 0
  %69 = vmatpush1.bf16.msra.mxu0 0
  %70 = vmatprep.subr.bf16.mxu0 0
  %71 = vmatpush1.bf16.msra.mxu0 0
  %72 = vmatprep.subr.bf16.mxu0 0
  %73 = vmatpush1.bf16.msra.mxu0 0
  %74 = vmatprep.subr.bf16.mxu0 0
  %75 = vmatpush1.bf16.msra.mxu0 0
  %76 = vmatprep.subr.bf16.mxu0 0
  %77 = vmatpush1.bf16.msra.mxu0 0
  %78 = vmatprep.subr.bf16.mxu0 0
  %79 = vmatpush1.bf16.msra.mxu0 0
  %80 = vmatprep.subr.bf16.mxu0 0
  %81 = vmatpush1.bf16.msra.mxu0 0
  %82 = vmatprep.mubr.bf16.mxu0 0
  %83 = vmatmul.mubr.bf16.gmra.mrb[0].mxu0 %v48
  %v84 = vpop.f32.mrb[0].mxu0
  %v85 = vadd.f32 %v24, %v84
  %v86 = vpop.f32.mrb[0].mxu0
  %v87 = vadd.f32 %v28, %v86
  %v88 = vpop.f32.mrb[0].mxu0
  %v89 = vadd.f32 %v24, %v88
  %v90 = vpop.f32.mrb[0].mxu0
  %v91 = vadd.f32 %v28, %v90
  %92 = vdwg.mxu0
  %v93 = vpack.c.bf16 %v89, %v85
  %v95 = vunpack.c.l.b16 %v93
  %v96 = vunpack.c.h.b16 %v93
  %v97 = vpack.c.b16 %v95, %v95
  %v98 = vpack.c.b16 %v96, %v96
  %101 = vst [vmem:[%s3] sm:$0xf] %v97
  %102 = vst [vmem:[%s3 + $0x4] sm:$0xf] %v98
  %v103 = vpack.c.bf16 %v91, %v87
  %v105 = vunpack.c.l.b16 %v103
  %v106 = vunpack.c.h.b16 %v103
  %v107 = vpack.c.b16 %v105, %v105
  %v108 = vpack.c.b16 %v106, %v106
  %s111 = scalar_lea.vmem %s3, 8
  %112 = vst [vmem:[%s111] sm:$0xf] %v107
  %113 = vst [vmem:[%s111 + $0x4] sm:$0xf] %v108
  // Predicated region
  $region14: #{rnn_encoder_forward.2} parent=0 // pred_check
    _
  $region15: #{rnn_encoder_forward.2} parent=0 // pred_check_branch
    %115 = sbr.rel (0) target = $region17
  $region16: #{rnn_encoder_forward.2} parent=0 // pred_region
    _
  $region17: #{rnn_encoder_forward.2} parent=0 // pred_fallthru
    _
  // Predicated region
  $region18: #{rnn_encoder_forward.2} parent=0 // pred_check
    _
  $region19: #{rnn_encoder_forward.2} parent=0 // pred_check_branch
    %117 = sbr.rel (0) target = $region21
  $region20: #{rnn_encoder_forward.2} parent=0 // pred_region
    _
  $region21: #{rnn_encoder_forward.2} parent=0 // pred_fallthru
    _

// kernel: rnn_encoder_forward.3
$region0: #{rnn_encoder_forward.3}
  #allocation0 [shape = 'u32[]', space=smem, size = 0x4, offset = 0x4, fixed_abs, tag = 'smem constant byte address 0x4 - core index']
  #allocation1 [shape = 'u32[144,128]{1,0:T(1,128)}', space=vmem, size = 0x12000, scoped, tag = 'internal scratch']
  #allocation2 [shape = 'f32[2,2,32]{2,1,0:T(2,128)}', space=vmem, size = 0x800, scoped, tag = 'scratch operand']
  #allocation3 [shape = 'f32[2,2,32]{2,1,0:T(2,128)}', space=vmem, size = 0x800, scoped, tag = 'scratch operand']
  %s0 = inlined_call_operand.vmem [shape: bf16[2,8,2,128], index: 0, kind: input, shape index: {}, may-alias: {0,1}]
  %s1 = inlined_call_operand.vmem [shape: bf16[2,8,2,128], index: 1, kind: input, shape index: {}, may-alias: {0,1}]
  %s2 = inlined_call_operand.vmem [shape: bf16[2,32,128], index: 2, kind: input, shape index: {}]
  %s3 = inlined_call_operand.vmem [shape: f32[8,2,32], index: 3, kind: output, shape index: {0}]
  %s4 = inlined_call_operand.vmem [shape: f32[8,2,32], index: 4, kind: output, shape index: {1}]
  %s5 = inlined_call_operand.vmem [shape: f32[2,2,32], index: 5, kind: output, shape index: {2}]
  %s6 = inlined_call_operand.vmem [shape: f32[2,2,32], index: 6, kind: output, shape index: {3}]
  %7 = xla_tuple %s3, %s4, %s5, %s6
  %s8 = sld [smem:[#allocation0]]
  $region54: #{rnn_encoder_forward.3} parent=0
    _
  %s10 = ssub.s32 1, %s8
  %s11 = scalar_select 0, %s10, %s8
  // Predicated region
  $region2: #{rnn_encoder_forward.3} parent=0 // pred_check
    _
  $region3: #{rnn_encoder_forward.3} parent=0 // pred_check_branch
    %13 = sbr.rel (0) target = $region5
  $region4: #{rnn_encoder_forward.3} parent=0 // pred_region
    _
  $region5: #{rnn_encoder_forward.3} parent=0 // pred_fallthru
    _
  // Predicated region
  $region6: #{rnn_encoder_forward.3} parent=0 // pred_check
    _
  $region7: #{rnn_encoder_forward.3} parent=0 // pred_check_branch
    %15 = sbr.rel (0) target = $region9
  $region8: #{rnn_encoder_forward.3} parent=0 // pred_region
    %s16 = ssub.s32 0, 0
    %s17 = smul.u32 8, %s16
    %p18 = scmp.lt.s32.totalorder %s17, 7
    %s19 = scalar_select %p18, %s17, 7
    %s20 = sadd.s32 %s19, 8
    %s21 = scalar_lea.vmem %s1, %s20
    %s22 = ssub.s32 0, 0
    %s23 = smul.u32 8, %s22
  $region9: #{rnn_encoder_forward.3} parent=0 // pred_fallthru
    _
  // Predicated region
  $region10: #{rnn_encoder_forward.3} parent=0 // pred_check
    _
  $region11: #{rnn_encoder_forward.3} parent=0 // pred_check_branch
    %25 = sbr.rel (0) target = $region13
  $region12: #{rnn_encoder_forward.3} parent=0 // pred_region
    _
  $region13: #{rnn_encoder_forward.3} parent=0 // pred_fallthru
    _
  %s26 = ssub.s32 0, 0
  %s27 = smul.u32 8, %s26
  %p28 = scmp.lt.s32.totalorder %s27, 7
  %s29 = scalar_select %p28, %s27, 7
  %s30 = sadd.s32 %s29, 8
  %s31 = scalar_lea.vmem %s1, %s30
  %s32 = ssub.s32 0, 0
  %s33 = smul.u32 8, %s32
  %p34 = scmp.lt.s32.totalorder %s33, 7
  %s35 = scalar_select %p34, %s33, 7
  %s36 = smul.addr %s35, 2
  %s37 = scalar_lea.vmem %s4, %s36
  %s38 = ssub.s32 0, 0
  %s39 = smul.u32 8, %s38
  %p40 = scmp.lt.s32.totalorder %s39, 7
  %s41 = scalar_select %p40, %s39, 7
  %s42 = sadd.s32 %s41, 8
  %s43 = scalar_lea.vmem %s1, %s42
  %s44 = ssub.s32 0, 0
  %s45 = smul.u32 8, %s44
  %s46 = ssub.s32 0, 0
  %s47 = smul.u32 8, %s46
  %p48 = scmp.lt.s32.totalorder %s47, 7
  %s49 = scalar_select %p48, %s47, 7
  %s50 = smul.addr %s49, 2
  %s51 = scalar_lea.vmem %s4, %s50
  %s52 = ssub.s32 0, 0
  %s53 = smul.u32 8, %s52
  %p55 = scmp.eq.s32.totalorder 0, 0
  // Predicated region
  $region14: #{rnn_encoder_forward.3} parent=0 // pred_check
    %p56 = pneg %p55
  $region15: #{rnn_encoder_forward.3} parent=0 // pred_check_branch
    %58 = sbr.rel (%p56) target = $region17
  $region16: #{rnn_encoder_forward.3} parent=0 // pred_region
    %vm59 = vcmask 254976
    %60 = vst.msk [vmem:[#allocation2] sm:$0x3] %vm59, 0.0
    %61 = vst.msk [vmem:[#allocation2 + $0x2] sm:$0x3] %vm59, 0.0
    %62 = vst.msk [vmem:[#allocation3] sm:$0x3] %vm59, 0.0
    %63 = vst.msk [vmem:[#allocation3 + $0x2] sm:$0x3] %vm59, 0.0
  $region17: #{rnn_encoder_forward.3} parent=0 // pred_fallthru
    _
  %v64 = vld [vmem:[%s2] sm:$0xf]
  %v65 = vld [vmem:[%s2 + $0x4] sm:$0xf]
  %v66 = vld [vmem:[%s2 + $0x8] sm:$0xf]
  %v67 = vld [vmem:[%s2 + $0xc] sm:$0xf]
  %s68 = scalar_lea.vmem %s2, 16
  %v69 = vld [vmem:[%s68] sm:$0xf]
  %v70 = vld [vmem:[%s68 + $0x4] sm:$0xf]
  %v71 = vld [vmem:[%s68 + $0x8] sm:$0xf]
  %v72 = vld [vmem:[%s68 + $0xc] sm:$0xf]
  %v73 = vld [vmem:[#allocation2] sm:$0x3]
  %v74 = vld [vmem:[#allocation3] sm:$0x3]
  %s75 = scalar_lea.vmem [#allocation2], 2
  %v76 = vld [vmem:[%s75] sm:$0x3]
  %s77 = scalar_lea.vmem [#allocation3], 2
  %v78 = vld [vmem:[%s77] sm:$0x3]
  %v79 = vld [vmem:[%s0] sm:$0x1]
  %v80 = vunpack.c.l.bf16 %v79
  %v81 = vpack.c.bf16 %v73, %v73
  %v86 = vunpack.c.l.b16 %v64
  %v87 = vunpack.c.l.b16 %v65
  %v88 = vunpack.c.l.b16 %v66
  %v89 = vunpack.c.l.b16 %v67
  %v90 = vpack.c.b16 %v87, %v86
  %v91 = vpack.c.b16 %v89, %v88
  %vm94 = vcmask 261120
  %v96 = vsel %vm94, %v81, 0
  %98 = vmatprep.subr.bf16.mxu0 0
  %99 = vmatpush1.bf16.msra.mxu0 %v90
  %100 = vmatprep.subr.bf16.mxu0 0
  %101 = vmatpush1.bf16.msra.mxu0 %v91
  %102 = vmatprep.subr.bf16.mxu0 0
  %103 = vmatpush1.bf16.msra.mxu0 0
  %104 = vmatprep.subr.bf16.mxu0 0
  %105 = vmatpush1.bf16.msra.mxu0 0
  %106 = vmatprep.subr.bf16.mxu0 0
  %107 = vmatpush1.bf16.msra.mxu0 0
  %108 = vmatprep.subr.bf16.mxu0 0
  %109 = vmatpush1.bf16.msra.mxu0 0
  %110 = vmatprep.subr.bf16.mxu0 0
  %111 = vmatpush1.bf16.msra.mxu0 0
  %112 = vmatprep.subr.bf16.mxu0 0
  %113 = vmatpush1.bf16.msra.mxu0 0
  %114 = vmatprep.subr.bf16.mxu0 0
  %115 = vmatpush1.bf16.msra.mxu0 0
  %116 = vmatprep.subr.bf16.mxu0 0
  %117 = vmatpush1.bf16.msra.mxu0 0
  %118 = vmatprep.subr.bf16.mxu0 0
  %119 = vmatpush1.bf16.msra.mxu0 0
  %120 = vmatprep.subr.bf16.mxu0 0
  %121 = vmatpush1.bf16.msra.mxu0 0
  %122 = vmatprep.subr.bf16.mxu0 0
  %123 = vmatpush1.bf16.msra.mxu0 0
  %124 = vmatprep.subr.bf16.mxu0 0
  %125 = vmatpush1.bf16.msra.mxu0 0
  %126 = vmatprep.subr.bf16.mxu0 0
  %127 = vmatpush1.bf16.msra.mxu0 0
  %128 = vmatprep.subr.bf16.mxu0 0
  %129 = vmatpush1.bf16.msra.mxu0 0
  %130 = vmatprep.mubr.bf16.mxu0 0
  %131 = vmatmul.mubr.bf16.gmra.mrb[0].mxu0 %v96
  %v132 = vpop.f32.mrb[0].mxu0
  %v133 = vadd.f32 0.0, %v132
  %v134 = vpop.f32.mrb[0].mxu0
  %v135 = vpop.f32.mrb[0].mxu0
  %v136 = vpop.f32.mrb[0].mxu0
  %137 = vdwg.mxu0
  %v138 = vadd.f32 %v80, %v133
  %s139 = scalar_lea.vmem %s43, 7
  %v140 = vld [vmem:[%s139] sm:$0x1]
  %v141 = vunpack.c.l.bf16 %v140
  %v142 = vpack.c.bf16 %v76, %v76
  %v147 = vunpack.c.l.b16 %v69
  %v148 = vunpack.c.l.b16 %v70
  %v149 = vunpack.c.l.b16 %v71
  %v150 = vunpack.c.l.b16 %v72
  %v151 = vpack.c.b16 %v148, %v147
  %v152 = vpack.c.b16 %v150, %v149
  %v156 = vsel %vm94, %v142, 0
  %158 = vmatprep.subr.bf16.mxu0 0
  %159 = vmatpush1.bf16.msra.mxu0 %v151
  %160 = vmatprep.subr.bf16.mxu0 0
  %161 = vmatpush1.bf16.msra.mxu0 %v152
  %162 = vmatprep.subr.bf16.mxu0 0
  %163 = vmatpush1.bf16.msra.mxu0 0
  %164 = vmatprep.subr.bf16.mxu0 0
  %165 = vmatpush1.bf16.msra.mxu0 0
  %166 = vmatprep.subr.bf16.mxu0 0
  %167 = vmatpush1.bf16.msra.mxu0 0
  %168 = vmatprep.subr.bf16.mxu0 0
  %169 = vmatpush1.bf16.msra.mxu0 0
  %170 = vmatprep.subr.bf16.mxu0 0
  %171 = vmatpush1.bf16.msra.mxu0 0
  %172 = vmatprep.subr.bf16.mxu0 0
  %173 = vmatpush1.bf16.msra.mxu0 0
  %174 = vmatprep.subr.bf16.mxu0 0
  %175 = vmatpush1.bf16.msra.mxu0 0
  %176 = vmatprep.subr.bf16.mxu0 0
  %177 = vmatpush1.bf16.msra.mxu0 0
  %178 = vmatprep.subr.bf16.mxu0 0
  %179 = vmatpush1.bf16.msra.mxu0 0
  %180 = vmatprep.subr.bf16.mxu0 0
  %181 = vmatpush1.bf16.msra.mxu0 0
  %182 = vmatprep.subr.bf16.mxu0 0
  %183 = vmatpush1.bf16.msra.mxu0 0
  %184 = vmatprep.subr.bf16.mxu0 0
  %185 = vmatpush1.bf16.msra.mxu0 0
  %186 = vmatprep.subr.bf16.mxu0 0
  %187 = vmatpush1.bf16.msra.mxu0 0
  %188 = vmatprep.subr.bf16.mxu0 0
  %189 = vmatpush1.bf16.msra.mxu0 0
  %190 = vmatprep.mubr.bf16.mxu0 0
  %191 = vmatmul.mubr.bf16.gmra.mrb[0].mxu0 %v156
  %v192 = vpop.f32.mrb[0].mxu0
  %v193 = vadd.f32 0.0, %v192
  %v194 = vpop.f32.mrb[0].mxu0
  %v195 = vpop.f32.mrb[0].mxu0
  %v196 = vpop.f32.mrb[0].mxu0
  %197 = vdwg.mxu0
  %v198 = vadd.f32 %v141, %v193
  %v199 = vsub.f32 0.0, %v138
  %v200 = vmul.f32 %v199, 1.442695
  %v201 = vpow.pop %v200
  %v202 = vadd.f32 %v201, 1.0
  %v203 = vrcp.pop %v202
  %v204 = vtanh.pop %v138
  %v207 = vunpack.c.l.s4 1983009808
  %v208 = vunpack.c.0.s8 %v207
  %v209 = vlaneseq
  %v210 = vshrl.u32 %v209, 7
  %v211 = vsub.s32 %v208, %v210
  %v212 = vrot.slane %v74, %v211
  %213 = vrot.lane.b32.xlu0 %v212, 32
  %v214 = vpop.permute.xlu0 %213
  %v216 = vmul.f32 %v203, %v214
  %218 = vrot.lane.b32.xlu0 %v204, 64
  %v219 = vpop.permute.xlu0 %218
  %v221 = vmul.f32 %v203, %v219
  %223 = vrot.lane.b32.xlu0 %v221, 32
  %v224 = vpop.permute.xlu0 %223
  %v226 = vadd.f32 %v216, %v224
  %v227 = vtanh.pop %v226
  %229 = vrot.lane.b32.xlu0 %v227, 64
  %v230 = vpop.permute.xlu0 %229
  %v232 = vmul.f32 %v203, %v230
  %v233 = vsub.f32 0.0, %v198
  %v234 = vmul.f32 %v233, 1.442695
  %v235 = vpow.pop %v234
  %v236 = vadd.f32 %v235, 1.0
  %v237 = vrcp.pop %v236
  %v238 = vtanh.pop %v198
  %v241 = vunpack.c.l.s4 1983009808
  %v242 = vunpack.c.0.s8 %v241
  %v243 = vlaneseq
  %v244 = vshrl.u32 %v243, 7
  %v245 = vsub.s32 %v242, %v244
  %v246 = vrot.slane %v78, %v245
  %247 = vrot.lane.b32.xlu0 %v246, 32
  %v248 = vpop.permute.xlu0 %247
  %v250 = vmul.f32 %v237, %v248
  %252 = vrot.lane.b32.xlu0 %v238, 64
  %v253 = vpop.permute.xlu0 %252
  %v255 = vmul.f32 %v237, %v253
  %257 = vrot.lane.b32.xlu0 %v255, 32
  %v258 = vpop.permute.xlu0 %257
  %v260 = vadd.f32 %v250, %v258
  %v261 = vtanh.pop %v260
  %263 = vrot.lane.b32.xlu0 %v261, 64
  %v264 = vpop.permute.xlu0 %263
  %v266 = vmul.f32 %v237, %v264
  %v269 = vunpack.c.l.s4 1983009808
  %v270 = vunpack.c.0.s8 %v269
  %v271 = vlaneseq
  %v272 = vshrl.u32 %v271, 7
  %v273 = vsub.s32 %v270, %v272
  %v274 = vrot.slane %v232, %v273
  %275 = vrot.lane.b32.xlu0 %v274, 32
  %v276 = vpop.permute.xlu0 %275
  %vm278 = vcmask 254976
  %279 = vst.msk [vmem:[%s3] sm:$0x3] %vm278, %v276
  %v282 = vunpack.c.l.s4 1983009808
  %v283 = vunpack.c.0.s8 %v282
  %v284 = vlaneseq
  %v285 = vshrl.u32 %v284, 7
  %v286 = vsub.s32 %v283, %v285
  %v287 = vrot.slane %v266, %v286
  %288 = vrot.lane.b32.xlu0 %v287, 32
  %v289 = vpop.permute.xlu0 %288
  %s291 = scalar_lea.vmem %s51, 14
  %292 = vst.msk [vmem:[%s291] sm:$0x3] %vm278, %v289
  %s293 = scalar_lea.vmem %s0, 1
  %v294 = vld [vmem:[%s293] sm:$0x1]
  %v295 = vunpack.c.l.bf16 %v294
  %v296 = vpack.c.bf16 %v232, %v232
  %298 = vrot.lane.b32.xlu0 %v296, 32
  %v299 = vpop.permute.xlu0 %298
  %v301 = vsel %vm94, %v299, 0
  %303 = vmatprep.subr.bf16.mxu0 0
  %304 = vmatpush1.bf16.msra.mxu0 %v90
  %305 = vmatprep.subr.bf16.mxu0 0
  %306 = vmatpush1.bf16.msra.mxu0 %v91
  %307 = vmatprep.subr.bf16.mxu0 0
  %308 = vmatpush1.bf16.msra.mxu0 0
  %309 = vmatprep.subr.bf16.mxu0 0
  %310 = vmatpush1.bf16.msra.mxu0 0
  %311 = vmatprep.subr.bf16.mxu0 0
  %312 = vmatpush1.bf16.msra.mxu0 0
  %313 = vmatprep.subr.bf16.mxu0 0
  %314 = vmatpush1.bf16.msra.mxu0 0
  %315 = vmatprep.subr.bf16.mxu0 0
  %316 = vmatpush1.bf16.msra.mxu0 0
  %317 = vmatprep.subr.bf16.mxu0 0
  %318 = vmatpush1.bf16.msra.mxu0 0
  %319 = vmatprep.subr.bf16.mxu0 0
  %320 = vmatpush1.bf16.msra.mxu0 0
  %321 = vmatprep.subr.bf16.mxu0 0
  %322 = vmatpush1.bf16.msra.mxu0 0
  %323 = vmatprep.subr.bf16.mxu0 0
  %324 = vmatpush1.bf16.msra.mxu0 0
  %325 = vmatprep.subr.bf16.mxu0 0
  %326 = vmatpush1.bf16.msra.mxu0 0
  %327 = vmatprep.subr.bf16.mxu0 0
  %328 = vmatpush1.bf16.msra.mxu0 0
  %329 = vmatprep.subr.bf16.mxu0 0
  %330 = vmatpush1.bf16.msra.mxu0 0
  %331 = vmatprep.subr.bf16.mxu0 0
  %332 = vmatpush1.bf16.msra.mxu0 0
  %333 = vmatprep.subr.bf16.mxu0 0
  %334 = vmatpush1.bf16.msra.mxu0 0
  %335 = vmatprep.mubr.bf16.mxu0 0
  %336 = vmatmul.mubr.bf16.gmra.mrb[0].mxu0 %v301
  %v337 = vpop.f32.mrb[0].mxu0
  %v338 = vadd.f32 0.0, %v337
  %v339 = vpop.f32.mrb[0].mxu0
  %v340 = vpop.f32.mrb[0].mxu0
  %v341 = vpop.f32.mrb[0].mxu0
  %342 = vdwg.mxu0
  %v343 = vadd.f32 %v295, %v338
  %s344 = scalar_lea.vmem %s43, 6
  %v345 = vld [vmem:[%s344] sm:$0x1]
  %v346 = vunpack.c.l.bf16 %v345
  %v347 = vpack.c.bf16 %v266, %v266
  %349 = vrot.lane.b32.xlu0 %v347, 32
  %v350 = vpop.permute.xlu0 %349
  %v352 = vsel %vm94, %v350, 0
  %354 = vmatprep.subr.bf16.mxu0 0
  %355 = vmatpush1.bf16.msra.mxu0 %v151
  %356 = vmatprep.subr.bf16.mxu0 0
  %357 = vmatpush1.bf16.msra.mxu0 %v152
  %358 = vmatprep.subr.bf16.mxu0 0
  %359 = vmatpush1.bf16.msra.mxu0 0
  %360 = vmatprep.subr.bf16.mxu0 0
  %361 = vmatpush1.bf16.msra.mxu0 0
  %362 = vmatprep.subr.bf16.mxu0 0
  %363 = vmatpush1.bf16.msra.mxu0 0
  %364 = vmatprep.subr.bf16.mxu0 0
  %365 = vmatpush1.bf16.msra.mxu0 0
  %366 = vmatprep.subr.bf16.mxu0 0
  %367 = vmatpush1.bf16.msra.mxu0 0
  %368 = vmatprep.subr.bf16.mxu0 0
  %369 = vmatpush1.bf16.msra.mxu0 0
  %370 = vmatprep.subr.bf16.mxu0 0
  %371 = vmatpush1.bf16.msra.mxu0 0
  %372 = vmatprep.subr.bf16.mxu0 0
  %373 = vmatpush1.bf16.msra.mxu0 0
  %374 = vmatprep.subr.bf16.mxu0 0
  %375 = vmatpush1.bf16.msra.mxu0 0
  %376 = vmatprep.subr.bf16.mxu0 0
  %377 = vmatpush1.bf16.msra.mxu0 0
  %378 = vmatprep.subr.bf16.mxu0 0
  %379 = vmatpush1.bf16.msra.mxu0 0
  %380 = vmatprep.subr.bf16.mxu0 0
  %381 = vmatpush1.bf16.msra.mxu0 0
  %382 = vmatprep.subr.bf16.mxu0 0
  %383 = vmatpush1.bf16.msra.mxu0 0
  %384 = vmatprep.subr.bf16.mxu0 0
  %385 = vmatpush1.bf16.msra.mxu0 0
  %386 = vmatprep.mubr.bf16.mxu0 0
  %387 = vmatmul.mubr.bf16.gmra.mrb[0].mxu0 %v352
  %v388 = vpop.f32.mrb[0].mxu0
  %v389 = vadd.f32 0.0, %v388
  %v390 = vpop.f32.mrb[0].mxu0
  %v391 = vpop.f32.mrb[0].mxu0
  %v392 = vpop.f32.mrb[0].mxu0
  %393 = vdwg.mxu0
  %v394 = vadd.f32 %v346, %v389
  %v395 = vsub.f32 0.0, %v343
  %v396 = vmul.f32 %v395, 1.442695
  %v397 = vpow.pop %v396
  %v398 = vadd.f32 %v397, 1.0
  %v399 = vrcp.pop %v398
  %v400 = vtanh.pop %v343
  %v401 = vmul.f32 %v399, %v226
  %403 = vrot.lane.b32.xlu0 %v400, 64
  %v404 = vpop.permute.xlu0 %403
  %v406 = vmul.f32 %v399, %v404
  %408 = vrot.lane.b32.xlu0 %v406, 32
  %v409 = vpop.permute.xlu0 %408
  %v411 = vadd.f32 %v401, %v409
  %v412 = vtanh.pop %v411
  %414 = vrot.lane.b32.xlu0 %v412, 64
  %v415 = vpop.permute.xlu0 %414
  %v417 = vmul.f32 %v399, %v415
  %v418 = vsub.f32 0.0, %v394
  %v419 = vmul.f32 %v418, 1.442695
  %v420 = vpow.pop %v419
  %v421 = vadd.f32 %v420, 1.0
  %v422 = vrcp.pop %v421
  %v423 = vtanh.pop %v394
  %v424 = vmul.f32 %v422, %v260
  %426 = vrot.lane.b32.xlu0 %v423, 64
  %v427 = vpop.permute.xlu0 %426
  %v429 = vmul.f32 %v422, %v427
  %431 = vrot.lane.b32.xlu0 %v429, 32
  %v432 = vpop.permute.xlu0 %431
  %v434 = vadd.f32 %v424, %v432
  %v435 = vtanh.pop %v434
  %437 = vrot.lane.b32.xlu0 %v435, 64
  %v438 = vpop.permute.xlu0 %437
  %v440 = vmul.f32 %v422, %v438
  %v443 = vunpack.c.l.s4 1983009808
  %v444 = vunpack.c.0.s8 %v443
  %v445 = vlaneseq
  %v446 = vshrl.u32 %v445, 7
  %v447 = vsub.s32 %v444, %v446
  %v448 = vrot.slane %v417, %v447
  %449 = vrot.lane.b32.xlu0 %v448, 32
  %v450 = vpop.permute.xlu0 %449
  %s452 = scalar_lea.vmem %s3, 2
  %453 = vst.msk [vmem:[%s452] sm:$0x3] %vm278, %v450
  %v456 = vunpack.c.l.s4 1983009808
  %v457 = vunpack.c.0.s8 %v456
  %v458 = vlaneseq
  %v459 = vshrl.u32 %v458, 7
  %v460 = vsub.s32 %v457, %v459
  %v461 = vrot.slane %v440, %v460
  %462 = vrot.lane.b32.xlu0 %v461, 32
  %v463 = vpop.permute.xlu0 %462
  %s465 = scalar_lea.vmem %s51, 12
  %466 = vst.msk [vmem:[%s465] sm:$0x3] %vm278, %v463
  %s467 = scalar_lea.vmem %s0, 2
  %v468 = vld [vmem:[%s467] sm:$0x1]
  %v469 = vunpack.c.l.bf16 %v468
  %v470 = vpack.c.bf16 %v417, %v417
  %472 = vrot.lane.b32.xlu0 %v470, 32
  %v473 = vpop.permute.xlu0 %472
  %v475 = vsel %vm94, %v473, 0
  %477 = vmatprep.subr.bf16.mxu0 0
  %478 = vmatpush1.bf16.msra.mxu0 %v90
  %479 = vmatprep.subr.bf16.mxu0 0
  %480 = vmatpush1.bf16.msra.mxu0 %v91
  %481 = vmatprep.subr.bf16.mxu0 0
  %482 = vmatpush1.bf16.msra.mxu0 0
  %483 = vmatprep.subr.bf16.mxu0 0
  %484 = vmatpush1.bf16.msra.mxu0 0
  %485 = vmatprep.subr.bf16.mxu0 0
  %486 = vmatpush1.bf16.msra.mxu0 0
  %487 = vmatprep.subr.bf16.mxu0 0
  %488 = vmatpush1.bf16.msra.mxu0 0
  %489 = vmatprep.subr.bf16.mxu0 0
  %490 = vmatpush1.bf16.msra.mxu0 0
  %491 = vmatprep.subr.bf16.mxu0 0
  %492 = vmatpush1.bf16.msra.mxu0 0
  %493 = vmatprep.subr.bf16.mxu0 0
  %494 = vmatpush1.bf16.msra.mxu0 0
  %495 = vmatprep.subr.bf16.mxu0 0
  %496 = vmatpush1.bf16.msra.mxu0 0
  %497 = vmatprep.subr.bf16.mxu0 0
  %498 = vmatpush1.bf16.msra.mxu0 0
  %499 = vmatprep.subr.bf16.mxu0 0
  %500 = vmatpush1.bf16.msra.mxu0 0
  %501 = vmatprep.subr.bf16.mxu0 0
  %502 = vmatpush1.bf16.msra.mxu0 0
  %503 = vmatprep.subr.bf16.mxu0 0
  %504 = vmatpush1.bf16.msra.mxu0 0
  %505 = vmatprep.subr.bf16.mxu0 0
  %506 = vmatpush1.bf16.msra.mxu0 0
  %507 = vmatprep.subr.bf16.mxu0 0
  %508 = vmatpush1.bf16.msra.mxu0 0
  %509 = vmatprep.mubr.bf16.mxu0 0
  %510 = vmatmul.mubr.bf16.gmra.mrb[0].mxu0 %v475
  %v511 = vpop.f32.mrb[0].mxu0
  %v512 = vadd.f32 0.0, %v511
  %v513 = vpop.f32.mrb[0].mxu0
  %v514 = vpop.f32.mrb[0].mxu0
  %v515 = vpop.f32.mrb[0].mxu0
  %516 = vdwg.mxu0
  %v517 = vadd.f32 %v469, %v512
  %s518 = scalar_lea.vmem %s43, 5
  %v519 = vld [vmem:[%s518] sm:$0x1]
  %v520 = vunpack.c.l.bf16 %v519
  %v521 = vpack.c.bf16 %v440, %v440
  %523 = vrot.lane.b32.xlu0 %v521, 32
  %v524 = vpop.permute.xlu0 %523
  %v526 = vsel %vm94, %v524, 0
  %528 = vmatprep.subr.bf16.mxu0 0
  %529 = vmatpush1.bf16.msra.mxu0 %v151
  %530 = vmatprep.subr.bf16.mxu0 0
  %531 = vmatpush1.bf16.msra.mxu0 %v152
  %532 = vmatprep.subr.bf16.mxu0 0
  %533 = vmatpush1.bf16.msra.mxu0 0
  %534 = vmatprep.subr.bf16.mxu0 0
  %535 = vmatpush1.bf16.msra.mxu0 0
  %536 = vmatprep.subr.bf16.mxu0 0
  %537 = vmatpush1.bf16.msra.mxu0 0
  %538 = vmatprep.subr.bf16.mxu0 0
  %539 = vmatpush1.bf16.msra.mxu0 0
  %540 = vmatprep.subr.bf16.mxu0 0
  %541 = vmatpush1.bf16.msra.mxu0 0
  %542 = vmatprep.subr.bf16.mxu0 0
  %543 = vmatpush1.bf16.msra.mxu0 0
  %544 = vmatprep.subr.bf16.mxu0 0
  %545 = vmatpush1.bf16.msra.mxu0 0
  %546 = vmatprep.subr.bf16.mxu0 0
  %547 = vmatpush1.bf16.msra.mxu0 0
  %548 = vmatprep.subr.bf16.mxu0 0
  %549 = vmatpush1.bf16.msra.mxu0 0
  %550 = vmatprep.subr.bf16.mxu0 0
  %551 = vmatpush1.bf16.msra.mxu0 0
  %552 = vmatprep.subr.bf16.mxu0 0
  %553 = vmatpush1.bf16.msra.mxu0 0
  %554 = vmatprep.subr.bf16.mxu0 0
  %555 = vmatpush1.bf16.msra.mxu0 0
  %556 = vmatprep.subr.bf16.mxu0 0
  %557 = vmatpush1.bf16.msra.mxu0 0
  %558 = vmatprep.subr.bf16.mxu0 0
  %559 = vmatpush1.bf16.msra.mxu0 0
  %560 = vmatprep.mubr.bf16.mxu0 0
  %561 = vmatmul.mubr.bf16.gmra.mrb[0].mxu0 %v526
  %v562 = vpop.f32.mrb[0].mxu0
  %v563 = vadd.f32 0.0, %v562
  %v564 = vpop.f32.mrb[0].mxu0
  %v565 = vpop.f32.mrb[0].mxu0
  %v566 = vpop.f32.mrb[0].mxu0
  %567 = vdwg.mxu0
  %v568 = vadd.f32 %v520, %v563
  %v569 = vsub.f32 0.0, %v517
  %v570 = vmul.f32 %v569, 1.442695
  %v571 = vpow.pop %v570
  %v572 = vadd.f32 %v571, 1.0
  %v573 = vrcp.pop %v572
  %v574 = vtanh.pop %v517
  %v575 = vmul.f32 %v573, %v411
  %577 = vrot.lane.b32.xlu0 %v574, 64
  %v578 = vpop.permute.xlu0 %577
  %v580 = vmul.f32 %v573, %v578
  %582 = vrot.lane.b32.xlu0 %v580, 32
  %v583 = vpop.permute.xlu0 %582
  %v585 = vadd.f32 %v575, %v583
  %v586 = vtanh.pop %v585
  %588 = vrot.lane.b32.xlu0 %v586, 64
  %v589 = vpop.permute.xlu0 %588
  %v591 = vmul.f32 %v573, %v589
  %v592 = vsub.f32 0.0, %v568
  %v593 = vmul.f32 %v592, 1.442695
  %v594 = vpow.pop %v593
  %v595 = vadd.f32 %v594, 1.0
  %v596 = vrcp.pop %v595
  %v597 = vtanh.pop %v568
  %v598 = vmul.f32 %v596, %v434
  %600 = vrot.lane.b32.xlu0 %v597, 64
  %v601 = vpop.permute.xlu0 %600
  %v603 = vmul.f32 %v596, %v601
  %605 = vrot.lane.b32.xlu0 %v603, 32
  %v606 = vpop.permute.xlu0 %605
  %v608 = vadd.f32 %v598, %v606
  %v609 = vtanh.pop %v608
  %611 = vrot.lane.b32.xlu0 %v609, 64
  %v612 = vpop.permute.xlu0 %611
  %v614 = vmul.f32 %v596, %v612
  %v617 = vunpack.c.l.s4 1983009808
  %v618 = vunpack.c.0.s8 %v617
  %v619 = vlaneseq
  %v620 = vshrl.u32 %v619, 7
  %v621 = vsub.s32 %v618, %v620
  %v622 = vrot.slane %v591, %v621
  %623 = vrot.lane.b32.xlu0 %v622, 32
  %v624 = vpop.permute.xlu0 %623
  %s626 = scalar_lea.vmem %s3, 4
  %627 = vst.msk [vmem:[%s626] sm:$0x3] %vm278, %v624
  %v630 = vunpack.c.l.s4 1983009808
  %v631 = vunpack.c.0.s8 %v630
  %v632 = vlaneseq
  %v633 = vshrl.u32 %v632, 7
  %v634 = vsub.s32 %v631, %v633
  %v635 = vrot.slane %v614, %v634
  %636 = vrot.lane.b32.xlu0 %v635, 32
  %v637 = vpop.permute.xlu0 %636
  %s639 = scalar_lea.vmem %s51, 10
  %640 = vst.msk [vmem:[%s639] sm:$0x3] %vm278, %v637
  %s641 = scalar_lea.vmem %s0, 3
  %v642 = vld [vmem:[%s641] sm:$0x1]
  %v643 = vunpack.c.l.bf16 %v642
  %v644 = vpack.c.bf16 %v591, %v591
  %646 = vrot.lane.b32.xlu0 %v644, 32
  %v647 = vpop.permute.xlu0 %646
  %v649 = vsel %vm94, %v647, 0
  %651 = vmatprep.subr.bf16.mxu0 0
  %652 = vmatpush1.bf16.msra.mxu0 %v90
  %653 = vmatprep.subr.bf16.mxu0 0
  %654 = vmatpush1.bf16.msra.mxu0 %v91
  %655 = vmatprep.subr.bf16.mxu0 0
  %656 = vmatpush1.bf16.msra.mxu0 0
  %657 = vmatprep.subr.bf16.mxu0 0
  %658 = vmatpush1.bf16.msra.mxu0 0
  %659 = vmatprep.subr.bf16.mxu0 0
  %660 = vmatpush1.bf16.msra.mxu0 0
  %661 = vmatprep.subr.bf16.mxu0 0
  %662 = vmatpush1.bf16.msra.mxu0 0
  %663 = vmatprep.subr.bf16.mxu0 0
  %664 = vmatpush1.bf16.msra.mxu0 0
  %665 = vmatprep.subr.bf16.mxu0 0
  %666 = vmatpush1.bf16.msra.mxu0 0
  %667 = vmatprep.subr.bf16.mxu0 0
  %668 = vmatpush1.bf16.msra.mxu0 0
  %669 = vmatprep.subr.bf16.mxu0 0
  %670 = vmatpush1.bf16.msra.mxu0 0
  %671 = vmatprep.subr.bf16.mxu0 0
  %672 = vmatpush1.bf16.msra.mxu0 0
  %673 = vmatprep.subr.bf16.mxu0 0
  %674 = vmatpush1.bf16.msra.mxu0 0
  %675 = vmatprep.subr.bf16.mxu0 0
  %676 = vmatpush1.bf16.msra.mxu0 0
  %677 = vmatprep.subr.bf16.mxu0 0
  %678 = vmatpush1.bf16.msra.mxu0 0
  %679 = vmatprep.subr.bf16.mxu0 0
  %680 = vmatpush1.bf16.msra.mxu0 0
  %681 = vmatprep.subr.bf16.mxu0 0
  %682 = vmatpush1.bf16.msra.mxu0 0
  %683 = vmatprep.mubr.bf16.mxu0 0
  %684 = vmatmul.mubr.bf16.gmra.mrb[0].mxu0 %v649
  %v685 = vpop.f32.mrb[0].mxu0
  %v686 = vadd.f32 0.0, %v685
  %v687 = vpop.f32.mrb[0].mxu0
  %v688 = vpop.f32.mrb[0].mxu0
  %v689 = vpop.f32.mrb[0].mxu0
  %690 = vdwg.mxu0
  %v691 = vadd.f32 %v643, %v686
  %s692 = scalar_lea.vmem %s43, 4
  %v693 = vld [vmem:[%s692] sm:$0x1]
  %v694 = vunpack.c.l.bf16 %v693
  %v695 = vpack.c.bf16 %v614, %v614
  %697 = vrot.lane.b32.xlu0 %v695, 32
  %v698 = vpop.permute.xlu0 %697
  %v700 = vsel %vm94, %v698, 0
  %702 = vmatprep.subr.bf16.mxu0 0
  %703 = vmatpush1.bf16.msra.mxu0 %v151
  %704 = vmatprep.subr.bf16.mxu0 0
  %705 = vmatpush1.bf16.msra.mxu0 %v152
  %706 = vmatprep.subr.bf16.mxu0 0
  %707 = vmatpush1.bf16.msra.mxu0 0
  %708 = vmatprep.subr.bf16.mxu0 0
  %709 = vmatpush1.bf16.msra.mxu0 0
  %710 = vmatprep.subr.bf16.mxu0 0
  %711 = vmatpush1.bf16.msra.mxu0 0
  %712 = vmatprep.subr.bf16.mxu0 0
  %713 = vmatpush1.bf16.msra.mxu0 0
  %714 = vmatprep.subr.bf16.mxu0 0
  %715 = vmatpush1.bf16.msra.mxu0 0
  %716 = vmatprep.subr.bf16.mxu0 0
  %717 = vmatpush1.bf16.msra.mxu0 0
  %718 = vmatprep.subr.bf16.mxu0 0
  %719 = vmatpush1.bf16.msra.mxu0 0
  %720 = vmatprep.subr.bf16.mxu0 0
  %721 = vmatpush1.bf16.msra.mxu0 0
  %722 = vmatprep.subr.bf16.mxu0 0
  %723 = vmatpush1.bf16.msra.mxu0 0
  %724 = vmatprep.subr.bf16.mxu0 0
  %725 = vmatpush1.bf16.msra.mxu0 0
  %726 = vmatprep.subr.bf16.mxu0 0
  %727 = vmatpush1.bf16.msra.mxu0 0
  %728 = vmatprep.subr.bf16.mxu0 0
  %729 = vmatpush1.bf16.msra.mxu0 0
  %730 = vmatprep.subr.bf16.mxu0 0
  %731 = vmatpush1.bf16.msra.mxu0 0
  %732 = vmatprep.subr.bf16.mxu0 0
  %733 = vmatpush1.bf16.msra.mxu0 0
  %734 = vmatprep.mubr.bf16.mxu0 0
  %735 = vmatmul.mubr.bf16.gmra.mrb[0].mxu0 %v700
  %v736 = vpop.f32.mrb[0].mxu0
  %v737 = vadd.f32 0.0, %v736
  %v738 = vpop.f32.mrb[0].mxu0
  %v739 = vpop.f32.mrb[0].mxu0
  %v740 = vpop.f32.mrb[0].mxu0
  %741 = vdwg.mxu0
  %v742 = vadd.f32 %v694, %v737
  %v743 = vsub.f32 0.0, %v691
  %v744 = vmul.f32 %v743, 1.442695
  %v745 = vpow.pop %v744
  %v746 = vadd.f32 %v745, 1.0
  %v747 = vrcp.pop %v746
  %v748 = vtanh.pop %v691
  %v749 = vmul.f32 %v747, %v585
  %751 = vrot.lane.b32.xlu0 %v748, 64
  %v752 = vpop.permute.xlu0 %751
  %v754 = vmul.f32 %v747, %v752
  %756 = vrot.lane.b32.xlu0 %v754, 32
  %v757 = vpop.permute.xlu0 %756
  %v759 = vadd.f32 %v749, %v757
  %v760 = vtanh.pop %v759
  %762 = vrot.lane.b32.xlu0 %v760, 64
  %v763 = vpop.permute.xlu0 %762
  %v765 = vmul.f32 %v747, %v763
  %v766 = vsub.f32 0.0, %v742
  %v767 = vmul.f32 %v766, 1.442695
  %v768 = vpow.pop %v767
  %v769 = vadd.f32 %v768, 1.0
  %v770 = vrcp.pop %v769
  %v771 = vtanh.pop %v742
  %v772 = vmul.f32 %v770, %v608
  %774 = vrot.lane.b32.xlu0 %v771, 64
  %v775 = vpop.permute.xlu0 %774
  %v777 = vmul.f32 %v770, %v775
  %779 = vrot.lane.b32.xlu0 %v777, 32
  %v780 = vpop.permute.xlu0 %779
  %v782 = vadd.f32 %v772, %v780
  %v783 = vtanh.pop %v782
  %785 = vrot.lane.b32.xlu0 %v783, 64
  %v786 = vpop.permute.xlu0 %785
  %v788 = vmul.f32 %v770, %v786
  %v791 = vunpack.c.l.s4 1983009808
  %v792 = vunpack.c.0.s8 %v791
  %v793 = vlaneseq
  %v794 = vshrl.u32 %v793, 7
  %v795 = vsub.s32 %v792, %v794
  %v796 = vrot.slane %v765, %v795
  %797 = vrot.lane.b32.xlu0 %v796, 32
  %v798 = vpop.permute.xlu0 %797
  %s800 = scalar_lea.vmem %s3, 6
  %801 = vst.msk [vmem:[%s800] sm:$0x3] %vm278, %v798
  %v804 = vunpack.c.l.s4 1983009808
  %v805 = vunpack.c.0.s8 %v804
  %v806 = vlaneseq
  %v807 = vshrl.u32 %v806, 7
  %v808 = vsub.s32 %v805, %v807
  %v809 = vrot.slane %v788, %v808
  %810 = vrot.lane.b32.xlu0 %v809, 32
  %v811 = vpop.permute.xlu0 %810
  %s813 = scalar_lea.vmem %s51, 8
  %814 = vst.msk [vmem:[%s813] sm:$0x3] %vm278, %v811
  %s815 = scalar_lea.vmem %s0, 4
  %v816 = vld [vmem:[%s815] sm:$0x1]
  %v817 = vunpack.c.l.bf16 %v816
  %v818 = vpack.c.bf16 %v765, %v765
  %820 = vrot.lane.b32.xlu0 %v818, 32
  %v821 = vpop.permute.xlu0 %820
  %v823 = vsel %vm94, %v821, 0
  %825 = vmatprep.subr.bf16.mxu0 0
  %826 = vmatpush1.bf16.msra.mxu0 %v90
  %827 = vmatprep.subr.bf16.mxu0 0
  %828 = vmatpush1.bf16.msra.mxu0 %v91
  %829 = vmatprep.subr.bf16.mxu0 0
  %830 = vmatpush1.bf16.msra.mxu0 0
  %831 = vmatprep.subr.bf16.mxu0 0
  %832 = vmatpush1.bf16.msra.mxu0 0
  %833 = vmatprep.subr.bf16.mxu0 0
  %834 = vmatpush1.bf16.msra.mxu0 0
  %835 = vmatprep.subr.bf16.mxu0 0
  %836 = vmatpush1.bf16.msra.mxu0 0
  %837 = vmatprep.subr.bf16.mxu0 0
  %838 = vmatpush1.bf16.msra.mxu0 0
  %839 = vmatprep.subr.bf16.mxu0 0
  %840 = vmatpush1.bf16.msra.mxu0 0
  %841 = vmatprep.subr.bf16.mxu0 0
  %842 = vmatpush1.bf16.msra.mxu0 0
  %843 = vmatprep.subr.bf16.mxu0 0
  %844 = vmatpush1.bf16.msra.mxu0 0
  %845 = vmatprep.subr.bf16.mxu0 0
  %846 = vmatpush1.bf16.msra.mxu0 0
  %847 = vmatprep.subr.bf16.mxu0 0
  %848 = vmatpush1.bf16.msra.mxu0 0
  %849 = vmatprep.subr.bf16.mxu0 0
  %850 = vmatpush1.bf16.msra.mxu0 0
  %851 = vmatprep.subr.bf16.mxu0 0
  %852 = vmatpush1.bf16.msra.mxu0 0
  %853 = vmatprep.subr.bf16.mxu0 0
  %854 = vmatpush1.bf16.msra.mxu0 0
  %855 = vmatprep.subr.bf16.mxu0 0
  %856 = vmatpush1.bf16.msra.mxu0 0
  %857 = vmatprep.mubr.bf16.mxu0 0
  %858 = vmatmul.mubr.bf16.gmra.mrb[0].mxu0 %v823
  %v859 = vpop.f32.mrb[0].mxu0
  %v860 = vadd.f32 0.0, %v859
  %v861 = vpop.f32.mrb[0].mxu0
  %v862 = vpop.f32.mrb[0].mxu0
  %v863 = vpop.f32.mrb[0].mxu0
  %864 = vdwg.mxu0
  %v865 = vadd.f32 %v817, %v860
  %s866 = scalar_lea.vmem %s43, 3
  %v867 = vld [vmem:[%s866] sm:$0x1]
  %v868 = vunpack.c.l.bf16 %v867
  %v869 = vpack.c.bf16 %v788, %v788
  %871 = vrot.lane.b32.xlu0 %v869, 32
  %v872 = vpop.permute.xlu0 %871
  %v874 = vsel %vm94, %v872, 0
  %876 = vmatprep.subr.bf16.mxu0 0
  %877 = vmatpush1.bf16.msra.mxu0 %v151
  %878 = vmatprep.subr.bf16.mxu0 0
  %879 = vmatpush1.bf16.msra.mxu0 %v152
  %880 = vmatprep.subr.bf16.mxu0 0
  %881 = vmatpush1.bf16.msra.mxu0 0
  %882 = vmatprep.subr.bf16.mxu0 0
  %883 = vmatpush1.bf16.msra.mxu0 0
  %884 = vmatprep.subr.bf16.mxu0 0
  %885 = vmatpush1.bf16.msra.mxu0 0
  %886 = vmatprep.subr.bf16.mxu0 0
  %887 = vmatpush1.bf16.msra.mxu0 0
  %888 = vmatprep.subr.bf16.mxu0 0
  %889 = vmatpush1.bf16.msra.mxu0 0
  %890 = vmatprep.subr.bf16.mxu0 0
  %891 = vmatpush1.bf16.msra.mxu0 0
  %892 = vmatprep.subr.bf16.mxu0 0
  %893 = vmatpush1.bf16.msra.mxu0 0
  %894 = vmatprep.subr.bf16.mxu0 0
  %895 = vmatpush1.bf16.msra.mxu0 0
  %896 = vmatprep.subr.bf16.mxu0 0
  %897 = vmatpush1.bf16.msra.mxu0 0
  %898 = vmatprep.subr.bf16.mxu0 0
  %899 = vmatpush1.bf16.msra.mxu0 0
  %900 = vmatprep.subr.bf16.mxu0 0
  %901 = vmatpush1.bf16.msra.mxu0 0
  %902 = vmatprep.subr.bf16.mxu0 0
  %903 = vmatpush1.bf16.msra.mxu0 0
  %904 = vmatprep.subr.bf16.mxu0 0
  %905 = vmatpush1.bf16.msra.mxu0 0
  %906 = vmatprep.subr.bf16.mxu0 0
  %907 = vmatpush1.bf16.msra.mxu0 0
  %908 = vmatprep.mubr.bf16.mxu0 0
  %909 = vmatmul.mubr.bf16.gmra.mrb[0].mxu0 %v874
  %v910 = vpop.f32.mrb[0].mxu0
  %v911 = vadd.f32 0.0, %v910
  %v912 = vpop.f32.mrb[0].mxu0
  %v913 = vpop.f32.mrb[0].mxu0
  %v914 = vpop.f32.mrb[0].mxu0
  %915 = vdwg.mxu0
  %v916 = vadd.f32 %v868, %v911
  %v917 = vsub.f32 0.0, %v865
  %v918 = vmul.f32 %v917, 1.442695
  %v919 = vpow.pop %v918
  %v920 = vadd.f32 %v919, 1.0
  %v921 = vrcp.pop %v920
  %v922 = vtanh.pop %v865
  %v923 = vmul.f32 %v921, %v759
  %925 = vrot.lane.b32.xlu0 %v922, 64
  %v926 = vpop.permute.xlu0 %925
  %v928 = vmul.f32 %v921, %v926
  %930 = vrot.lane.b32.xlu0 %v928, 32
  %v931 = vpop.permute.xlu0 %930
  %v933 = vadd.f32 %v923, %v931
  %v934 = vtanh.pop %v933
  %936 = vrot.lane.b32.xlu0 %v934, 64
  %v937 = vpop.permute.xlu0 %936
  %v939 = vmul.f32 %v921, %v937
  %v940 = vsub.f32 0.0, %v916
  %v941 = vmul.f32 %v940, 1.442695
  %v942 = vpow.pop %v941
  %v943 = vadd.f32 %v942, 1.0
  %v944 = vrcp.pop %v943
  %v945 = vtanh.pop %v916
  %v946 = vmul.f32 %v944, %v782
  %948 = vrot.lane.b32.xlu0 %v945, 64
  %v949 = vpop.permute.xlu0 %948
  %v951 = vmul.f32 %v944, %v949
  %953 = vrot.lane.b32.xlu0 %v951, 32
  %v954 = vpop.permute.xlu0 %953
  %v956 = vadd.f32 %v946, %v954
  %v957 = vtanh.pop %v956
  %959 = vrot.lane.b32.xlu0 %v957, 64
  %v960 = vpop.permute.xlu0 %959
  %v962 = vmul.f32 %v944, %v960
  %v965 = vunpack.c.l.s4 1983009808
  %v966 = vunpack.c.0.s8 %v965
  %v967 = vlaneseq
  %v968 = vshrl.u32 %v967, 7
  %v969 = vsub.s32 %v966, %v968
  %v970 = vrot.slane %v939, %v969
  %971 = vrot.lane.b32.xlu0 %v970, 32
  %v972 = vpop.permute.xlu0 %971
  %s974 = scalar_lea.vmem %s3, 8
  %975 = vst.msk [vmem:[%s974] sm:$0x3] %vm278, %v972
  %v978 = vunpack.c.l.s4 1983009808
  %v979 = vunpack.c.0.s8 %v978
  %v980 = vlaneseq
  %v981 = vshrl.u32 %v980, 7
  %v982 = vsub.s32 %v979, %v981
  %v983 = vrot.slane %v962, %v982
  %984 = vrot.lane.b32.xlu0 %v983, 32
  %v985 = vpop.permute.xlu0 %984
  %s987 = scalar_lea.vmem %s51, 6
  %988 = vst.msk [vmem:[%s987] sm:$0x3] %vm278, %v985
  %s989 = scalar_lea.vmem %s0, 5
  %v990 = vld [vmem:[%s989] sm:$0x1]
  %v991 = vunpack.c.l.bf16 %v990
  %v992 = vpack.c.bf16 %v939, %v939
  %994 = vrot.lane.b32.xlu0 %v992, 32
  %v995 = vpop.permute.xlu0 %994
  %v997 = vsel %vm94, %v995, 0
  %999 = vmatprep.subr.bf16.mxu0 0
  %1000 = vmatpush1.bf16.msra.mxu0 %v90
  %1001 = vmatprep.subr.bf16.mxu0 0
  %1002 = vmatpush1.bf16.msra.mxu0 %v91
  %1003 = vmatprep.subr.bf16.mxu0 0
  %1004 = vmatpush1.bf16.msra.mxu0 0
  %1005 = vmatprep.subr.bf16.mxu0 0
  %1006 = vmatpush1.bf16.msra.mxu0 0
  %1007 = vmatprep.subr.bf16.mxu0 0
  %1008 = vmatpush1.bf16.msra.mxu0 0
  %1009 = vmatprep.subr.bf16.mxu0 0
  %1010 = vmatpush1.bf16.msra.mxu0 0
  %1011 = vmatprep.subr.bf16.mxu0 0
  %1012 = vmatpush1.bf16.msra.mxu0 0
  %1013 = vmatprep.subr.bf16.mxu0 0
  %1014 = vmatpush1.bf16.msra.mxu0 0
  %1015 = vmatprep.subr.bf16.mxu0 0
  %1016 = vmatpush1.bf16.msra.mxu0 0
  %1017 = vmatprep.subr.bf16.mxu0 0
  %1018 = vmatpush1.bf16.msra.mxu0 0
  %1019 = vmatprep.subr.bf16.mxu0 0
  %1020 = vmatpush1.bf16.msra.mxu0 0
  %1021 = vmatprep.subr.bf16.mxu0 0
  %1022 = vmatpush1.bf16.msra.mxu0 0
  %1023 = vmatprep.subr.bf16.mxu0 0
  %1024 = vmatpush1.bf16.msra.mxu0 0
  %1025 = vmatprep.subr.bf16.mxu0 0
  %1026 = vmatpush1.bf16.msra.mxu0 0
  %1027 = vmatprep.subr.bf16.mxu0 0
  %1028 = vmatpush1.bf16.msra.mxu0 0
  %1029 = vmatprep.subr.bf16.mxu0 0
  %1030 = vmatpush1.bf16.msra.mxu0 0
  %1031 = vmatprep.mubr.bf16.mxu0 0
  %1032 = vmatmul.mubr.bf16.gmra.mrb[0].mxu0 %v997
  %v1033 = vpop.f32.mrb[0].mxu0
  %v1034 = vadd.f32 0.0, %v1033
  %v1035 = vpop.f32.mrb[0].mxu0
  %v1036 = vpop.f32.mrb[0].mxu0
  %v1037 = vpop.f32.mrb[0].mxu0
  %1038 = vdwg.mxu0
  %v1039 = vadd.f32 %v991, %v1034
  %s1040 = scalar_lea.vmem %s43, 2
  %v1041 = vld [vmem:[%s1040] sm:$0x1]
  %v1042 = vunpack.c.l.bf16 %v1041
  %v1043 = vpack.c.bf16 %v962, %v962
  %1045 = vrot.lane.b32.xlu0 %v1043, 32
  %v1046 = vpop.permute.xlu0 %1045
  %v1048 = vsel %vm94, %v1046, 0
  %1050 = vmatprep.subr.bf16.mxu0 0
  %1051 = vmatpush1.bf16.msra.mxu0 %v151
  %1052 = vmatprep.subr.bf16.mxu0 0
  %1053 = vmatpush1.bf16.msra.mxu0 %v152
  %1054 = vmatprep.subr.bf16.mxu0 0
  %1055 = vmatpush1.bf16.msra.mxu0 0
  %1056 = vmatprep.subr.bf16.mxu0 0
  %1057 = vmatpush1.bf16.msra.mxu0 0
  %1058 = vmatprep.subr.bf16.mxu0 0
  %1059 = vmatpush1.bf16.msra.mxu0 0
  %1060 = vmatprep.subr.bf16.mxu0 0
  %1061 = vmatpush1.bf16.msra.mxu0 0
  %1062 = vmatprep.subr.bf16.mxu0 0
  %1063 = vmatpush1.bf16.msra.mxu0 0
  %1064 = vmatprep.subr.bf16.mxu0 0
  %1065 = vmatpush1.bf16.msra.mxu0 0
  %1066 = vmatprep.subr.bf16.mxu0 0
  %1067 = vmatpush1.bf16.msra.mxu0 0
  %1068 = vmatprep.subr.bf16.mxu0 0
  %1069 = vmatpush1.bf16.msra.mxu0 0
  %1070 = vmatprep.subr.bf16.mxu0 0
  %1071 = vmatpush1.bf16.msra.mxu0 0
  %1072 = vmatprep.subr.bf16.mxu0 0
  %1073 = vmatpush1.bf16.msra.mxu0 0
  %1074 = vmatprep.subr.bf16.mxu0 0
  %1075 = vmatpush1.bf16.msra.mxu0 0
  %1076 = vmatprep.subr.bf16.mxu0 0
  %1077 = vmatpush1.bf16.msra.mxu0 0
  %1078 = vmatprep.subr.bf16.mxu0 0
  %1079 = vmatpush1.bf16.msra.mxu0 0
  %1080 = vmatprep.subr.bf16.mxu0 0
  %1081 = vmatpush1.bf16.msra.mxu0 0
  %1082 = vmatprep.mubr.bf16.mxu0 0
  %1083 = vmatmul.mubr.bf16.gmra.mrb[0].mxu0 %v1048
  %v1084 = vpop.f32.mrb[0].mxu0
  %v1085 = vadd.f32 0.0, %v1084
  %v1086 = vpop.f32.mrb[0].mxu0
  %v1087 = vpop.f32.mrb[0].mxu0
  %v1088 = vpop.f32.mrb[0].mxu0
  %1089 = vdwg.mxu0
  %v1090 = vadd.f32 %v1042, %v1085
  %v1091 = vsub.f32 0.0, %v1039
  %v1092 = vmul.f32 %v1091, 1.442695
  %v1093 = vpow.pop %v1092
  %v1094 = vadd.f32 %v1093, 1.0
  %v1095 = vrcp.pop %v1094
  %v1096 = vtanh.pop %v1039
  %v1097 = vmul.f32 %v1095, %v933
  %1099 = vrot.lane.b32.xlu0 %v1096, 64
  %v1100 = vpop.permute.xlu0 %1099
  %v1102 = vmul.f32 %v1095, %v1100
  %1104 = vrot.lane.b32.xlu0 %v1102, 32
  %v1105 = vpop.permute.xlu0 %1104
  %v1107 = vadd.f32 %v1097, %v1105
  %v1108 = vtanh.pop %v1107
  %1110 = vrot.lane.b32.xlu0 %v1108, 64
  %v1111 = vpop.permute.xlu0 %1110
  %v1113 = vmul.f32 %v1095, %v1111
  %v1114 = vsub.f32 0.0, %v1090
  %v1115 = vmul.f32 %v1114, 1.442695
  %v1116 = vpow.pop %v1115
  %v1117 = vadd.f32 %v1116, 1.0
  %v1118 = vrcp.pop %v1117
  %v1119 = vtanh.pop %v1090
  %v1120 = vmul.f32 %v1118, %v956
  %1122 = vrot.lane.b32.xlu0 %v1119, 64
  %v1123 = vpop.permute.xlu0 %1122
  %v1125 = vmul.f32 %v1118, %v1123
  %1127 = vrot.lane.b32.xlu0 %v1125, 32
  %v1128 = vpop.permute.xlu0 %1127
  %v1130 = vadd.f32 %v1120, %v1128
  %v1131 = vtanh.pop %v1130
  %1133 = vrot.lane.b32.xlu0 %v1131, 64
  %v1134 = vpop.permute.xlu0 %1133
  %v1136 = vmul.f32 %v1118, %v1134
  %v1139 = vunpack.c.l.s4 1983009808
  %v1140 = vunpack.c.0.s8 %v1139
  %v1141 = vlaneseq
  %v1142 = vshrl.u32 %v1141, 7
  %v1143 = vsub.s32 %v1140, %v1142
  %v1144 = vrot.slane %v1113, %v1143
  %1145 = vrot.lane.b32.xlu0 %v1144, 32
  %v1146 = vpop.permute.xlu0 %1145
  %s1148 = scalar_lea.vmem %s3, 10
  %1149 = vst.msk [vmem:[%s1148] sm:$0x3] %vm278, %v1146
  %v1152 = vunpack.c.l.s4 1983009808
  %v1153 = vunpack.c.0.s8 %v1152
  %v1154 = vlaneseq
  %v1155 = vshrl.u32 %v1154, 7
  %v1156 = vsub.s32 %v1153, %v1155
  %v1157 = vrot.slane %v1136, %v1156
  %1158 = vrot.lane.b32.xlu0 %v1157, 32
  %v1159 = vpop.permute.xlu0 %1158
  %s1161 = scalar_lea.vmem %s51, 4
  %1162 = vst.msk [vmem:[%s1161] sm:$0x3] %vm278, %v1159
  %s1163 = scalar_lea.vmem %s0, 6
  %v1164 = vld [vmem:[%s1163] sm:$0x1]
  %v1165 = vunpack.c.l.bf16 %v1164
  %v1166 = vpack.c.bf16 %v1113, %v1113
  %1168 = vrot.lane.b32.xlu0 %v1166, 32
  %v1169 = vpop.permute.xlu0 %1168
  %v1171 = vsel %vm94, %v1169, 0
  %1173 = vmatprep.subr.bf16.mxu0 0
  %1174 = vmatpush1.bf16.msra.mxu0 %v90
  %1175 = vmatprep.subr.bf16.mxu0 0
  %1176 = vmatpush1.bf16.msra.mxu0 %v91
  %1177 = vmatprep.subr.bf16.mxu0 0
  %1178 = vmatpush1.bf16.msra.mxu0 0
  %1179 = vmatprep.subr.bf16.mxu0 0
  %1180 = vmatpush1.bf16.msra.mxu0 0
  %1181 = vmatprep.subr.bf16.mxu0 0
  %1182 = vmatpush1.bf16.msra.mxu0 0
  %1183 = vmatprep.subr.bf16.mxu0 0
  %1184 = vmatpush1.bf16.msra.mxu0 0
  %1185 = vmatprep.subr.bf16.mxu0 0
  %1186 = vmatpush1.bf16.msra.mxu0 0
  %1187 = vmatprep.subr.bf16.mxu0 0
  %1188 = vmatpush1.bf16.msra.mxu0 0
  %1189 = vmatprep.subr.bf16.mxu0 0
  %1190 = vmatpush1.bf16.msra.mxu0 0
  %1191 = vmatprep.subr.bf16.mxu0 0
  %1192 = vmatpush1.bf16.msra.mxu0 0
  %1193 = vmatprep.subr.bf16.mxu0 0
  %1194 = vmatpush1.bf16.msra.mxu0 0
  %1195 = vmatprep.subr.bf16.mxu0 0
  %1196 = vmatpush1.bf16.msra.mxu0 0
  %1197 = vmatprep.subr.bf16.mxu0 0
  %1198 = vmatpush1.bf16.msra.mxu0 0
  %1199 = vmatprep.subr.bf16.mxu0 0
  %1200 = vmatpush1.bf16.msra.mxu0 0
  %1201 = vmatprep.subr.bf16.mxu0 0
  %1202 = vmatpush1.bf16.msra.mxu0 0
  %1203 = vmatprep.subr.bf16.mxu0 0
  %1204 = vmatpush1.bf16.msra.mxu0 0
  %1205 = vmatprep.mubr.bf16.mxu0 0
  %1206 = vmatmul.mubr.bf16.gmra.mrb[0].mxu0 %v1171
  %v1207 = vpop.f32.mrb[0].mxu0
  %v1208 = vadd.f32 0.0, %v1207
  %v1209 = vpop.f32.mrb[0].mxu0
  %v1210 = vpop.f32.mrb[0].mxu0
  %v1211 = vpop.f32.mrb[0].mxu0
  %1212 = vdwg.mxu0
  %v1213 = vadd.f32 %v1165, %v1208
  %s1214 = scalar_lea.vmem %s43, 1
  %v1215 = vld [vmem:[%s1214] sm:$0x1]
  %v1216 = vunpack.c.l.bf16 %v1215
  %v1217 = vpack.c.bf16 %v1136, %v1136
  %1219 = vrot.lane.b32.xlu0 %v1217, 32
  %v1220 = vpop.permute.xlu0 %1219
  %v1222 = vsel %vm94, %v1220, 0
  %1224 = vmatprep.subr.bf16.mxu0 0
  %1225 = vmatpush1.bf16.msra.mxu0 %v151
  %1226 = vmatprep.subr.bf16.mxu0 0
  %1227 = vmatpush1.bf16.msra.mxu0 %v152
  %1228 = vmatprep.subr.bf16.mxu0 0
  %1229 = vmatpush1.bf16.msra.mxu0 0
  %1230 = vmatprep.subr.bf16.mxu0 0
  %1231 = vmatpush1.bf16.msra.mxu0 0
  %1232 = vmatprep.subr.bf16.mxu0 0
  %1233 = vmatpush1.bf16.msra.mxu0 0
  %1234 = vmatprep.subr.bf16.mxu0 0
  %1235 = vmatpush1.bf16.msra.mxu0 0
  %1236 = vmatprep.subr.bf16.mxu0 0
  %1237 = vmatpush1.bf16.msra.mxu0 0
  %1238 = vmatprep.subr.bf16.mxu0 0
  %1239 = vmatpush1.bf16.msra.mxu0 0
  %1240 = vmatprep.subr.bf16.mxu0 0
  %1241 = vmatpush1.bf16.msra.mxu0 0
  %1242 = vmatprep.subr.bf16.mxu0 0
  %1243 = vmatpush1.bf16.msra.mxu0 0
  %1244 = vmatprep.subr.bf16.mxu0 0
  %1245 = vmatpush1.bf16.msra.mxu0 0
  %1246 = vmatprep.subr.bf16.mxu0 0
  %1247 = vmatpush1.bf16.msra.mxu0 0
  %1248 = vmatprep.subr.bf16.mxu0 0
  %1249 = vmatpush1.bf16.msra.mxu0 0
  %1250 = vmatprep.subr.bf16.mxu0 0
  %1251 = vmatpush1.bf16.msra.mxu0 0
  %1252 = vmatprep.subr.bf16.mxu0 0
  %1253 = vmatpush1.bf16.msra.mxu0 0
  %1254 = vmatprep.subr.bf16.mxu0 0
  %1255 = vmatpush1.bf16.msra.mxu0 0
  %1256 = vmatprep.mubr.bf16.mxu0 0
  %1257 = vmatmul.mubr.bf16.gmra.mrb[0].mxu0 %v1222
  %v1258 = vpop.f32.mrb[0].mxu0
  %v1259 = vadd.f32 0.0, %v1258
  %v1260 = vpop.f32.mrb[0].mxu0
  %v1261 = vpop.f32.mrb[0].mxu0
  %v1262 = vpop.f32.mrb[0].mxu0
  %1263 = vdwg.mxu0
  %v1264 = vadd.f32 %v1216, %v1259
  %v1265 = vsub.f32 0.0, %v1213
  %v1266 = vmul.f32 %v1265, 1.442695
  %v1267 = vpow.pop %v1266
  %v1268 = vadd.f32 %v1267, 1.0
  %v1269 = vrcp.pop %v1268
  %v1270 = vtanh.pop %v1213
  %v1271 = vmul.f32 %v1269, %v1107
  %1273 = vrot.lane.b32.xlu0 %v1270, 64
  %v1274 = vpop.permute.xlu0 %1273
  %v1276 = vmul.f32 %v1269, %v1274
  %1278 = vrot.lane.b32.xlu0 %v1276, 32
  %v1279 = vpop.permute.xlu0 %1278
  %v1281 = vadd.f32 %v1271, %v1279
  %v1282 = vtanh.pop %v1281
  %1284 = vrot.lane.b32.xlu0 %v1282, 64
  %v1285 = vpop.permute.xlu0 %1284
  %v1287 = vmul.f32 %v1269, %v1285
  %v1288 = vsub.f32 0.0, %v1264
  %v1289 = vmul.f32 %v1288, 1.442695
  %v1290 = vpow.pop %v1289
  %v1291 = vadd.f32 %v1290, 1.0
  %v1292 = vrcp.pop %v1291
  %v1293 = vtanh.pop %v1264
  %v1294 = vmul.f32 %v1292, %v1130
  %1296 = vrot.lane.b32.xlu0 %v1293, 64
  %v1297 = vpop.permute.xlu0 %1296
  %v1299 = vmul.f32 %v1292, %v1297
  %1301 = vrot.lane.b32.xlu0 %v1299, 32
  %v1302 = vpop.permute.xlu0 %1301
  %v1304 = vadd.f32 %v1294, %v1302
  %v1305 = vtanh.pop %v1304
  %1307 = vrot.lane.b32.xlu0 %v1305, 64
  %v1308 = vpop.permute.xlu0 %1307
  %v1310 = vmul.f32 %v1292, %v1308
  %v1313 = vunpack.c.l.s4 1983009808
  %v1314 = vunpack.c.0.s8 %v1313
  %v1315 = vlaneseq
  %v1316 = vshrl.u32 %v1315, 7
  %v1317 = vsub.s32 %v1314, %v1316
  %v1318 = vrot.slane %v1287, %v1317
  %1319 = vrot.lane.b32.xlu0 %v1318, 32
  %v1320 = vpop.permute.xlu0 %1319
  %s1322 = scalar_lea.vmem %s3, 12
  %1323 = vst.msk [vmem:[%s1322] sm:$0x3] %vm278, %v1320
  %v1326 = vunpack.c.l.s4 1983009808
  %v1327 = vunpack.c.0.s8 %v1326
  %v1328 = vlaneseq
  %v1329 = vshrl.u32 %v1328, 7
  %v1330 = vsub.s32 %v1327, %v1329
  %v1331 = vrot.slane %v1310, %v1330
  %1332 = vrot.lane.b32.xlu0 %v1331, 32
  %v1333 = vpop.permute.xlu0 %1332
  %s1335 = scalar_lea.vmem %s51, 2
  %1336 = vst.msk [vmem:[%s1335] sm:$0x3] %vm278, %v1333
  %s1337 = scalar_lea.vmem %s0, 7
  %v1338 = vld [vmem:[%s1337] sm:$0x1]
  %v1339 = vunpack.c.l.bf16 %v1338
  %v1340 = vpack.c.bf16 %v1287, %v1287
  %1342 = vrot.lane.b32.xlu0 %v1340, 32
  %v1343 = vpop.permute.xlu0 %1342
  %v1345 = vsel %vm94, %v1343, 0
  %1347 = vmatprep.subr.bf16.mxu0 0
  %1348 = vmatpush1.bf16.msra.mxu0 %v90
  %1349 = vmatprep.subr.bf16.mxu0 0
  %1350 = vmatpush1.bf16.msra.mxu0 %v91
  %1351 = vmatprep.subr.bf16.mxu0 0
  %1352 = vmatpush1.bf16.msra.mxu0 0
  %1353 = vmatprep.subr.bf16.mxu0 0
  %1354 = vmatpush1.bf16.msra.mxu0 0
  %1355 = vmatprep.subr.bf16.mxu0 0
  %1356 = vmatpush1.bf16.msra.mxu0 0
  %1357 = vmatprep.subr.bf16.mxu0 0
  %1358 = vmatpush1.bf16.msra.mxu0 0
  %1359 = vmatprep.subr.bf16.mxu0 0
  %1360 = vmatpush1.bf16.msra.mxu0 0
  %1361 = vmatprep.subr.bf16.mxu0 0
  %1362 = vmatpush1.bf16.msra.mxu0 0
  %1363 = vmatprep.subr.bf16.mxu0 0
  %1364 = vmatpush1.bf16.msra.mxu0 0
  %1365 = vmatprep.subr.bf16.mxu0 0
  %1366 = vmatpush1.bf16.msra.mxu0 0
  %1367 = vmatprep.subr.bf16.mxu0 0
  %1368 = vmatpush1.bf16.msra.mxu0 0
  %1369 = vmatprep.subr.bf16.mxu0 0
  %1370 = vmatpush1.bf16.msra.mxu0 0
  %1371 = vmatprep.subr.bf16.mxu0 0
  %1372 = vmatpush1.bf16.msra.mxu0 0
  %1373 = vmatprep.subr.bf16.mxu0 0
  %1374 = vmatpush1.bf16.msra.mxu0 0
  %1375 = vmatprep.subr.bf16.mxu0 0
  %1376 = vmatpush1.bf16.msra.mxu0 0
  %1377 = vmatprep.subr.bf16.mxu0 0
  %1378 = vmatpush1.bf16.msra.mxu0 0
  %1379 = vmatprep.mubr.bf16.mxu0 0
  %1380 = vmatmul.mubr.bf16.gmra.mrb[0].mxu0 %v1345
  %v1381 = vpop.f32.mrb[0].mxu0
  %v1382 = vadd.f32 0.0, %v1381
  %v1383 = vpop.f32.mrb[0].mxu0
  %v1384 = vpop.f32.mrb[0].mxu0
  %v1385 = vpop.f32.mrb[0].mxu0
  %1386 = vdwg.mxu0
  %v1387 = vadd.f32 %v1339, %v1382
  %v1388 = vld [vmem:[%s43] sm:$0x1]
  %v1389 = vunpack.c.l.bf16 %v1388
  %v1390 = vpack.c.bf16 %v1310, %v1310
  %1392 = vrot.lane.b32.xlu0 %v1390, 32
  %v1393 = vpop.permute.xlu0 %1392
  %v1395 = vsel %vm94, %v1393, 0
  %1397 = vmatprep.subr.bf16.mxu0 0
  %1398 = vmatpush1.bf16.msra.mxu0 %v151
  %1399 = vmatprep.subr.bf16.mxu0 0
  %1400 = vmatpush1.bf16.msra.mxu0 %v152
  %1401 = vmatprep.subr.bf16.mxu0 0
  %1402 = vmatpush1.bf16.msra.mxu0 0
  %1403 = vmatprep.subr.bf16.mxu0 0
  %1404 = vmatpush1.bf16.msra.mxu0 0
  %1405 = vmatprep.subr.bf16.mxu0 0
  %1406 = vmatpush1.bf16.msra.mxu0 0
  %1407 = vmatprep.subr.bf16.mxu0 0
  %1408 = vmatpush1.bf16.msra.mxu0 0
  %1409 = vmatprep.subr.bf16.mxu0 0
  %1410 = vmatpush1.bf16.msra.mxu0 0
  %1411 = vmatprep.subr.bf16.mxu0 0
  %1412 = vmatpush1.bf16.msra.mxu0 0
  %1413 = vmatprep.subr.bf16.mxu0 0
  %1414 = vmatpush1.bf16.msra.mxu0 0
  %1415 = vmatprep.subr.bf16.mxu0 0
  %1416 = vmatpush1.bf16.msra.mxu0 0
  %1417 = vmatprep.subr.bf16.mxu0 0
  %1418 = vmatpush1.bf16.msra.mxu0 0
  %1419 = vmatprep.subr.bf16.mxu0 0
  %1420 = vmatpush1.bf16.msra.mxu0 0
  %1421 = vmatprep.subr.bf16.mxu0 0
  %1422 = vmatpush1.bf16.msra.mxu0 0
  %1423 = vmatprep.subr.bf16.mxu0 0
  %1424 = vmatpush1.bf16.msra.mxu0 0
  %1425 = vmatprep.subr.bf16.mxu0 0
  %1426 = vmatpush1.bf16.msra.mxu0 0
  %1427 = vmatprep.subr.bf16.mxu0 0
  %1428 = vmatpush1.bf16.msra.mxu0 0
  %1429 = vmatprep.mubr.bf16.mxu0 0
  %1430 = vmatmul.mubr.bf16.gmra.mrb[0].mxu0 %v1395
  %v1431 = vpop.f32.mrb[0].mxu0
  %v1432 = vadd.f32 0.0, %v1431
  %v1433 = vpop.f32.mrb[0].mxu0
  %v1434 = vpop.f32.mrb[0].mxu0
  %v1435 = vpop.f32.mrb[0].mxu0
  %1436 = vdwg.mxu0
  %v1437 = vadd.f32 %v1389, %v1432
  %v1438 = vsub.f32 0.0, %v1387
  %v1439 = vmul.f32 %v1438, 1.442695
  %v1440 = vpow.pop %v1439
  %v1441 = vadd.f32 %v1440, 1.0
  %v1442 = vrcp.pop %v1441
  %v1443 = vtanh.pop %v1387
  %v1444 = vmul.f32 %v1442, %v1281
  %1446 = vrot.lane.b32.xlu0 %v1443, 64
  %v1447 = vpop.permute.xlu0 %1446
  %v1449 = vmul.f32 %v1442, %v1447
  %1451 = vrot.lane.b32.xlu0 %v1449, 32
  %v1452 = vpop.permute.xlu0 %1451
  %v1454 = vadd.f32 %v1444, %v1452
  %v1455 = vtanh.pop %v1454
  %1457 = vrot.lane.b32.xlu0 %v1455, 64
  %v1458 = vpop.permute.xlu0 %1457
  %v1460 = vmul.f32 %v1442, %v1458
  %v1461 = vsub.f32 0.0, %v1437
  %v1462 = vmul.f32 %v1461, 1.442695
  %v1463 = vpow.pop %v1462
  %v1464 = vadd.f32 %v1463, 1.0
  %v1465 = vrcp.pop %v1464
  %v1466 = vtanh.pop %v1437
  %v1467 = vmul.f32 %v1465, %v1304
  %1469 = vrot.lane.b32.xlu0 %v1466, 64
  %v1470 = vpop.permute.xlu0 %1469
  %v1472 = vmul.f32 %v1465, %v1470
  %1474 = vrot.lane.b32.xlu0 %v1472, 32
  %v1475 = vpop.permute.xlu0 %1474
  %v1477 = vadd.f32 %v1467, %v1475
  %v1478 = vtanh.pop %v1477
  %1480 = vrot.lane.b32.xlu0 %v1478, 64
  %v1481 = vpop.permute.xlu0 %1480
  %v1483 = vmul.f32 %v1465, %v1481
  %v1486 = vunpack.c.l.s4 1983009808
  %v1487 = vunpack.c.0.s8 %v1486
  %v1488 = vlaneseq
  %v1489 = vshrl.u32 %v1488, 7
  %v1490 = vsub.s32 %v1487, %v1489
  %v1491 = vrot.slane %v1460, %v1490
  %1492 = vrot.lane.b32.xlu0 %v1491, 32
  %v1493 = vpop.permute.xlu0 %1492
  %s1495 = scalar_lea.vmem %s3, 14
  %1496 = vst.msk [vmem:[%s1495] sm:$0x3] %vm278, %v1493
  %v1499 = vunpack.c.l.s4 1983009808
  %v1500 = vunpack.c.0.s8 %v1499
  %v1501 = vlaneseq
  %v1502 = vshrl.u32 %v1501, 7
  %v1503 = vsub.s32 %v1500, %v1502
  %v1504 = vrot.slane %v1483, %v1503
  %1505 = vrot.lane.b32.xlu0 %v1504, 32
  %v1506 = vpop.permute.xlu0 %1505
  %1508 = vst.msk [vmem:[%s51] sm:$0x3] %vm278, %v1506
  %1509 = vst.msk [vmem:[#allocation2] sm:$0x3] %vm278, %v1493
  %v1512 = vunpack.c.l.s4 1983009808
  %v1513 = vunpack.c.0.s8 %v1512
  %v1514 = vlaneseq
  %v1515 = vshrl.u32 %v1514, 7
  %v1516 = vsub.s32 %v1513, %v1515
  %v1517 = vrot.slane %v1454, %v1516
  %1518 = vrot.lane.b32.xlu0 %v1517, 96
  %v1519 = vpop.permute.xlu0 %1518
  %1521 = vst.msk [vmem:[#allocation3] sm:$0x3] %vm278, %v1519
  %1522 = vst.msk [vmem:[%s75] sm:$0x3] %vm278, %v1506
  %v1525 = vunpack.c.l.s4 1983009808
  %v1526 = vunpack.c.0.s8 %v1525
  %v1527 = vlaneseq
  %v1528 = vshrl.u32 %v1527, 7
  %v1529 = vsub.s32 %v1526, %v1528
  %v1530 = vrot.slane %v1477, %v1529
  %1531 = vrot.lane.b32.xlu0 %v1530, 96
  %v1532 = vpop.permute.xlu0 %1531
  %1534 = vst.msk [vmem:[%s77] sm:$0x3] %vm278, %v1532
  // Predicated region
  $region18: #{rnn_encoder_forward.3} parent=0 // pred_check
    %p1535 = pneg %p55
  $region19: #{rnn_encoder_forward.3} parent=0 // pred_check_branch
    %1537 = sbr.rel (%p1535) target = $region21
  $region20: #{rnn_encoder_forward.3} parent=0 // pred_region
    %1538 = vst.msk [vmem:[%s5] sm:$0x3] %vm278, %v1493
    %s1539 = scalar_lea.vmem %s5, 2
    %1540 = vst.msk [vmem:[%s1539] sm:$0x3] %vm278, %v1506
    %1541 = vst.msk [vmem:[%s6] sm:$0x3] %vm278, %v1519
    %s1542 = scalar_lea.vmem %s6, 2
    %1543 = vst.msk [vmem:[%s1542] sm:$0x3] %vm278, %v1532
  $region21: #{rnn_encoder_forward.3} parent=0 // pred_fallthru
    _
  %s1544 = ssub.s32 0, 0
  %s1545 = smul.u32 8, %s1544
  %p1546 = scmp.lt.s32.totalorder %s1545, 7
  %s1547 = scalar_select %p1546, %s1545, 7
  %s1548 = smul.addr %s1547, 2
  %s1549 = scalar_lea.vmem %s4, %s1548
  // Predicated region
  $region22: #{rnn_encoder_forward.3} parent=0 // pred_check
    _
  $region23: #{rnn_encoder_forward.3} parent=0 // pred_check_branch
    %1551 = sbr.rel (0) target = $region25
  $region24: #{rnn_encoder_forward.3} parent=0 // pred_region
    _
  $region25: #{rnn_encoder_forward.3} parent=0 // pred_fallthru
    _
  // Predicated region
  $region26: #{rnn_encoder_forward.3} parent=0 // pred_check
    _
  $region27: #{rnn_encoder_forward.3} parent=0 // pred_check_branch
    %1553 = sbr.rel (0) target = $region29
  $region28: #{rnn_encoder_forward.3} parent=0 // pred_region
    %s1554 = ssub.s32 0, 0
    %s1555 = smul.u32 8, %s1554
  $region29: #{rnn_encoder_forward.3} parent=0 // pred_fallthru
    _
  // Predicated region
  $region30: #{rnn_encoder_forward.3} parent=0 // pred_check
    _
  $region31: #{rnn_encoder_forward.3} parent=0 // pred_check_branch
    %1557 = sbr.rel (0) target = $region33
  $region32: #{rnn_encoder_forward.3} parent=0 // pred_region
    _
  $region33: #{rnn_encoder_forward.3} parent=0 // pred_fallthru
    _
  // Predicated region
  $region34: #{rnn_encoder_forward.3} parent=0 // pred_check
    _
  $region35: #{rnn_encoder_forward.3} parent=0 // pred_check_branch
    %1559 = sbr.rel (0) target = $region37
  $region36: #{rnn_encoder_forward.3} parent=0 // pred_region
    _
  $region37: #{rnn_encoder_forward.3} parent=0 // pred_fallthru
    _
  // Predicated region
  $region38: #{rnn_encoder_forward.3} parent=0 // pred_check
    _
  $region39: #{rnn_encoder_forward.3} parent=0 // pred_check_branch
    %1561 = sbr.rel (0) target = $region41
  $region40: #{rnn_encoder_forward.3} parent=0 // pred_region
    _
  $region41: #{rnn_encoder_forward.3} parent=0 // pred_fallthru
    _
  // Predicated region
  $region42: #{rnn_encoder_forward.3} parent=0 // pred_check
    _
  $region43: #{rnn_encoder_forward.3} parent=0 // pred_check_branch
    %1563 = sbr.rel (0) target = $region45
  $region44: #{rnn_encoder_forward.3} parent=0 // pred_region
    %s1564 = ssub.s32 0, 0
    %s1565 = smul.u32 8, %s1564
    %p1566 = scmp.lt.s32.totalorder %s1565, 7
    %s1567 = scalar_select %p1566, %s1565, 7
    %s1568 = smul.addr %s1567, 2
    %s1569 = scalar_lea.vmem %s4, %s1568
  $region45: #{rnn_encoder_forward.3} parent=0 // pred_fallthru
    _
  // Predicated region
  $region46: #{rnn_encoder_forward.3} parent=0 // pred_check
    _
  $region47: #{rnn_encoder_forward.3} parent=0 // pred_check_branch
    %1571 = sbr.rel (0) target = $region49
  $region48: #{rnn_encoder_forward.3} parent=0 // pred_region
    _
  $region49: #{rnn_encoder_forward.3} parent=0 // pred_fallthru
    _
  // Predicated region
  $region50: #{rnn_encoder_forward.3} parent=0 // pred_check
    _
  $region51: #{rnn_encoder_forward.3} parent=0 // pred_check_branch
    %1573 = sbr.rel (0) target = $region53
  $region52: #{rnn_encoder_forward.3} parent=0 // pred_region
    _
  $region53: #{rnn_encoder_forward.3} parent=0 // pred_fallthru
    _

</llo_original>
